<compile_context>
chip_gen: v7x
topology: tpu7x:2x2x1
jax: 0.10.0
libtpu: 0.0.40
codegen_flags: <defaults>
</compile_context>

<pallas_src>
import functools

import jax
import jax.numpy as jnp
from jax.experimental import pallas as pl
from jax.experimental.pallas import tpu as pltpu

# ---------------- config ----------------
CHAR_DIMS = 16
BICHAR_DIMS = 16
INPUT_DIMS = CHAR_DIMS          # must equal char_dims for the module's forward to typecheck
LSTM_HIDDENS = 32
LABEL_SIZE = 8
LABEL_PAD = 128                 # lane-dense output width; sliced back to LABEL_SIZE

_VMEM = pl.BlockSpec(memory_space=pltpu.MemorySpace.VMEM)


# ---------------- fused Pallas kernel ----------------
def _bilstm_fused_kernel(x_ref, mask_ref, clw_ref, clb_ref, wih_ref,
                         whh_ref, bias_ref, lw_ref, score_ref, outcat_ref,
                         *, hidden, seq_len, batch):
    """Fused forward: tanh(char_liner(x)) -> packed BiLSTM -> liner (bias=False).

    All tensors are 2-D, time-major row-flattened (row = t * B + b):
      x_ref     [T*B, F]   concatenated embeddings (f32)
      mask_ref  [T*B, 1]   1.0 iff t < real_length[b]  (prefix mask)
      clw_ref   [F, D] bf16, clb_ref [1, D] f32        char_liner weight^T / bias
      wih_ref   [D, 8H] bf16   [W_ih_fwd^T | W_ih_bwd^T], gate order i,f,o,g
      whh_ref   [2H, 8H] bf16  block-diagonal [W_hh_fwd^T ; W_hh_bwd^T]
      bias_ref  [1, 8H] f32    [b_f | b_b] (b_ih + b_hh), gate order i,f,o,g
      lw_ref    [2H, Lpad] bf16  output liner weight^T, label dim padded to 128
      score_ref [T*B, Lpad] f32  output; zero at padded positions
    Scratch (VMEM): outcat_ref [T*B, 2H]  per-step [h_fwd | h_bwd].
    """
    T, B, H = seq_len, batch, hidden
    G = 4 * H

    # Stage 1: char_liner + tanh for every position at once (bf16 MXU, f32 acc).
    lstm_in = jnp.tanh(
        jnp.dot(x_ref[...].astype(jnp.bfloat16), clw_ref[...],
                preferred_element_type=jnp.float32) + clb_ref[...])       # [T*B, D] f32

    # Stage 2: hoisted input projection for BOTH directions, kept in REGISTERS
    # (no VMEM scratch round trip; [T*B, 8H] f32 is ~8 vregs at this size).
    gates = (jnp.dot(lstm_in.astype(jnp.bfloat16), wih_ref[...],
                     preferred_element_type=jnp.float32) + bias_ref[...])  # [T*B, 8H]
    mask = mask_ref[...]                                                   # [T*B, 1]
    whh = whh_ref[...]                                                     # [2H, 8H] bf16

    def gate_math(g, c):
        # gate column order (reordered in wrapper): i, f, o, g
        sg = jax.nn.sigmoid(g[:, 0:3 * H])     # one contiguous EUP pass: i, f, o
        gg = jnp.tanh(g[:, 3 * H:4 * H])       # tanh gate only
        i = sg[:, 0:H]
        f = sg[:, H:2 * H]
        o = sg[:, 2 * H:3 * H]
        c_new = f * c + i * gg
        h_new = o * jnp.tanh(c_new)
        return h_new, c_new

    zeros = jnp.zeros((B, H), jnp.float32)
    h_f, c_f, h_b, c_b = zeros, zeros, zeros, zeros

    # Stage 3: merged forward/backward recurrence, fully unrolled (T static).
    # One block-diagonal W_hh matmul per step covers both directions.
    for s in range(T):
        tf = s                 # forward direction walks t = 0 .. T-1
        tb = T - 1 - s         # backward direction walks t = T-1 .. 0
        gin_f = gates[tf * B:(tf + 1) * B, 0:G]          # static register slices
        gin_b = gates[tb * B:(tb + 1) * B, G:2 * G]
        m_f = mask[tf * B:(tf + 1) * B, :]               # [B, 1]
        m_b = mask[tb * B:(tb + 1) * B, :]

        h_cat = jnp.concatenate([h_f, h_b], axis=1)      # [B, 2H]
        g_cat = jnp.dot(h_cat.astype(jnp.bfloat16), whh,
                        preferred_element_type=jnp.float32)     # [B, 8H] f32
        hf_n, cf_n = gate_math(g_cat[:, 0:G] + gin_f, c_f)
        hb_n, cb_n = gate_math(g_cat[:, G:2 * G] + gin_b, c_b)

        # packed-sequence semantics: freeze recurrent state once t >= length
        # (backward direction thus effectively starts at t = length - 1).
        h_f = h_f + m_f * (hf_n - h_f)
        c_f = c_f + m_f * (cf_n - c_f)
        h_b = h_b + m_b * (hb_n - h_b)
        c_b = c_b + m_b * (cb_n - c_b)

        # off-critical-path stores of the per-step hidden states
        outcat_ref[tf * B:(tf + 1) * B, 0:H] = h_f
        outcat_ref[tb * B:(tb + 1) * B, H:2 * H] = h_b

    # Stage 4: output liner (bias=False) on all positions at once: one bf16
    # matmul + a single lane-dense (128-wide) store; padded positions zeroed
    # (pad_packed_sequence behavior, equals PyTorch's 0 @ W since liner has no
    # bias).
    score = jnp.dot(outcat_ref[...].astype(jnp.bfloat16), lw_ref[...],
                    preferred_element_type=jnp.float32)          # [T*B, Lpad]
    score_ref[...] = score * mask


# ---------------- wrappers ----------------
def bilstm_fused_pallas(x_tm2d, mask_tm2d, clw, clb, wih_cat, whh_bd, b_cat,
                        lw_pad, *, seq_len, batch):
    H = LSTM_HIDDENS
    Lp = lw_pad.shape[-1]
    kernel = functools.partial(_bilstm_fused_kernel, hidden=H,
                               seq_len=seq_len, batch=batch)
    return pl.pallas_call(
        kernel,
        out_shape=jax.ShapeDtypeStruct((seq_len * batch, Lp), jnp.float32),
        in_specs=[_VMEM] * 8,
        out_specs=_VMEM,
        scratch_shapes=[
            pltpu.VMEM((seq_len * batch, 2 * H), jnp.float32),   # [h_fwd | h_bwd]
        ],
    )(x_tm2d, mask_tm2d, clw, clb, wih_cat, whh_bd, b_cat, lw_pad)


def _reorder_ifgo_to_ifog(w):
    """PyTorch packs LSTM gates as [i, f, g, o] along the 4H axis; reorder to
    [i, f, o, g] so sigmoid / tanh act on contiguous column slices in-kernel."""
    H = LSTM_HIDDENS
    return jnp.concatenate([w[..., 0:2 * H], w[..., 3 * H:4 * H],
                            w[..., 2 * H:3 * H]], axis=-1)


@jax.jit
def bilstm_forward(params, batch_chars, batch_bichars, batch_exchars,
                   batch_exbichars, char_mask):
    B, T = batch_chars.shape
    H = LSTM_HIDDENS

    # Embedding lookups (padding_idx=0 rows are zero in the tables).  Glue in JAX.
    chars_embed = params["char_embed"][batch_chars]
    bichars_embed = params["bichar_embed"][batch_bichars]
    ex_chars_embed = params["exchar_embed"][batch_exchars]
    ex_bichars_embed = params["exbichar_embed"][batch_exbichars]
    char_represents = jnp.concatenate(
        [chars_embed, bichars_embed, ex_chars_embed, ex_bichars_embed], axis=-1)
    F = char_represents.shape[-1]                                  # 2*char + 2*bichar

    # Tiny time-major, row-flattened views for the fused kernel.
    x_tm2d = jnp.transpose(char_represents, (1, 0, 2)).reshape(T * B, F)
    mask_tm2d = jnp.transpose(char_mask.astype(jnp.float32), (1, 0)).reshape(T * B, 1)

    # Gate-column reorder (i,f,g,o -> i,f,o,g) + bf16 MXU-operand preparation.
    wih_f = _reorder_ifgo_to_ifog(params["wih_f"])
    wih_b = _reorder_ifgo_to_ifog(params["wih_b"])
    whh_f = _reorder_ifgo_to_ifog(params["whh_f"])
    whh_b = _reorder_ifgo_to_ifog(params["whh_b"])
    b_f = _reorder_ifgo_to_ifog(params["b_f"])
    b_b = _reorder_ifgo_to_ifog(params["b_b"])

    # Pack both directions' input-projection weights / biases side by side.
    wih_cat = jnp.concatenate([wih_f, wih_b], axis=1).astype(jnp.bfloat16)  # [D, 8H]
    b_cat = jnp.concatenate([b_f, b_b], axis=1)                             # [1, 8H]

    # Block-diagonal W_hh so the recurrence needs ONE matmul per step.
    whh_bd = jnp.zeros((2 * H, 8 * H), jnp.float32)
    whh_bd = whh_bd.at[0:H, 0:4 * H].set(whh_f)
    whh_bd = whh_bd.at[H:2 * H, 4 * H:8 * H].set(whh_b)
    whh_bd = whh_bd.astype(jnp.bfloat16)                                    # [2H, 8H]

    clw = params["char_liner_w"].astype(jnp.bfloat16)
    clb = params["char_liner_b"]

    # Lane-dense output: pad the label dim to 128; sliced back below.
    lw_pad = jnp.zeros((2 * H, LABEL_PAD), jnp.float32)
    lw_pad = lw_pad.at[:, 0:LABEL_SIZE].set(params["liner_w"])
    lw_pad = lw_pad.astype(jnp.bfloat16)                                    # [2H, 128]

    score2d = bilstm_fused_pallas(
        x_tm2d, mask_tm2d, clw, clb, wih_cat, whh_bd, b_cat, lw_pad,
        seq_len=T, batch=B)                                        # [T*B, 128]
    score2d = score2d[:, 0:LABEL_SIZE]                             # [T*B, L]
    return jnp.transpose(score2d.reshape(T, B, LABEL_SIZE), (1, 0, 2))   # [B, T, L]


# ---------------- deterministic setup & run ----------------
if __name__ == "__main__":
    key = jax.random.PRNGKey(0)
    B, T = 2, 16
    CHAR_SIZE, BICHAR_SIZE, EXCHAR_SIZE, EXBICHAR_SIZE = 50, 60, 70, 80
    H = LSTM_HIDDENS
    ks = jax.random.split(key, 20)

    def emb(k, n, d):
        w = jax.random.normal(k, (n, d), jnp.float32)
        return w.at[0].set(0.0)                                    # padding_idx=0

    def unif(k, shape, s=0.1):
        return jax.random.uniform(k, shape, jnp.float32, -s, s)

    params = {
        "char_embed": emb(ks[0], CHAR_SIZE, CHAR_DIMS),
        "bichar_embed": emb(ks[1], BICHAR_SIZE, BICHAR_DIMS),
        "exchar_embed": emb(ks[2], EXCHAR_SIZE, CHAR_DIMS),
        "exbichar_embed": emb(ks[3], EXBICHAR_SIZE, BICHAR_DIMS),
        # char_liner: Linear(2*char+2*bichar -> input_dims), stored pre-transposed [F, N]
        "char_liner_w": unif(ks[4], (2 * CHAR_DIMS + 2 * BICHAR_DIMS, INPUT_DIMS)),
        "char_liner_b": unif(ks[5], (1, INPUT_DIMS)),
        # LSTM weights, pre-transposed: W_ih^T [D,4H], W_hh^T [H,4H], b = b_ih+b_hh [1,4H]
        # (PyTorch gate order i,f,g,o; reordered to i,f,o,g inside the wrapper)
        "wih_f": unif(ks[6], (INPUT_DIMS, 4 * H)),
        "whh_f": unif(ks[7], (H, 4 * H)),
        "b_f": unif(ks[8], (1, 4 * H)),
        "wih_b": unif(ks[9], (INPUT_DIMS, 4 * H)),
        "whh_b": unif(ks[10], (H, 4 * H)),
        "b_b": unif(ks[11], (1, 4 * H)),
        # output liner (bias=False), kaiming-uniform-style init, pre-transposed [2H, L]
        "liner_w": unif(ks[12], (2 * H, LABEL_SIZE), s=0.3),
    }

    lengths = [16, 11]
    char_mask = (jnp.arange(T)[None, :] < jnp.array(lengths)[:, None]).astype(jnp.float32)

    def make_ids(k, high):
        x = jax.random.randint(k, (B, T), 1, high)
        return jnp.where(char_mask > 0, x, 0).astype(jnp.int32)    # pad with id 0

    batch_chars = make_ids(ks[13], CHAR_SIZE)
    batch_bichars = make_ids(ks[14], BICHAR_SIZE)
    batch_exchars = make_ids(ks[15], EXCHAR_SIZE)
    batch_exbichars = make_ids(ks[16], EXBICHAR_SIZE)

    score = bilstm_forward(params, batch_chars, batch_bichars,
                           batch_exchars, batch_exbichars, char_mask)
    max_len = int(max(lengths))               # pad_packed_sequence pads to max real length
    score = score[:, :max_len, :]             # [B, max_len, label_size]
    jax.block_until_ready(score)
    assert score.shape == (B, max_len, LABEL_SIZE)
    print("KERNEL_OK")
</pallas_src>

<mosaic_0001>
module attributes {stable_mosaic.version = 11 : i64} {
  func.func @_bilstm_fused_kernel(%arg0: memref<32x64xf32, #tpu.memory_space<vmem>>, %arg1: memref<32x1xf32, #tpu.memory_space<vmem>>, %arg2: memref<64x16xbf16, #tpu.memory_space<vmem>>, %arg3: memref<1x16xf32, #tpu.memory_space<vmem>>, %arg4: memref<16x256xbf16, #tpu.memory_space<vmem>>, %arg5: memref<64x256xbf16, #tpu.memory_space<vmem>>, %arg6: memref<1x256xf32, #tpu.memory_space<vmem>>, %arg7: memref<64x128xbf16, #tpu.memory_space<vmem>>, %arg8: memref<32x128xf32, #tpu.memory_space<vmem>>, %arg9: memref<32x64xf32, #tpu.memory_space<vmem>>) attributes {dimension_semantics = [], scalar_prefetch = 0 : i64, scratch_operands = 1 : i64, tpu.core_type = #tpu.core_type<tc>} {
    %c0 = arith.constant 0 : index
    %c0_0 = arith.constant 0 : index
    %0 = vector.load %arg0[%c0, %c0_0] : memref<32x64xf32, #tpu.memory_space<vmem>>, vector<32x64xf32>
    %1 = arith.truncf %0 : vector<32x64xf32> to vector<32x64xbf16>
    %c0_1 = arith.constant 0 : index
    %c0_2 = arith.constant 0 : index
    %2 = vector.load %arg2[%c0_1, %c0_2] : memref<64x16xbf16, #tpu.memory_space<vmem>>, vector<64x16xbf16>
    %cst = arith.constant dense<0.000000e+00> : vector<32x16xf32>
    %3 = tpu.matmul %1, %2, %cst {dimension_numbers = #tpu.dot_dimension_numbers<[1], [0], [0], [1], [0, 0, 1, 1], [], []>} : vector<32x64xbf16>, vector<64x16xbf16>, vector<32x16xf32> -> vector<32x16xf32>
    %c0_3 = arith.constant 0 : index
    %c0_4 = arith.constant 0 : index
    %4 = vector.load %arg3[%c0_3, %c0_4] : memref<1x16xf32, #tpu.memory_space<vmem>>, vector<1x16xf32>
    %5 = vector.broadcast %4 : vector<1x16xf32> to vector<32x16xf32>
    %6 = arith.addf %3, %5 : vector<32x16xf32>
    %7 = math.tanh %6 : vector<32x16xf32>
    %8 = arith.truncf %7 : vector<32x16xf32> to vector<32x16xbf16>
    %c0_5 = arith.constant 0 : index
    %c0_6 = arith.constant 0 : index
    %9 = vector.load %arg4[%c0_5, %c0_6] : memref<16x256xbf16, #tpu.memory_space<vmem>>, vector<16x256xbf16>
    %cst_7 = arith.constant dense<0.000000e+00> : vector<32x256xf32>
    %10 = tpu.matmul %8, %9, %cst_7 {dimension_numbers = #tpu.dot_dimension_numbers<[1], [0], [0], [1], [0, 0, 1, 1], [], []>} : vector<32x16xbf16>, vector<16x256xbf16>, vector<32x256xf32> -> vector<32x256xf32>
    %c0_8 = arith.constant 0 : index
    %c0_9 = arith.constant 0 : index
    %11 = vector.load %arg6[%c0_8, %c0_9] : memref<1x256xf32, #tpu.memory_space<vmem>>, vector<1x256xf32>
    %12 = vector.broadcast %11 : vector<1x256xf32> to vector<32x256xf32>
    %13 = arith.addf %10, %12 : vector<32x256xf32>
    %c0_10 = arith.constant 0 : index
    %c0_11 = arith.constant 0 : index
    %14 = vector.load %arg1[%c0_10, %c0_11] : memref<32x1xf32, #tpu.memory_space<vmem>>, vector<32x1xf32>
    %c0_12 = arith.constant 0 : index
    %c0_13 = arith.constant 0 : index
    %15 = vector.load %arg5[%c0_12, %c0_13] : memref<64x256xbf16, #tpu.memory_space<vmem>>, vector<64x256xbf16>
    %cst_14 = arith.constant 0.000000e+00 : f32
    %16 = vector.broadcast %cst_14 : f32 to vector<2x32xf32>
    %17 = vector.extract_strided_slice %13 {offsets = [0, 0], sizes = [2, 128], strides = [1, 1]} : vector<32x256xf32> to vector<2x128xf32>
    %18 = vector.extract_strided_slice %13 {offsets = [30, 128], sizes = [2, 128], strides = [1, 1]} : vector<32x256xf32> to vector<2x128xf32>
    %19 = vector.extract_strided_slice %14 {offsets = [0, 0], sizes = [2, 1], strides = [1, 1]} : vector<32x1xf32> to vector<2x1xf32>
    %20 = vector.extract_strided_slice %14 {offsets = [30, 0], sizes = [2, 1], strides = [1, 1]} : vector<32x1xf32> to vector<2x1xf32>
    %21 = tpu.concatenate %16, %16 in 1 : vector<2x32xf32>, vector<2x32xf32> -> vector<2x64xf32>
    %22 = arith.truncf %21 : vector<2x64xf32> to vector<2x64xbf16>
    %cst_15 = arith.constant dense<0.000000e+00> : vector<2x256xf32>
    %23 = tpu.matmul %22, %15, %cst_15 {dimension_numbers = #tpu.dot_dimension_numbers<[1], [0], [0], [1], [0, 0, 1, 1], [], []>} : vector<2x64xbf16>, vector<64x256xbf16>, vector<2x256xf32> -> vector<2x256xf32>
    %24 = vector.extract_strided_slice %23 {offsets = [0, 0], sizes = [2, 128], strides = [1, 1]} : vector<2x256xf32> to vector<2x128xf32>
    %25 = arith.addf %24, %17 : vector<2x128xf32>
    %26 = vector.extract_strided_slice %25 {offsets = [0, 0], sizes = [2, 96], strides = [1, 1]} : vector<2x128xf32> to vector<2x96xf32>
    %27 = arith.negf %26 : vector<2x96xf32>
    %28 = math.exp %27 : vector<2x96xf32>
    %cst_16 = arith.constant 1.000000e+00 : f32
    %29 = vector.broadcast %cst_16 : f32 to vector<2x96xf32>
    %30 = arith.addf %29, %28 : vector<2x96xf32>
    %31 = arith.divf %29, %30 : vector<2x96xf32>
    %32 = vector.extract_strided_slice %25 {offsets = [0, 96], sizes = [2, 32], strides = [1, 1]} : vector<2x128xf32> to vector<2x32xf32>
    %33 = math.tanh %32 : vector<2x32xf32>
    %34 = vector.extract_strided_slice %31 {offsets = [0, 0], sizes = [2, 32], strides = [1, 1]} : vector<2x96xf32> to vector<2x32xf32>
    %35 = vector.extract_strided_slice %31 {offsets = [0, 32], sizes = [2, 32], strides = [1, 1]} : vector<2x96xf32> to vector<2x32xf32>
    %36 = vector.extract_strided_slice %31 {offsets = [0, 64], sizes = [2, 32], strides = [1, 1]} : vector<2x96xf32> to vector<2x32xf32>
    %37 = arith.mulf %35, %16 : vector<2x32xf32>
    %38 = arith.mulf %34, %33 : vector<2x32xf32>
    %39 = arith.addf %37, %38 : vector<2x32xf32>
    %40 = math.tanh %39 : vector<2x32xf32>
    %41 = arith.mulf %36, %40 : vector<2x32xf32>
    %42 = vector.extract_strided_slice %23 {offsets = [0, 128], sizes = [2, 128], strides = [1, 1]} : vector<2x256xf32> to vector<2x128xf32>
    %43 = arith.addf %42, %18 : vector<2x128xf32>
    %44 = vector.extract_strided_slice %43 {offsets = [0, 0], sizes = [2, 96], strides = [1, 1]} : vector<2x128xf32> to vector<2x96xf32>
    %45 = arith.negf %44 : vector<2x96xf32>
    %46 = math.exp %45 : vector<2x96xf32>
    %cst_17 = arith.constant 1.000000e+00 : f32
    %47 = vector.broadcast %cst_17 : f32 to vector<2x96xf32>
    %48 = arith.addf %47, %46 : vector<2x96xf32>
    %49 = arith.divf %47, %48 : vector<2x96xf32>
    %50 = vector.extract_strided_slice %43 {offsets = [0, 96], sizes = [2, 32], strides = [1, 1]} : vector<2x128xf32> to vector<2x32xf32>
    %51 = math.tanh %50 : vector<2x32xf32>
    %52 = vector.extract_strided_slice %49 {offsets = [0, 0], sizes = [2, 32], strides = [1, 1]} : vector<2x96xf32> to vector<2x32xf32>
    %53 = vector.extract_strided_slice %49 {offsets = [0, 32], sizes = [2, 32], strides = [1, 1]} : vector<2x96xf32> to vector<2x32xf32>
    %54 = vector.extract_strided_slice %49 {offsets = [0, 64], sizes = [2, 32], strides = [1, 1]} : vector<2x96xf32> to vector<2x32xf32>
    %55 = arith.mulf %53, %16 : vector<2x32xf32>
    %56 = arith.mulf %52, %51 : vector<2x32xf32>
    %57 = arith.addf %55, %56 : vector<2x32xf32>
    %58 = math.tanh %57 : vector<2x32xf32>
    %59 = arith.mulf %54, %58 : vector<2x32xf32>
    %60 = arith.subf %41, %16 : vector<2x32xf32>
    %61 = vector.broadcast %19 : vector<2x1xf32> to vector<2x32xf32>
    %62 = arith.mulf %61, %60 : vector<2x32xf32>
    %63 = arith.addf %16, %62 : vector<2x32xf32>
    %64 = arith.subf %39, %16 : vector<2x32xf32>
    %65 = vector.broadcast %19 : vector<2x1xf32> to vector<2x32xf32>
    %66 = arith.mulf %65, %64 : vector<2x32xf32>
    %67 = arith.addf %16, %66 : vector<2x32xf32>
    %68 = arith.subf %59, %16 : vector<2x32xf32>
    %69 = vector.broadcast %20 : vector<2x1xf32> to vector<2x32xf32>
    %70 = arith.mulf %69, %68 : vector<2x32xf32>
    %71 = arith.addf %16, %70 : vector<2x32xf32>
    %72 = arith.subf %57, %16 : vector<2x32xf32>
    %73 = vector.broadcast %20 : vector<2x1xf32> to vector<2x32xf32>
    %74 = arith.mulf %73, %72 : vector<2x32xf32>
    %75 = arith.addf %16, %74 : vector<2x32xf32>
    %c0_18 = arith.constant 0 : index
    %c0_19 = arith.constant 0 : index
    %76 = vector.load %arg9[%c0_18, %c0_19] : memref<32x64xf32, #tpu.memory_space<vmem>>, vector<2x32xf32>
    tpu.vector_store %arg9[%c0_18, %c0_19], %63 {strides = array<i32>} : memref<32x64xf32, #tpu.memory_space<vmem>>, vector<2x32xf32>,
    %c30 = arith.constant 30 : index
    %c32 = arith.constant 32 : index
    %77 = vector.load %arg9[%c30, %c32] : memref<32x64xf32, #tpu.memory_space<vmem>>, vector<2x32xf32>
    tpu.vector_store %arg9[%c30, %c32], %71 {strides = array<i32>} : memref<32x64xf32, #tpu.memory_space<vmem>>, vector<2x32xf32>,
    %78 = vector.extract_strided_slice %13 {offsets = [2, 0], sizes = [2, 128], strides = [1, 1]} : vector<32x256xf32> to vector<2x128xf32>
    %79 = vector.extract_strided_slice %13 {offsets = [28, 128], sizes = [2, 128], strides = [1, 1]} : vector<32x256xf32> to vector<2x128xf32>
    %80 = vector.extract_strided_slice %14 {offsets = [2, 0], sizes = [2, 1], strides = [1, 1]} : vector<32x1xf32> to vector<2x1xf32>
    %81 = vector.extract_strided_slice %14 {offsets = [28, 0], sizes = [2, 1], strides = [1, 1]} : vector<32x1xf32> to vector<2x1xf32>
    %82 = tpu.concatenate %63, %71 in 1 : vector<2x32xf32>, vector<2x32xf32> -> vector<2x64xf32>
    %83 = arith.truncf %82 : vector<2x64xf32> to vector<2x64xbf16>
    %cst_20 = arith.constant dense<0.000000e+00> : vector<2x256xf32>
    %84 = tpu.matmul %83, %15, %cst_20 {dimension_numbers = #tpu.dot_dimension_numbers<[1], [0], [0], [1], [0, 0, 1, 1], [], []>} : vector<2x64xbf16>, vector<64x256xbf16>, vector<2x256xf32> -> vector<2x256xf32>
    %85 = vector.extract_strided_slice %84 {offsets = [0, 0], sizes = [2, 128], strides = [1, 1]} : vector<2x256xf32> to vector<2x128xf32>
    %86 = arith.addf %85, %78 : vector<2x128xf32>
    %87 = vector.extract_strided_slice %86 {offsets = [0, 0], sizes = [2, 96], strides = [1, 1]} : vector<2x128xf32> to vector<2x96xf32>
    %88 = arith.negf %87 : vector<2x96xf32>
    %89 = math.exp %88 : vector<2x96xf32>
    %cst_21 = arith.constant 1.000000e+00 : f32
    %90 = vector.broadcast %cst_21 : f32 to vector<2x96xf32>
    %91 = arith.addf %90, %89 : vector<2x96xf32>
    %92 = arith.divf %90, %91 : vector<2x96xf32>
    %93 = vector.extract_strided_slice %86 {offsets = [0, 96], sizes = [2, 32], strides = [1, 1]} : vector<2x128xf32> to vector<2x32xf32>
    %94 = math.tanh %93 : vector<2x32xf32>
    %95 = vector.extract_strided_slice %92 {offsets = [0, 0], sizes = [2, 32], strides = [1, 1]} : vector<2x96xf32> to vector<2x32xf32>
    %96 = vector.extract_strided_slice %92 {offsets = [0, 32], sizes = [2, 32], strides = [1, 1]} : vector<2x96xf32> to vector<2x32xf32>
    %97 = vector.extract_strided_slice %92 {offsets = [0, 64], sizes = [2, 32], strides = [1, 1]} : vector<2x96xf32> to vector<2x32xf32>
    %98 = arith.mulf %96, %67 : vector<2x32xf32>
    %99 = arith.mulf %95, %94 : vector<2x32xf32>
    %100 = arith.addf %98, %99 : vector<2x32xf32>
    %101 = math.tanh %100 : vector<2x32xf32>
    %102 = arith.mulf %97, %101 : vector<2x32xf32>
    %103 = vector.extract_strided_slice %84 {offsets = [0, 128], sizes = [2, 128], strides = [1, 1]} : vector<2x256xf32> to vector<2x128xf32>
    %104 = arith.addf %103, %79 : vector<2x128xf32>
    %105 = vector.extract_strided_slice %104 {offsets = [0, 0], sizes = [2, 96], strides = [1, 1]} : vector<2x128xf32> to vector<2x96xf32>
    %106 = arith.negf %105 : vector<2x96xf32>
    %107 = math.exp %106 : vector<2x96xf32>
    %cst_22 = arith.constant 1.000000e+00 : f32
    %108 = vector.broadcast %cst_22 : f32 to vector<2x96xf32>
    %109 = arith.addf %108, %107 : vector<2x96xf32>
    %110 = arith.divf %108, %109 : vector<2x96xf32>
    %111 = vector.extract_strided_slice %104 {offsets = [0, 96], sizes = [2, 32], strides = [1, 1]} : vector<2x128xf32> to vector<2x32xf32>
    %112 = math.tanh %111 : vector<2x32xf32>
    %113 = vector.extract_strided_slice %110 {offsets = [0, 0], sizes = [2, 32], strides = [1, 1]} : vector<2x96xf32> to vector<2x32xf32>
    %114 = vector.extract_strided_slice %110 {offsets = [0, 32], sizes = [2, 32], strides = [1, 1]} : vector<2x96xf32> to vector<2x32xf32>
    %115 = vector.extract_strided_slice %110 {offsets = [0, 64], sizes = [2, 32], strides = [1, 1]} : vector<2x96xf32> to vector<2x32xf32>
    %116 = arith.mulf %114, %75 : vector<2x32xf32>
    %117 = arith.mulf %113, %112 : vector<2x32xf32>
    %118 = arith.addf %116, %117 : vector<2x32xf32>
    %119 = math.tanh %118 : vector<2x32xf32>
    %120 = arith.mulf %115, %119 : vector<2x32xf32>
    %121 = arith.subf %102, %63 : vector<2x32xf32>
    %122 = vector.broadcast %80 : vector<2x1xf32> to vector<2x32xf32>
    %123 = arith.mulf %122, %121 : vector<2x32xf32>
    %124 = arith.addf %63, %123 : vector<2x32xf32>
    %125 = arith.subf %100, %67 : vector<2x32xf32>
    %126 = vector.broadcast %80 : vector<2x1xf32> to vector<2x32xf32>
    %127 = arith.mulf %126, %125 : vector<2x32xf32>
    %128 = arith.addf %67, %127 : vector<2x32xf32>
    %129 = arith.subf %120, %71 : vector<2x32xf32>
    %130 = vector.broadcast %81 : vector<2x1xf32> to vector<2x32xf32>
    %131 = arith.mulf %130, %129 : vector<2x32xf32>
    %132 = arith.addf %71, %131 : vector<2x32xf32>
    %133 = arith.subf %118, %75 : vector<2x32xf32>
    %134 = vector.broadcast %81 : vector<2x1xf32> to vector<2x32xf32>
    %135 = arith.mulf %134, %133 : vector<2x32xf32>
    %136 = arith.addf %75, %135 : vector<2x32xf32>
    %c2 = arith.constant 2 : index
    %c0_23 = arith.constant 0 : index
    %137 = vector.load %arg9[%c2, %c0_23] : memref<32x64xf32, #tpu.memory_space<vmem>>, vector<2x32xf32>
    tpu.vector_store %arg9[%c2, %c0_23], %124 {strides = array<i32>} : memref<32x64xf32, #tpu.memory_space<vmem>>, vector<2x32xf32>,
    %c28 = arith.constant 28 : index
    %c32_24 = arith.constant 32 : index
    %138 = vector.load %arg9[%c28, %c32_24] : memref<32x64xf32, #tpu.memory_space<vmem>>, vector<2x32xf32>
    tpu.vector_store %arg9[%c28, %c32_24], %132 {strides = array<i32>} : memref<32x64xf32, #tpu.memory_space<vmem>>, vector<2x32xf32>,
    %139 = vector.extract_strided_slice %13 {offsets = [4, 0], sizes = [2, 128], strides = [1, 1]} : vector<32x256xf32> to vector<2x128xf32>
    %140 = vector.extract_strided_slice %13 {offsets = [26, 128], sizes = [2, 128], strides = [1, 1]} : vector<32x256xf32> to vector<2x128xf32>
    %141 = vector.extract_strided_slice %14 {offsets = [4, 0], sizes = [2, 1], strides = [1, 1]} : vector<32x1xf32> to vector<2x1xf32>
    %142 = vector.extract_strided_slice %14 {offsets = [26, 0], sizes = [2, 1], strides = [1, 1]} : vector<32x1xf32> to vector<2x1xf32>
    %143 = tpu.concatenate %124, %132 in 1 : vector<2x32xf32>, vector<2x32xf32> -> vector<2x64xf32>
    %144 = arith.truncf %143 : vector<2x64xf32> to vector<2x64xbf16>
    %cst_25 = arith.constant dense<0.000000e+00> : vector<2x256xf32>
    %145 = tpu.matmul %144, %15, %cst_25 {dimension_numbers = #tpu.dot_dimension_numbers<[1], [0], [0], [1], [0, 0, 1, 1], [], []>} : vector<2x64xbf16>, vector<64x256xbf16>, vector<2x256xf32> -> vector<2x256xf32>
    %146 = vector.extract_strided_slice %145 {offsets = [0, 0], sizes = [2, 128], strides = [1, 1]} : vector<2x256xf32> to vector<2x128xf32>
    %147 = arith.addf %146, %139 : vector<2x128xf32>
    %148 = vector.extract_strided_slice %147 {offsets = [0, 0], sizes = [2, 96], strides = [1, 1]} : vector<2x128xf32> to vector<2x96xf32>
    %149 = arith.negf %148 : vector<2x96xf32>
    %150 = math.exp %149 : vector<2x96xf32>
    %cst_26 = arith.constant 1.000000e+00 : f32
    %151 = vector.broadcast %cst_26 : f32 to vector<2x96xf32>
    %152 = arith.addf %151, %150 : vector<2x96xf32>
    %153 = arith.divf %151, %152 : vector<2x96xf32>
    %154 = vector.extract_strided_slice %147 {offsets = [0, 96], sizes = [2, 32], strides = [1, 1]} : vector<2x128xf32> to vector<2x32xf32>
    %155 = math.tanh %154 : vector<2x32xf32>
    %156 = vector.extract_strided_slice %153 {offsets = [0, 0], sizes = [2, 32], strides = [1, 1]} : vector<2x96xf32> to vector<2x32xf32>
    %157 = vector.extract_strided_slice %153 {offsets = [0, 32], sizes = [2, 32], strides = [1, 1]} : vector<2x96xf32> to vector<2x32xf32>
    %158 = vector.extract_strided_slice %153 {offsets = [0, 64], sizes = [2, 32], strides = [1, 1]} : vector<2x96xf32> to vector<2x32xf32>
    %159 = arith.mulf %157, %128 : vector<2x32xf32>
    %160 = arith.mulf %156, %155 : vector<2x32xf32>
    %161 = arith.addf %159, %160 : vector<2x32xf32>
    %162 = math.tanh %161 : vector<2x32xf32>
    %163 = arith.mulf %158, %162 : vector<2x32xf32>
    %164 = vector.extract_strided_slice %145 {offsets = [0, 128], sizes = [2, 128], strides = [1, 1]} : vector<2x256xf32> to vector<2x128xf32>
    %165 = arith.addf %164, %140 : vector<2x128xf32>
    %166 = vector.extract_strided_slice %165 {offsets = [0, 0], sizes = [2, 96], strides = [1, 1]} : vector<2x128xf32> to vector<2x96xf32>
    %167 = arith.negf %166 : vector<2x96xf32>
    %168 = math.exp %167 : vector<2x96xf32>
    %cst_27 = arith.constant 1.000000e+00 : f32
    %169 = vector.broadcast %cst_27 : f32 to vector<2x96xf32>
    %170 = arith.addf %169, %168 : vector<2x96xf32>
    %171 = arith.divf %169, %170 : vector<2x96xf32>
    %172 = vector.extract_strided_slice %165 {offsets = [0, 96], sizes = [2, 32], strides = [1, 1]} : vector<2x128xf32> to vector<2x32xf32>
    %173 = math.tanh %172 : vector<2x32xf32>
    %174 = vector.extract_strided_slice %171 {offsets = [0, 0], sizes = [2, 32], strides = [1, 1]} : vector<2x96xf32> to vector<2x32xf32>
    %175 = vector.extract_strided_slice %171 {offsets = [0, 32], sizes = [2, 32], strides = [1, 1]} : vector<2x96xf32> to vector<2x32xf32>
    %176 = vector.extract_strided_slice %171 {offsets = [0, 64], sizes = [2, 32], strides = [1, 1]} : vector<2x96xf32> to vector<2x32xf32>
    %177 = arith.mulf %175, %136 : vector<2x32xf32>
    %178 = arith.mulf %174, %173 : vector<2x32xf32>
    %179 = arith.addf %177, %178 : vector<2x32xf32>
    %180 = math.tanh %179 : vector<2x32xf32>
    %181 = arith.mulf %176, %180 : vector<2x32xf32>
    %182 = arith.subf %163, %124 : vector<2x32xf32>
    %183 = vector.broadcast %141 : vector<2x1xf32> to vector<2x32xf32>
    %184 = arith.mulf %183, %182 : vector<2x32xf32>
    %185 = arith.addf %124, %184 : vector<2x32xf32>
    %186 = arith.subf %161, %128 : vector<2x32xf32>
    %187 = vector.broadcast %141 : vector<2x1xf32> to vector<2x32xf32>
    %188 = arith.mulf %187, %186 : vector<2x32xf32>
    %189 = arith.addf %128, %188 : vector<2x32xf32>
    %190 = arith.subf %181, %132 : vector<2x32xf32>
    %191 = vector.broadcast %142 : vector<2x1xf32> to vector<2x32xf32>
    %192 = arith.mulf %191, %190 : vector<2x32xf32>
    %193 = arith.addf %132, %192 : vector<2x32xf32>
    %194 = arith.subf %179, %136 : vector<2x32xf32>
    %195 = vector.broadcast %142 : vector<2x1xf32> to vector<2x32xf32>
    %196 = arith.mulf %195, %194 : vector<2x32xf32>
    %197 = arith.addf %136, %196 : vector<2x32xf32>
    %c4 = arith.constant 4 : index
    %c0_28 = arith.constant 0 : index
    %198 = vector.load %arg9[%c4, %c0_28] : memref<32x64xf32, #tpu.memory_space<vmem>>, vector<2x32xf32>
    tpu.vector_store %arg9[%c4, %c0_28], %185 {strides = array<i32>} : memref<32x64xf32, #tpu.memory_space<vmem>>, vector<2x32xf32>,
    %c26 = arith.constant 26 : index
    %c32_29 = arith.constant 32 : index
    %199 = vector.load %arg9[%c26, %c32_29] : memref<32x64xf32, #tpu.memory_space<vmem>>, vector<2x32xf32>
    tpu.vector_store %arg9[%c26, %c32_29], %193 {strides = array<i32>} : memref<32x64xf32, #tpu.memory_space<vmem>>, vector<2x32xf32>,
    %200 = vector.extract_strided_slice %13 {offsets = [6, 0], sizes = [2, 128], strides = [1, 1]} : vector<32x256xf32> to vector<2x128xf32>
    %201 = vector.extract_strided_slice %13 {offsets = [24, 128], sizes = [2, 128], strides = [1, 1]} : vector<32x256xf32> to vector<2x128xf32>
    %202 = vector.extract_strided_slice %14 {offsets = [6, 0], sizes = [2, 1], strides = [1, 1]} : vector<32x1xf32> to vector<2x1xf32>
    %203 = vector.extract_strided_slice %14 {offsets = [24, 0], sizes = [2, 1], strides = [1, 1]} : vector<32x1xf32> to vector<2x1xf32>
    %204 = tpu.concatenate %185, %193 in 1 : vector<2x32xf32>, vector<2x32xf32> -> vector<2x64xf32>
    %205 = arith.truncf %204 : vector<2x64xf32> to vector<2x64xbf16>
    %cst_30 = arith.constant dense<0.000000e+00> : vector<2x256xf32>
    %206 = tpu.matmul %205, %15, %cst_30 {dimension_numbers = #tpu.dot_dimension_numbers<[1], [0], [0], [1], [0, 0, 1, 1], [], []>} : vector<2x64xbf16>, vector<64x256xbf16>, vector<2x256xf32> -> vector<2x256xf32>
    %207 = vector.extract_strided_slice %206 {offsets = [0, 0], sizes = [2, 128], strides = [1, 1]} : vector<2x256xf32> to vector<2x128xf32>
    %208 = arith.addf %207, %200 : vector<2x128xf32>
    %209 = vector.extract_strided_slice %208 {offsets = [0, 0], sizes = [2, 96], strides = [1, 1]} : vector<2x128xf32> to vector<2x96xf32>
    %210 = arith.negf %209 : vector<2x96xf32>
    %211 = math.exp %210 : vector<2x96xf32>
    %cst_31 = arith.constant 1.000000e+00 : f32
    %212 = vector.broadcast %cst_31 : f32 to vector<2x96xf32>
    %213 = arith.addf %212, %211 : vector<2x96xf32>
    %214 = arith.divf %212, %213 : vector<2x96xf32>
    %215 = vector.extract_strided_slice %208 {offsets = [0, 96], sizes = [2, 32], strides = [1, 1]} : vector<2x128xf32> to vector<2x32xf32>
    %216 = math.tanh %215 : vector<2x32xf32>
    %217 = vector.extract_strided_slice %214 {offsets = [0, 0], sizes = [2, 32], strides = [1, 1]} : vector<2x96xf32> to vector<2x32xf32>
    %218 = vector.extract_strided_slice %214 {offsets = [0, 32], sizes = [2, 32], strides = [1, 1]} : vector<2x96xf32> to vector<2x32xf32>
    %219 = vector.extract_strided_slice %214 {offsets = [0, 64], sizes = [2, 32], strides = [1, 1]} : vector<2x96xf32> to vector<2x32xf32>
    %220 = arith.mulf %218, %189 : vector<2x32xf32>
    %221 = arith.mulf %217, %216 : vector<2x32xf32>
    %222 = arith.addf %220, %221 : vector<2x32xf32>
    %223 = math.tanh %222 : vector<2x32xf32>
    %224 = arith.mulf %219, %223 : vector<2x32xf32>
    %225 = vector.extract_strided_slice %206 {offsets = [0, 128], sizes = [2, 128], strides = [1, 1]} : vector<2x256xf32> to vector<2x128xf32>
    %226 = arith.addf %225, %201 : vector<2x128xf32>
    %227 = vector.extract_strided_slice %226 {offsets = [0, 0], sizes = [2, 96], strides = [1, 1]} : vector<2x128xf32> to vector<2x96xf32>
    %228 = arith.negf %227 : vector<2x96xf32>
    %229 = math.exp %228 : vector<2x96xf32>
    %cst_32 = arith.constant 1.000000e+00 : f32
    %230 = vector.broadcast %cst_32 : f32 to vector<2x96xf32>
    %231 = arith.addf %230, %229 : vector<2x96xf32>
    %232 = arith.divf %230, %231 : vector<2x96xf32>
    %233 = vector.extract_strided_slice %226 {offsets = [0, 96], sizes = [2, 32], strides = [1, 1]} : vector<2x128xf32> to vector<2x32xf32>
    %234 = math.tanh %233 : vector<2x32xf32>
    %235 = vector.extract_strided_slice %232 {offsets = [0, 0], sizes = [2, 32], strides = [1, 1]} : vector<2x96xf32> to vector<2x32xf32>
    %236 = vector.extract_strided_slice %232 {offsets = [0, 32], sizes = [2, 32], strides = [1, 1]} : vector<2x96xf32> to vector<2x32xf32>
    %237 = vector.extract_strided_slice %232 {offsets = [0, 64], sizes = [2, 32], strides = [1, 1]} : vector<2x96xf32> to vector<2x32xf32>
    %238 = arith.mulf %236, %197 : vector<2x32xf32>
    %239 = arith.mulf %235, %234 : vector<2x32xf32>
    %240 = arith.addf %238, %239 : vector<2x32xf32>
    %241 = math.tanh %240 : vector<2x32xf32>
    %242 = arith.mulf %237, %241 : vector<2x32xf32>
    %243 = arith.subf %224, %185 : vector<2x32xf32>
    %244 = vector.broadcast %202 : vector<2x1xf32> to vector<2x32xf32>
    %245 = arith.mulf %244, %243 : vector<2x32xf32>
    %246 = arith.addf %185, %245 : vector<2x32xf32>
    %247 = arith.subf %222, %189 : vector<2x32xf32>
    %248 = vector.broadcast %202 : vector<2x1xf32> to vector<2x32xf32>
    %249 = arith.mulf %248, %247 : vector<2x32xf32>
    %250 = arith.addf %189, %249 : vector<2x32xf32>
    %251 = arith.subf %242, %193 : vector<2x32xf32>
    %252 = vector.broadcast %203 : vector<2x1xf32> to vector<2x32xf32>
    %253 = arith.mulf %252, %251 : vector<2x32xf32>
    %254 = arith.addf %193, %253 : vector<2x32xf32>
    %255 = arith.subf %240, %197 : vector<2x32xf32>
    %256 = vector.broadcast %203 : vector<2x1xf32> to vector<2x32xf32>
    %257 = arith.mulf %256, %255 : vector<2x32xf32>
    %258 = arith.addf %197, %257 : vector<2x32xf32>
    %c6 = arith.constant 6 : index
    %c0_33 = arith.constant 0 : index
    %259 = vector.load %arg9[%c6, %c0_33] : memref<32x64xf32, #tpu.memory_space<vmem>>, vector<2x32xf32>
    tpu.vector_store %arg9[%c6, %c0_33], %246 {strides = array<i32>} : memref<32x64xf32, #tpu.memory_space<vmem>>, vector<2x32xf32>,
    %c24 = arith.constant 24 : index
    %c32_34 = arith.constant 32 : index
    %260 = vector.load %arg9[%c24, %c32_34] : memref<32x64xf32, #tpu.memory_space<vmem>>, vector<2x32xf32>
    tpu.vector_store %arg9[%c24, %c32_34], %254 {strides = array<i32>} : memref<32x64xf32, #tpu.memory_space<vmem>>, vector<2x32xf32>,
    %261 = vector.extract_strided_slice %13 {offsets = [8, 0], sizes = [2, 128], strides = [1, 1]} : vector<32x256xf32> to vector<2x128xf32>
    %262 = vector.extract_strided_slice %13 {offsets = [22, 128], sizes = [2, 128], strides = [1, 1]} : vector<32x256xf32> to vector<2x128xf32>
    %263 = vector.extract_strided_slice %14 {offsets = [8, 0], sizes = [2, 1], strides = [1, 1]} : vector<32x1xf32> to vector<2x1xf32>
    %264 = vector.extract_strided_slice %14 {offsets = [22, 0], sizes = [2, 1], strides = [1, 1]} : vector<32x1xf32> to vector<2x1xf32>
    %265 = tpu.concatenate %246, %254 in 1 : vector<2x32xf32>, vector<2x32xf32> -> vector<2x64xf32>
    %266 = arith.truncf %265 : vector<2x64xf32> to vector<2x64xbf16>
    %cst_35 = arith.constant dense<0.000000e+00> : vector<2x256xf32>
    %267 = tpu.matmul %266, %15, %cst_35 {dimension_numbers = #tpu.dot_dimension_numbers<[1], [0], [0], [1], [0, 0, 1, 1], [], []>} : vector<2x64xbf16>, vector<64x256xbf16>, vector<2x256xf32> -> vector<2x256xf32>
    %268 = vector.extract_strided_slice %267 {offsets = [0, 0], sizes = [2, 128], strides = [1, 1]} : vector<2x256xf32> to vector<2x128xf32>
    %269 = arith.addf %268, %261 : vector<2x128xf32>
    %270 = vector.extract_strided_slice %269 {offsets = [0, 0], sizes = [2, 96], strides = [1, 1]} : vector<2x128xf32> to vector<2x96xf32>
    %271 = arith.negf %270 : vector<2x96xf32>
    %272 = math.exp %271 : vector<2x96xf32>
    %cst_36 = arith.constant 1.000000e+00 : f32
    %273 = vector.broadcast %cst_36 : f32 to vector<2x96xf32>
    %274 = arith.addf %273, %272 : vector<2x96xf32>
    %275 = arith.divf %273, %274 : vector<2x96xf32>
    %276 = vector.extract_strided_slice %269 {offsets = [0, 96], sizes = [2, 32], strides = [1, 1]} : vector<2x128xf32> to vector<2x32xf32>
    %277 = math.tanh %276 : vector<2x32xf32>
    %278 = vector.extract_strided_slice %275 {offsets = [0, 0], sizes = [2, 32], strides = [1, 1]} : vector<2x96xf32> to vector<2x32xf32>
    %279 = vector.extract_strided_slice %275 {offsets = [0, 32], sizes = [2, 32], strides = [1, 1]} : vector<2x96xf32> to vector<2x32xf32>
    %280 = vector.extract_strided_slice %275 {offsets = [0, 64], sizes = [2, 32], strides = [1, 1]} : vector<2x96xf32> to vector<2x32xf32>
    %281 = arith.mulf %279, %250 : vector<2x32xf32>
    %282 = arith.mulf %278, %277 : vector<2x32xf32>
    %283 = arith.addf %281, %282 : vector<2x32xf32>
    %284 = math.tanh %283 : vector<2x32xf32>
    %285 = arith.mulf %280, %284 : vector<2x32xf32>
    %286 = vector.extract_strided_slice %267 {offsets = [0, 128], sizes = [2, 128], strides = [1, 1]} : vector<2x256xf32> to vector<2x128xf32>
    %287 = arith.addf %286, %262 : vector<2x128xf32>
    %288 = vector.extract_strided_slice %287 {offsets = [0, 0], sizes = [2, 96], strides = [1, 1]} : vector<2x128xf32> to vector<2x96xf32>
    %289 = arith.negf %288 : vector<2x96xf32>
    %290 = math.exp %289 : vector<2x96xf32>
    %cst_37 = arith.constant 1.000000e+00 : f32
    %291 = vector.broadcast %cst_37 : f32 to vector<2x96xf32>
    %292 = arith.addf %291, %290 : vector<2x96xf32>
    %293 = arith.divf %291, %292 : vector<2x96xf32>
    %294 = vector.extract_strided_slice %287 {offsets = [0, 96], sizes = [2, 32], strides = [1, 1]} : vector<2x128xf32> to vector<2x32xf32>
    %295 = math.tanh %294 : vector<2x32xf32>
    %296 = vector.extract_strided_slice %293 {offsets = [0, 0], sizes = [2, 32], strides = [1, 1]} : vector<2x96xf32> to vector<2x32xf32>
    %297 = vector.extract_strided_slice %293 {offsets = [0, 32], sizes = [2, 32], strides = [1, 1]} : vector<2x96xf32> to vector<2x32xf32>
    %298 = vector.extract_strided_slice %293 {offsets = [0, 64], sizes = [2, 32], strides = [1, 1]} : vector<2x96xf32> to vector<2x32xf32>
    %299 = arith.mulf %297, %258 : vector<2x32xf32>
    %300 = arith.mulf %296, %295 : vector<2x32xf32>
    %301 = arith.addf %299, %300 : vector<2x32xf32>
    %302 = math.tanh %301 : vector<2x32xf32>
    %303 = arith.mulf %298, %302 : vector<2x32xf32>
    %304 = arith.subf %285, %246 : vector<2x32xf32>
    %305 = vector.broadcast %263 : vector<2x1xf32> to vector<2x32xf32>
    %306 = arith.mulf %305, %304 : vector<2x32xf32>
    %307 = arith.addf %246, %306 : vector<2x32xf32>
    %308 = arith.subf %283, %250 : vector<2x32xf32>
    %309 = vector.broadcast %263 : vector<2x1xf32> to vector<2x32xf32>
    %310 = arith.mulf %309, %308 : vector<2x32xf32>
    %311 = arith.addf %250, %310 : vector<2x32xf32>
    %312 = arith.subf %303, %254 : vector<2x32xf32>
    %313 = vector.broadcast %264 : vector<2x1xf32> to vector<2x32xf32>
    %314 = arith.mulf %313, %312 : vector<2x32xf32>
    %315 = arith.addf %254, %314 : vector<2x32xf32>
    %316 = arith.subf %301, %258 : vector<2x32xf32>
    %317 = vector.broadcast %264 : vector<2x1xf32> to vector<2x32xf32>
    %318 = arith.mulf %317, %316 : vector<2x32xf32>
    %319 = arith.addf %258, %318 : vector<2x32xf32>
    %c8 = arith.constant 8 : index
    %c0_38 = arith.constant 0 : index
    %320 = vector.load %arg9[%c8, %c0_38] : memref<32x64xf32, #tpu.memory_space<vmem>>, vector<2x32xf32>
    tpu.vector_store %arg9[%c8, %c0_38], %307 {strides = array<i32>} : memref<32x64xf32, #tpu.memory_space<vmem>>, vector<2x32xf32>,
    %c22 = arith.constant 22 : index
    %c32_39 = arith.constant 32 : index
    %321 = vector.load %arg9[%c22, %c32_39] : memref<32x64xf32, #tpu.memory_space<vmem>>, vector<2x32xf32>
    tpu.vector_store %arg9[%c22, %c32_39], %315 {strides = array<i32>} : memref<32x64xf32, #tpu.memory_space<vmem>>, vector<2x32xf32>,
    %322 = vector.extract_strided_slice %13 {offsets = [10, 0], sizes = [2, 128], strides = [1, 1]} : vector<32x256xf32> to vector<2x128xf32>
    %323 = vector.extract_strided_slice %13 {offsets = [20, 128], sizes = [2, 128], strides = [1, 1]} : vector<32x256xf32> to vector<2x128xf32>
    %324 = vector.extract_strided_slice %14 {offsets = [10, 0], sizes = [2, 1], strides = [1, 1]} : vector<32x1xf32> to vector<2x1xf32>
    %325 = vector.extract_strided_slice %14 {offsets = [20, 0], sizes = [2, 1], strides = [1, 1]} : vector<32x1xf32> to vector<2x1xf32>
    %326 = tpu.concatenate %307, %315 in 1 : vector<2x32xf32>, vector<2x32xf32> -> vector<2x64xf32>
    %327 = arith.truncf %326 : vector<2x64xf32> to vector<2x64xbf16>
    %cst_40 = arith.constant dense<0.000000e+00> : vector<2x256xf32>
    %328 = tpu.matmul %327, %15, %cst_40 {dimension_numbers = #tpu.dot_dimension_numbers<[1], [0], [0], [1], [0, 0, 1, 1], [], []>} : vector<2x64xbf16>, vector<64x256xbf16>, vector<2x256xf32> -> vector<2x256xf32>
    %329 = vector.extract_strided_slice %328 {offsets = [0, 0], sizes = [2, 128], strides = [1, 1]} : vector<2x256xf32> to vector<2x128xf32>
    %330 = arith.addf %329, %322 : vector<2x128xf32>
    %331 = vector.extract_strided_slice %330 {offsets = [0, 0], sizes = [2, 96], strides = [1, 1]} : vector<2x128xf32> to vector<2x96xf32>
    %332 = arith.negf %331 : vector<2x96xf32>
    %333 = math.exp %332 : vector<2x96xf32>
    %cst_41 = arith.constant 1.000000e+00 : f32
    %334 = vector.broadcast %cst_41 : f32 to vector<2x96xf32>
    %335 = arith.addf %334, %333 : vector<2x96xf32>
    %336 = arith.divf %334, %335 : vector<2x96xf32>
    %337 = vector.extract_strided_slice %330 {offsets = [0, 96], sizes = [2, 32], strides = [1, 1]} : vector<2x128xf32> to vector<2x32xf32>
    %338 = math.tanh %337 : vector<2x32xf32>
    %339 = vector.extract_strided_slice %336 {offsets = [0, 0], sizes = [2, 32], strides = [1, 1]} : vector<2x96xf32> to vector<2x32xf32>
    %340 = vector.extract_strided_slice %336 {offsets = [0, 32], sizes = [2, 32], strides = [1, 1]} : vector<2x96xf32> to vector<2x32xf32>
    %341 = vector.extract_strided_slice %336 {offsets = [0, 64], sizes = [2, 32], strides = [1, 1]} : vector<2x96xf32> to vector<2x32xf32>
    %342 = arith.mulf %340, %311 : vector<2x32xf32>
    %343 = arith.mulf %339, %338 : vector<2x32xf32>
    %344 = arith.addf %342, %343 : vector<2x32xf32>
    %345 = math.tanh %344 : vector<2x32xf32>
    %346 = arith.mulf %341, %345 : vector<2x32xf32>
    %347 = vector.extract_strided_slice %328 {offsets = [0, 128], sizes = [2, 128], strides = [1, 1]} : vector<2x256xf32> to vector<2x128xf32>
    %348 = arith.addf %347, %323 : vector<2x128xf32>
    %349 = vector.extract_strided_slice %348 {offsets = [0, 0], sizes = [2, 96], strides = [1, 1]} : vector<2x128xf32> to vector<2x96xf32>
    %350 = arith.negf %349 : vector<2x96xf32>
    %351 = math.exp %350 : vector<2x96xf32>
    %cst_42 = arith.constant 1.000000e+00 : f32
    %352 = vector.broadcast %cst_42 : f32 to vector<2x96xf32>
    %353 = arith.addf %352, %351 : vector<2x96xf32>
    %354 = arith.divf %352, %353 : vector<2x96xf32>
    %355 = vector.extract_strided_slice %348 {offsets = [0, 96], sizes = [2, 32], strides = [1, 1]} : vector<2x128xf32> to vector<2x32xf32>
    %356 = math.tanh %355 : vector<2x32xf32>
    %357 = vector.extract_strided_slice %354 {offsets = [0, 0], sizes = [2, 32], strides = [1, 1]} : vector<2x96xf32> to vector<2x32xf32>
    %358 = vector.extract_strided_slice %354 {offsets = [0, 32], sizes = [2, 32], strides = [1, 1]} : vector<2x96xf32> to vector<2x32xf32>
    %359 = vector.extract_strided_slice %354 {offsets = [0, 64], sizes = [2, 32], strides = [1, 1]} : vector<2x96xf32> to vector<2x32xf32>
    %360 = arith.mulf %358, %319 : vector<2x32xf32>
    %361 = arith.mulf %357, %356 : vector<2x32xf32>
    %362 = arith.addf %360, %361 : vector<2x32xf32>
    %363 = math.tanh %362 : vector<2x32xf32>
    %364 = arith.mulf %359, %363 : vector<2x32xf32>
    %365 = arith.subf %346, %307 : vector<2x32xf32>
    %366 = vector.broadcast %324 : vector<2x1xf32> to vector<2x32xf32>
    %367 = arith.mulf %366, %365 : vector<2x32xf32>
    %368 = arith.addf %307, %367 : vector<2x32xf32>
    %369 = arith.subf %344, %311 : vector<2x32xf32>
    %370 = vector.broadcast %324 : vector<2x1xf32> to vector<2x32xf32>
    %371 = arith.mulf %370, %369 : vector<2x32xf32>
    %372 = arith.addf %311, %371 : vector<2x32xf32>
    %373 = arith.subf %364, %315 : vector<2x32xf32>
    %374 = vector.broadcast %325 : vector<2x1xf32> to vector<2x32xf32>
    %375 = arith.mulf %374, %373 : vector<2x32xf32>
    %376 = arith.addf %315, %375 : vector<2x32xf32>
    %377 = arith.subf %362, %319 : vector<2x32xf32>
    %378 = vector.broadcast %325 : vector<2x1xf32> to vector<2x32xf32>
    %379 = arith.mulf %378, %377 : vector<2x32xf32>
    %380 = arith.addf %319, %379 : vector<2x32xf32>
    %c10 = arith.constant 10 : index
    %c0_43 = arith.constant 0 : index
    %381 = vector.load %arg9[%c10, %c0_43] : memref<32x64xf32, #tpu.memory_space<vmem>>, vector<2x32xf32>
    tpu.vector_store %arg9[%c10, %c0_43], %368 {strides = array<i32>} : memref<32x64xf32, #tpu.memory_space<vmem>>, vector<2x32xf32>,
    %c20 = arith.constant 20 : index
    %c32_44 = arith.constant 32 : index
    %382 = vector.load %arg9[%c20, %c32_44] : memref<32x64xf32, #tpu.memory_space<vmem>>, vector<2x32xf32>
    tpu.vector_store %arg9[%c20, %c32_44], %376 {strides = array<i32>} : memref<32x64xf32, #tpu.memory_space<vmem>>, vector<2x32xf32>,
    %383 = vector.extract_strided_slice %13 {offsets = [12, 0], sizes = [2, 128], strides = [1, 1]} : vector<32x256xf32> to vector<2x128xf32>
    %384 = vector.extract_strided_slice %13 {offsets = [18, 128], sizes = [2, 128], strides = [1, 1]} : vector<32x256xf32> to vector<2x128xf32>
    %385 = vector.extract_strided_slice %14 {offsets = [12, 0], sizes = [2, 1], strides = [1, 1]} : vector<32x1xf32> to vector<2x1xf32>
    %386 = vector.extract_strided_slice %14 {offsets = [18, 0], sizes = [2, 1], strides = [1, 1]} : vector<32x1xf32> to vector<2x1xf32>
    %387 = tpu.concatenate %368, %376 in 1 : vector<2x32xf32>, vector<2x32xf32> -> vector<2x64xf32>
    %388 = arith.truncf %387 : vector<2x64xf32> to vector<2x64xbf16>
    %cst_45 = arith.constant dense<0.000000e+00> : vector<2x256xf32>
    %389 = tpu.matmul %388, %15, %cst_45 {dimension_numbers = #tpu.dot_dimension_numbers<[1], [0], [0], [1], [0, 0, 1, 1], [], []>} : vector<2x64xbf16>, vector<64x256xbf16>, vector<2x256xf32> -> vector<2x256xf32>
    %390 = vector.extract_strided_slice %389 {offsets = [0, 0], sizes = [2, 128], strides = [1, 1]} : vector<2x256xf32> to vector<2x128xf32>
    %391 = arith.addf %390, %383 : vector<2x128xf32>
    %392 = vector.extract_strided_slice %391 {offsets = [0, 0], sizes = [2, 96], strides = [1, 1]} : vector<2x128xf32> to vector<2x96xf32>
    %393 = arith.negf %392 : vector<2x96xf32>
    %394 = math.exp %393 : vector<2x96xf32>
    %cst_46 = arith.constant 1.000000e+00 : f32
    %395 = vector.broadcast %cst_46 : f32 to vector<2x96xf32>
    %396 = arith.addf %395, %394 : vector<2x96xf32>
    %397 = arith.divf %395, %396 : vector<2x96xf32>
    %398 = vector.extract_strided_slice %391 {offsets = [0, 96], sizes = [2, 32], strides = [1, 1]} : vector<2x128xf32> to vector<2x32xf32>
    %399 = math.tanh %398 : vector<2x32xf32>
    %400 = vector.extract_strided_slice %397 {offsets = [0, 0], sizes = [2, 32], strides = [1, 1]} : vector<2x96xf32> to vector<2x32xf32>
    %401 = vector.extract_strided_slice %397 {offsets = [0, 32], sizes = [2, 32], strides = [1, 1]} : vector<2x96xf32> to vector<2x32xf32>
    %402 = vector.extract_strided_slice %397 {offsets = [0, 64], sizes = [2, 32], strides = [1, 1]} : vector<2x96xf32> to vector<2x32xf32>
    %403 = arith.mulf %401, %372 : vector<2x32xf32>
    %404 = arith.mulf %400, %399 : vector<2x32xf32>
    %405 = arith.addf %403, %404 : vector<2x32xf32>
    %406 = math.tanh %405 : vector<2x32xf32>
    %407 = arith.mulf %402, %406 : vector<2x32xf32>
    %408 = vector.extract_strided_slice %389 {offsets = [0, 128], sizes = [2, 128], strides = [1, 1]} : vector<2x256xf32> to vector<2x128xf32>
    %409 = arith.addf %408, %384 : vector<2x128xf32>
    %410 = vector.extract_strided_slice %409 {offsets = [0, 0], sizes = [2, 96], strides = [1, 1]} : vector<2x128xf32> to vector<2x96xf32>
    %411 = arith.negf %410 : vector<2x96xf32>
    %412 = math.exp %411 : vector<2x96xf32>
    %cst_47 = arith.constant 1.000000e+00 : f32
    %413 = vector.broadcast %cst_47 : f32 to vector<2x96xf32>
    %414 = arith.addf %413, %412 : vector<2x96xf32>
    %415 = arith.divf %413, %414 : vector<2x96xf32>
    %416 = vector.extract_strided_slice %409 {offsets = [0, 96], sizes = [2, 32], strides = [1, 1]} : vector<2x128xf32> to vector<2x32xf32>
    %417 = math.tanh %416 : vector<2x32xf32>
    %418 = vector.extract_strided_slice %415 {offsets = [0, 0], sizes = [2, 32], strides = [1, 1]} : vector<2x96xf32> to vector<2x32xf32>
    %419 = vector.extract_strided_slice %415 {offsets = [0, 32], sizes = [2, 32], strides = [1, 1]} : vector<2x96xf32> to vector<2x32xf32>
    %420 = vector.extract_strided_slice %415 {offsets = [0, 64], sizes = [2, 32], strides = [1, 1]} : vector<2x96xf32> to vector<2x32xf32>
    %421 = arith.mulf %419, %380 : vector<2x32xf32>
    %422 = arith.mulf %418, %417 : vector<2x32xf32>
    %423 = arith.addf %421, %422 : vector<2x32xf32>
    %424 = math.tanh %423 : vector<2x32xf32>
    %425 = arith.mulf %420, %424 : vector<2x32xf32>
    %426 = arith.subf %407, %368 : vector<2x32xf32>
    %427 = vector.broadcast %385 : vector<2x1xf32> to vector<2x32xf32>
    %428 = arith.mulf %427, %426 : vector<2x32xf32>
    %429 = arith.addf %368, %428 : vector<2x32xf32>
    %430 = arith.subf %405, %372 : vector<2x32xf32>
    %431 = vector.broadcast %385 : vector<2x1xf32> to vector<2x32xf32>
    %432 = arith.mulf %431, %430 : vector<2x32xf32>
    %433 = arith.addf %372, %432 : vector<2x32xf32>
    %434 = arith.subf %425, %376 : vector<2x32xf32>
    %435 = vector.broadcast %386 : vector<2x1xf32> to vector<2x32xf32>
    %436 = arith.mulf %435, %434 : vector<2x32xf32>
    %437 = arith.addf %376, %436 : vector<2x32xf32>
    %438 = arith.subf %423, %380 : vector<2x32xf32>
    %439 = vector.broadcast %386 : vector<2x1xf32> to vector<2x32xf32>
    %440 = arith.mulf %439, %438 : vector<2x32xf32>
    %441 = arith.addf %380, %440 : vector<2x32xf32>
    %c12 = arith.constant 12 : index
    %c0_48 = arith.constant 0 : index
    %442 = vector.load %arg9[%c12, %c0_48] : memref<32x64xf32, #tpu.memory_space<vmem>>, vector<2x32xf32>
    tpu.vector_store %arg9[%c12, %c0_48], %429 {strides = array<i32>} : memref<32x64xf32, #tpu.memory_space<vmem>>, vector<2x32xf32>,
    %c18 = arith.constant 18 : index
    %c32_49 = arith.constant 32 : index
    %443 = vector.load %arg9[%c18, %c32_49] : memref<32x64xf32, #tpu.memory_space<vmem>>, vector<2x32xf32>
    tpu.vector_store %arg9[%c18, %c32_49], %437 {strides = array<i32>} : memref<32x64xf32, #tpu.memory_space<vmem>>, vector<2x32xf32>,
    %444 = vector.extract_strided_slice %13 {offsets = [14, 0], sizes = [2, 128], strides = [1, 1]} : vector<32x256xf32> to vector<2x128xf32>
    %445 = vector.extract_strided_slice %13 {offsets = [16, 128], sizes = [2, 128], strides = [1, 1]} : vector<32x256xf32> to vector<2x128xf32>
    %446 = vector.extract_strided_slice %14 {offsets = [14, 0], sizes = [2, 1], strides = [1, 1]} : vector<32x1xf32> to vector<2x1xf32>
    %447 = vector.extract_strided_slice %14 {offsets = [16, 0], sizes = [2, 1], strides = [1, 1]} : vector<32x1xf32> to vector<2x1xf32>
    %448 = tpu.concatenate %429, %437 in 1 : vector<2x32xf32>, vector<2x32xf32> -> vector<2x64xf32>
    %449 = arith.truncf %448 : vector<2x64xf32> to vector<2x64xbf16>
    %cst_50 = arith.constant dense<0.000000e+00> : vector<2x256xf32>
    %450 = tpu.matmul %449, %15, %cst_50 {dimension_numbers = #tpu.dot_dimension_numbers<[1], [0], [0], [1], [0, 0, 1, 1], [], []>} : vector<2x64xbf16>, vector<64x256xbf16>, vector<2x256xf32> -> vector<2x256xf32>
    %451 = vector.extract_strided_slice %450 {offsets = [0, 0], sizes = [2, 128], strides = [1, 1]} : vector<2x256xf32> to vector<2x128xf32>
    %452 = arith.addf %451, %444 : vector<2x128xf32>
    %453 = vector.extract_strided_slice %452 {offsets = [0, 0], sizes = [2, 96], strides = [1, 1]} : vector<2x128xf32> to vector<2x96xf32>
    %454 = arith.negf %453 : vector<2x96xf32>
    %455 = math.exp %454 : vector<2x96xf32>
    %cst_51 = arith.constant 1.000000e+00 : f32
    %456 = vector.broadcast %cst_51 : f32 to vector<2x96xf32>
    %457 = arith.addf %456, %455 : vector<2x96xf32>
    %458 = arith.divf %456, %457 : vector<2x96xf32>
    %459 = vector.extract_strided_slice %452 {offsets = [0, 96], sizes = [2, 32], strides = [1, 1]} : vector<2x128xf32> to vector<2x32xf32>
    %460 = math.tanh %459 : vector<2x32xf32>
    %461 = vector.extract_strided_slice %458 {offsets = [0, 0], sizes = [2, 32], strides = [1, 1]} : vector<2x96xf32> to vector<2x32xf32>
    %462 = vector.extract_strided_slice %458 {offsets = [0, 32], sizes = [2, 32], strides = [1, 1]} : vector<2x96xf32> to vector<2x32xf32>
    %463 = vector.extract_strided_slice %458 {offsets = [0, 64], sizes = [2, 32], strides = [1, 1]} : vector<2x96xf32> to vector<2x32xf32>
    %464 = arith.mulf %462, %433 : vector<2x32xf32>
    %465 = arith.mulf %461, %460 : vector<2x32xf32>
    %466 = arith.addf %464, %465 : vector<2x32xf32>
    %467 = math.tanh %466 : vector<2x32xf32>
    %468 = arith.mulf %463, %467 : vector<2x32xf32>
    %469 = vector.extract_strided_slice %450 {offsets = [0, 128], sizes = [2, 128], strides = [1, 1]} : vector<2x256xf32> to vector<2x128xf32>
    %470 = arith.addf %469, %445 : vector<2x128xf32>
    %471 = vector.extract_strided_slice %470 {offsets = [0, 0], sizes = [2, 96], strides = [1, 1]} : vector<2x128xf32> to vector<2x96xf32>
    %472 = arith.negf %471 : vector<2x96xf32>
    %473 = math.exp %472 : vector<2x96xf32>
    %cst_52 = arith.constant 1.000000e+00 : f32
    %474 = vector.broadcast %cst_52 : f32 to vector<2x96xf32>
    %475 = arith.addf %474, %473 : vector<2x96xf32>
    %476 = arith.divf %474, %475 : vector<2x96xf32>
    %477 = vector.extract_strided_slice %470 {offsets = [0, 96], sizes = [2, 32], strides = [1, 1]} : vector<2x128xf32> to vector<2x32xf32>
    %478 = math.tanh %477 : vector<2x32xf32>
    %479 = vector.extract_strided_slice %476 {offsets = [0, 0], sizes = [2, 32], strides = [1, 1]} : vector<2x96xf32> to vector<2x32xf32>
    %480 = vector.extract_strided_slice %476 {offsets = [0, 32], sizes = [2, 32], strides = [1, 1]} : vector<2x96xf32> to vector<2x32xf32>
    %481 = vector.extract_strided_slice %476 {offsets = [0, 64], sizes = [2, 32], strides = [1, 1]} : vector<2x96xf32> to vector<2x32xf32>
    %482 = arith.mulf %480, %441 : vector<2x32xf32>
    %483 = arith.mulf %479, %478 : vector<2x32xf32>
    %484 = arith.addf %482, %483 : vector<2x32xf32>
    %485 = math.tanh %484 : vector<2x32xf32>
    %486 = arith.mulf %481, %485 : vector<2x32xf32>
    %487 = arith.subf %468, %429 : vector<2x32xf32>
    %488 = vector.broadcast %446 : vector<2x1xf32> to vector<2x32xf32>
    %489 = arith.mulf %488, %487 : vector<2x32xf32>
    %490 = arith.addf %429, %489 : vector<2x32xf32>
    %491 = arith.subf %466, %433 : vector<2x32xf32>
    %492 = vector.broadcast %446 : vector<2x1xf32> to vector<2x32xf32>
    %493 = arith.mulf %492, %491 : vector<2x32xf32>
    %494 = arith.addf %433, %493 : vector<2x32xf32>
    %495 = arith.subf %486, %437 : vector<2x32xf32>
    %496 = vector.broadcast %447 : vector<2x1xf32> to vector<2x32xf32>
    %497 = arith.mulf %496, %495 : vector<2x32xf32>
    %498 = arith.addf %437, %497 : vector<2x32xf32>
    %499 = arith.subf %484, %441 : vector<2x32xf32>
    %500 = vector.broadcast %447 : vector<2x1xf32> to vector<2x32xf32>
    %501 = arith.mulf %500, %499 : vector<2x32xf32>
    %502 = arith.addf %441, %501 : vector<2x32xf32>
    %c14 = arith.constant 14 : index
    %c0_53 = arith.constant 0 : index
    %503 = vector.load %arg9[%c14, %c0_53] : memref<32x64xf32, #tpu.memory_space<vmem>>, vector<2x32xf32>
    tpu.vector_store %arg9[%c14, %c0_53], %490 {strides = array<i32>} : memref<32x64xf32, #tpu.memory_space<vmem>>, vector<2x32xf32>,
    %c16 = arith.constant 16 : index
    %c32_54 = arith.constant 32 : index
    %504 = vector.load %arg9[%c16, %c32_54] : memref<32x64xf32, #tpu.memory_space<vmem>>, vector<2x32xf32>
    tpu.vector_store %arg9[%c16, %c32_54], %498 {strides = array<i32>} : memref<32x64xf32, #tpu.memory_space<vmem>>, vector<2x32xf32>,
    %505 = vector.extract_strided_slice %13 {offsets = [16, 0], sizes = [2, 128], strides = [1, 1]} : vector<32x256xf32> to vector<2x128xf32>
    %506 = vector.extract_strided_slice %13 {offsets = [14, 128], sizes = [2, 128], strides = [1, 1]} : vector<32x256xf32> to vector<2x128xf32>
    %507 = vector.extract_strided_slice %14 {offsets = [16, 0], sizes = [2, 1], strides = [1, 1]} : vector<32x1xf32> to vector<2x1xf32>
    %508 = vector.extract_strided_slice %14 {offsets = [14, 0], sizes = [2, 1], strides = [1, 1]} : vector<32x1xf32> to vector<2x1xf32>
    %509 = tpu.concatenate %490, %498 in 1 : vector<2x32xf32>, vector<2x32xf32> -> vector<2x64xf32>
    %510 = arith.truncf %509 : vector<2x64xf32> to vector<2x64xbf16>
    %cst_55 = arith.constant dense<0.000000e+00> : vector<2x256xf32>
    %511 = tpu.matmul %510, %15, %cst_55 {dimension_numbers = #tpu.dot_dimension_numbers<[1], [0], [0], [1], [0, 0, 1, 1], [], []>} : vector<2x64xbf16>, vector<64x256xbf16>, vector<2x256xf32> -> vector<2x256xf32>
    %512 = vector.extract_strided_slice %511 {offsets = [0, 0], sizes = [2, 128], strides = [1, 1]} : vector<2x256xf32> to vector<2x128xf32>
    %513 = arith.addf %512, %505 : vector<2x128xf32>
    %514 = vector.extract_strided_slice %513 {offsets = [0, 0], sizes = [2, 96], strides = [1, 1]} : vector<2x128xf32> to vector<2x96xf32>
    %515 = arith.negf %514 : vector<2x96xf32>
    %516 = math.exp %515 : vector<2x96xf32>
    %cst_56 = arith.constant 1.000000e+00 : f32
    %517 = vector.broadcast %cst_56 : f32 to vector<2x96xf32>
    %518 = arith.addf %517, %516 : vector<2x96xf32>
    %519 = arith.divf %517, %518 : vector<2x96xf32>
    %520 = vector.extract_strided_slice %513 {offsets = [0, 96], sizes = [2, 32], strides = [1, 1]} : vector<2x128xf32> to vector<2x32xf32>
    %521 = math.tanh %520 : vector<2x32xf32>
    %522 = vector.extract_strided_slice %519 {offsets = [0, 0], sizes = [2, 32], strides = [1, 1]} : vector<2x96xf32> to vector<2x32xf32>
    %523 = vector.extract_strided_slice %519 {offsets = [0, 32], sizes = [2, 32], strides = [1, 1]} : vector<2x96xf32> to vector<2x32xf32>
    %524 = vector.extract_strided_slice %519 {offsets = [0, 64], sizes = [2, 32], strides = [1, 1]} : vector<2x96xf32> to vector<2x32xf32>
    %525 = arith.mulf %523, %494 : vector<2x32xf32>
    %526 = arith.mulf %522, %521 : vector<2x32xf32>
    %527 = arith.addf %525, %526 : vector<2x32xf32>
    %528 = math.tanh %527 : vector<2x32xf32>
    %529 = arith.mulf %524, %528 : vector<2x32xf32>
    %530 = vector.extract_strided_slice %511 {offsets = [0, 128], sizes = [2, 128], strides = [1, 1]} : vector<2x256xf32> to vector<2x128xf32>
    %531 = arith.addf %530, %506 : vector<2x128xf32>
    %532 = vector.extract_strided_slice %531 {offsets = [0, 0], sizes = [2, 96], strides = [1, 1]} : vector<2x128xf32> to vector<2x96xf32>
    %533 = arith.negf %532 : vector<2x96xf32>
    %534 = math.exp %533 : vector<2x96xf32>
    %cst_57 = arith.constant 1.000000e+00 : f32
    %535 = vector.broadcast %cst_57 : f32 to vector<2x96xf32>
    %536 = arith.addf %535, %534 : vector<2x96xf32>
    %537 = arith.divf %535, %536 : vector<2x96xf32>
    %538 = vector.extract_strided_slice %531 {offsets = [0, 96], sizes = [2, 32], strides = [1, 1]} : vector<2x128xf32> to vector<2x32xf32>
    %539 = math.tanh %538 : vector<2x32xf32>
    %540 = vector.extract_strided_slice %537 {offsets = [0, 0], sizes = [2, 32], strides = [1, 1]} : vector<2x96xf32> to vector<2x32xf32>
    %541 = vector.extract_strided_slice %537 {offsets = [0, 32], sizes = [2, 32], strides = [1, 1]} : vector<2x96xf32> to vector<2x32xf32>
    %542 = vector.extract_strided_slice %537 {offsets = [0, 64], sizes = [2, 32], strides = [1, 1]} : vector<2x96xf32> to vector<2x32xf32>
    %543 = arith.mulf %541, %502 : vector<2x32xf32>
    %544 = arith.mulf %540, %539 : vector<2x32xf32>
    %545 = arith.addf %543, %544 : vector<2x32xf32>
    %546 = math.tanh %545 : vector<2x32xf32>
    %547 = arith.mulf %542, %546 : vector<2x32xf32>
    %548 = arith.subf %529, %490 : vector<2x32xf32>
    %549 = vector.broadcast %507 : vector<2x1xf32> to vector<2x32xf32>
    %550 = arith.mulf %549, %548 : vector<2x32xf32>
    %551 = arith.addf %490, %550 : vector<2x32xf32>
    %552 = arith.subf %527, %494 : vector<2x32xf32>
    %553 = vector.broadcast %507 : vector<2x1xf32> to vector<2x32xf32>
    %554 = arith.mulf %553, %552 : vector<2x32xf32>
    %555 = arith.addf %494, %554 : vector<2x32xf32>
    %556 = arith.subf %547, %498 : vector<2x32xf32>
    %557 = vector.broadcast %508 : vector<2x1xf32> to vector<2x32xf32>
    %558 = arith.mulf %557, %556 : vector<2x32xf32>
    %559 = arith.addf %498, %558 : vector<2x32xf32>
    %560 = arith.subf %545, %502 : vector<2x32xf32>
    %561 = vector.broadcast %508 : vector<2x1xf32> to vector<2x32xf32>
    %562 = arith.mulf %561, %560 : vector<2x32xf32>
    %563 = arith.addf %502, %562 : vector<2x32xf32>
    %c16_58 = arith.constant 16 : index
    %c0_59 = arith.constant 0 : index
    %564 = vector.load %arg9[%c16_58, %c0_59] : memref<32x64xf32, #tpu.memory_space<vmem>>, vector<2x32xf32>
    tpu.vector_store %arg9[%c16_58, %c0_59], %551 {strides = array<i32>} : memref<32x64xf32, #tpu.memory_space<vmem>>, vector<2x32xf32>,
    %c14_60 = arith.constant 14 : index
    %c32_61 = arith.constant 32 : index
    %565 = vector.load %arg9[%c14_60, %c32_61] : memref<32x64xf32, #tpu.memory_space<vmem>>, vector<2x32xf32>
    tpu.vector_store %arg9[%c14_60, %c32_61], %559 {strides = array<i32>} : memref<32x64xf32, #tpu.memory_space<vmem>>, vector<2x32xf32>,
    %566 = vector.extract_strided_slice %13 {offsets = [18, 0], sizes = [2, 128], strides = [1, 1]} : vector<32x256xf32> to vector<2x128xf32>
    %567 = vector.extract_strided_slice %13 {offsets = [12, 128], sizes = [2, 128], strides = [1, 1]} : vector<32x256xf32> to vector<2x128xf32>
    %568 = vector.extract_strided_slice %14 {offsets = [18, 0], sizes = [2, 1], strides = [1, 1]} : vector<32x1xf32> to vector<2x1xf32>
    %569 = vector.extract_strided_slice %14 {offsets = [12, 0], sizes = [2, 1], strides = [1, 1]} : vector<32x1xf32> to vector<2x1xf32>
    %570 = tpu.concatenate %551, %559 in 1 : vector<2x32xf32>, vector<2x32xf32> -> vector<2x64xf32>
    %571 = arith.truncf %570 : vector<2x64xf32> to vector<2x64xbf16>
    %cst_62 = arith.constant dense<0.000000e+00> : vector<2x256xf32>
    %572 = tpu.matmul %571, %15, %cst_62 {dimension_numbers = #tpu.dot_dimension_numbers<[1], [0], [0], [1], [0, 0, 1, 1], [], []>} : vector<2x64xbf16>, vector<64x256xbf16>, vector<2x256xf32> -> vector<2x256xf32>
    %573 = vector.extract_strided_slice %572 {offsets = [0, 0], sizes = [2, 128], strides = [1, 1]} : vector<2x256xf32> to vector<2x128xf32>
    %574 = arith.addf %573, %566 : vector<2x128xf32>
    %575 = vector.extract_strided_slice %574 {offsets = [0, 0], sizes = [2, 96], strides = [1, 1]} : vector<2x128xf32> to vector<2x96xf32>
    %576 = arith.negf %575 : vector<2x96xf32>
    %577 = math.exp %576 : vector<2x96xf32>
    %cst_63 = arith.constant 1.000000e+00 : f32
    %578 = vector.broadcast %cst_63 : f32 to vector<2x96xf32>
    %579 = arith.addf %578, %577 : vector<2x96xf32>
    %580 = arith.divf %578, %579 : vector<2x96xf32>
    %581 = vector.extract_strided_slice %574 {offsets = [0, 96], sizes = [2, 32], strides = [1, 1]} : vector<2x128xf32> to vector<2x32xf32>
    %582 = math.tanh %581 : vector<2x32xf32>
    %583 = vector.extract_strided_slice %580 {offsets = [0, 0], sizes = [2, 32], strides = [1, 1]} : vector<2x96xf32> to vector<2x32xf32>
    %584 = vector.extract_strided_slice %580 {offsets = [0, 32], sizes = [2, 32], strides = [1, 1]} : vector<2x96xf32> to vector<2x32xf32>
    %585 = vector.extract_strided_slice %580 {offsets = [0, 64], sizes = [2, 32], strides = [1, 1]} : vector<2x96xf32> to vector<2x32xf32>
    %586 = arith.mulf %584, %555 : vector<2x32xf32>
    %587 = arith.mulf %583, %582 : vector<2x32xf32>
    %588 = arith.addf %586, %587 : vector<2x32xf32>
    %589 = math.tanh %588 : vector<2x32xf32>
    %590 = arith.mulf %585, %589 : vector<2x32xf32>
    %591 = vector.extract_strided_slice %572 {offsets = [0, 128], sizes = [2, 128], strides = [1, 1]} : vector<2x256xf32> to vector<2x128xf32>
    %592 = arith.addf %591, %567 : vector<2x128xf32>
    %593 = vector.extract_strided_slice %592 {offsets = [0, 0], sizes = [2, 96], strides = [1, 1]} : vector<2x128xf32> to vector<2x96xf32>
    %594 = arith.negf %593 : vector<2x96xf32>
    %595 = math.exp %594 : vector<2x96xf32>
    %cst_64 = arith.constant 1.000000e+00 : f32
    %596 = vector.broadcast %cst_64 : f32 to vector<2x96xf32>
    %597 = arith.addf %596, %595 : vector<2x96xf32>
    %598 = arith.divf %596, %597 : vector<2x96xf32>
    %599 = vector.extract_strided_slice %592 {offsets = [0, 96], sizes = [2, 32], strides = [1, 1]} : vector<2x128xf32> to vector<2x32xf32>
    %600 = math.tanh %599 : vector<2x32xf32>
    %601 = vector.extract_strided_slice %598 {offsets = [0, 0], sizes = [2, 32], strides = [1, 1]} : vector<2x96xf32> to vector<2x32xf32>
    %602 = vector.extract_strided_slice %598 {offsets = [0, 32], sizes = [2, 32], strides = [1, 1]} : vector<2x96xf32> to vector<2x32xf32>
    %603 = vector.extract_strided_slice %598 {offsets = [0, 64], sizes = [2, 32], strides = [1, 1]} : vector<2x96xf32> to vector<2x32xf32>
    %604 = arith.mulf %602, %563 : vector<2x32xf32>
    %605 = arith.mulf %601, %600 : vector<2x32xf32>
    %606 = arith.addf %604, %605 : vector<2x32xf32>
    %607 = math.tanh %606 : vector<2x32xf32>
    %608 = arith.mulf %603, %607 : vector<2x32xf32>
    %609 = arith.subf %590, %551 : vector<2x32xf32>
    %610 = vector.broadcast %568 : vector<2x1xf32> to vector<2x32xf32>
    %611 = arith.mulf %610, %609 : vector<2x32xf32>
    %612 = arith.addf %551, %611 : vector<2x32xf32>
    %613 = arith.subf %588, %555 : vector<2x32xf32>
    %614 = vector.broadcast %568 : vector<2x1xf32> to vector<2x32xf32>
    %615 = arith.mulf %614, %613 : vector<2x32xf32>
    %616 = arith.addf %555, %615 : vector<2x32xf32>
    %617 = arith.subf %608, %559 : vector<2x32xf32>
    %618 = vector.broadcast %569 : vector<2x1xf32> to vector<2x32xf32>
    %619 = arith.mulf %618, %617 : vector<2x32xf32>
    %620 = arith.addf %559, %619 : vector<2x32xf32>
    %621 = arith.subf %606, %563 : vector<2x32xf32>
    %622 = vector.broadcast %569 : vector<2x1xf32> to vector<2x32xf32>
    %623 = arith.mulf %622, %621 : vector<2x32xf32>
    %624 = arith.addf %563, %623 : vector<2x32xf32>
    %c18_65 = arith.constant 18 : index
    %c0_66 = arith.constant 0 : index
    %625 = vector.load %arg9[%c18_65, %c0_66] : memref<32x64xf32, #tpu.memory_space<vmem>>, vector<2x32xf32>
    tpu.vector_store %arg9[%c18_65, %c0_66], %612 {strides = array<i32>} : memref<32x64xf32, #tpu.memory_space<vmem>>, vector<2x32xf32>,
    %c12_67 = arith.constant 12 : index
    %c32_68 = arith.constant 32 : index
    %626 = vector.load %arg9[%c12_67, %c32_68] : memref<32x64xf32, #tpu.memory_space<vmem>>, vector<2x32xf32>
    tpu.vector_store %arg9[%c12_67, %c32_68], %620 {strides = array<i32>} : memref<32x64xf32, #tpu.memory_space<vmem>>, vector<2x32xf32>,
    %627 = vector.extract_strided_slice %13 {offsets = [20, 0], sizes = [2, 128], strides = [1, 1]} : vector<32x256xf32> to vector<2x128xf32>
    %628 = vector.extract_strided_slice %13 {offsets = [10, 128], sizes = [2, 128], strides = [1, 1]} : vector<32x256xf32> to vector<2x128xf32>
    %629 = vector.extract_strided_slice %14 {offsets = [20, 0], sizes = [2, 1], strides = [1, 1]} : vector<32x1xf32> to vector<2x1xf32>
    %630 = vector.extract_strided_slice %14 {offsets = [10, 0], sizes = [2, 1], strides = [1, 1]} : vector<32x1xf32> to vector<2x1xf32>
    %631 = tpu.concatenate %612, %620 in 1 : vector<2x32xf32>, vector<2x32xf32> -> vector<2x64xf32>
    %632 = arith.truncf %631 : vector<2x64xf32> to vector<2x64xbf16>
    %cst_69 = arith.constant dense<0.000000e+00> : vector<2x256xf32>
    %633 = tpu.matmul %632, %15, %cst_69 {dimension_numbers = #tpu.dot_dimension_numbers<[1], [0], [0], [1], [0, 0, 1, 1], [], []>} : vector<2x64xbf16>, vector<64x256xbf16>, vector<2x256xf32> -> vector<2x256xf32>
    %634 = vector.extract_strided_slice %633 {offsets = [0, 0], sizes = [2, 128], strides = [1, 1]} : vector<2x256xf32> to vector<2x128xf32>
    %635 = arith.addf %634, %627 : vector<2x128xf32>
    %636 = vector.extract_strided_slice %635 {offsets = [0, 0], sizes = [2, 96], strides = [1, 1]} : vector<2x128xf32> to vector<2x96xf32>
    %637 = arith.negf %636 : vector<2x96xf32>
    %638 = math.exp %637 : vector<2x96xf32>
    %cst_70 = arith.constant 1.000000e+00 : f32
    %639 = vector.broadcast %cst_70 : f32 to vector<2x96xf32>
    %640 = arith.addf %639, %638 : vector<2x96xf32>
    %641 = arith.divf %639, %640 : vector<2x96xf32>
    %642 = vector.extract_strided_slice %635 {offsets = [0, 96], sizes = [2, 32], strides = [1, 1]} : vector<2x128xf32> to vector<2x32xf32>
    %643 = math.tanh %642 : vector<2x32xf32>
    %644 = vector.extract_strided_slice %641 {offsets = [0, 0], sizes = [2, 32], strides = [1, 1]} : vector<2x96xf32> to vector<2x32xf32>
    %645 = vector.extract_strided_slice %641 {offsets = [0, 32], sizes = [2, 32], strides = [1, 1]} : vector<2x96xf32> to vector<2x32xf32>
    %646 = vector.extract_strided_slice %641 {offsets = [0, 64], sizes = [2, 32], strides = [1, 1]} : vector<2x96xf32> to vector<2x32xf32>
    %647 = arith.mulf %645, %616 : vector<2x32xf32>
    %648 = arith.mulf %644, %643 : vector<2x32xf32>
    %649 = arith.addf %647, %648 : vector<2x32xf32>
    %650 = math.tanh %649 : vector<2x32xf32>
    %651 = arith.mulf %646, %650 : vector<2x32xf32>
    %652 = vector.extract_strided_slice %633 {offsets = [0, 128], sizes = [2, 128], strides = [1, 1]} : vector<2x256xf32> to vector<2x128xf32>
    %653 = arith.addf %652, %628 : vector<2x128xf32>
    %654 = vector.extract_strided_slice %653 {offsets = [0, 0], sizes = [2, 96], strides = [1, 1]} : vector<2x128xf32> to vector<2x96xf32>
    %655 = arith.negf %654 : vector<2x96xf32>
    %656 = math.exp %655 : vector<2x96xf32>
    %cst_71 = arith.constant 1.000000e+00 : f32
    %657 = vector.broadcast %cst_71 : f32 to vector<2x96xf32>
    %658 = arith.addf %657, %656 : vector<2x96xf32>
    %659 = arith.divf %657, %658 : vector<2x96xf32>
    %660 = vector.extract_strided_slice %653 {offsets = [0, 96], sizes = [2, 32], strides = [1, 1]} : vector<2x128xf32> to vector<2x32xf32>
    %661 = math.tanh %660 : vector<2x32xf32>
    %662 = vector.extract_strided_slice %659 {offsets = [0, 0], sizes = [2, 32], strides = [1, 1]} : vector<2x96xf32> to vector<2x32xf32>
    %663 = vector.extract_strided_slice %659 {offsets = [0, 32], sizes = [2, 32], strides = [1, 1]} : vector<2x96xf32> to vector<2x32xf32>
    %664 = vector.extract_strided_slice %659 {offsets = [0, 64], sizes = [2, 32], strides = [1, 1]} : vector<2x96xf32> to vector<2x32xf32>
    %665 = arith.mulf %663, %624 : vector<2x32xf32>
    %666 = arith.mulf %662, %661 : vector<2x32xf32>
    %667 = arith.addf %665, %666 : vector<2x32xf32>
    %668 = math.tanh %667 : vector<2x32xf32>
    %669 = arith.mulf %664, %668 : vector<2x32xf32>
    %670 = arith.subf %651, %612 : vector<2x32xf32>
    %671 = vector.broadcast %629 : vector<2x1xf32> to vector<2x32xf32>
    %672 = arith.mulf %671, %670 : vector<2x32xf32>
    %673 = arith.addf %612, %672 : vector<2x32xf32>
    %674 = arith.subf %649, %616 : vector<2x32xf32>
    %675 = vector.broadcast %629 : vector<2x1xf32> to vector<2x32xf32>
    %676 = arith.mulf %675, %674 : vector<2x32xf32>
    %677 = arith.addf %616, %676 : vector<2x32xf32>
    %678 = arith.subf %669, %620 : vector<2x32xf32>
    %679 = vector.broadcast %630 : vector<2x1xf32> to vector<2x32xf32>
    %680 = arith.mulf %679, %678 : vector<2x32xf32>
    %681 = arith.addf %620, %680 : vector<2x32xf32>
    %682 = arith.subf %667, %624 : vector<2x32xf32>
    %683 = vector.broadcast %630 : vector<2x1xf32> to vector<2x32xf32>
    %684 = arith.mulf %683, %682 : vector<2x32xf32>
    %685 = arith.addf %624, %684 : vector<2x32xf32>
    %c20_72 = arith.constant 20 : index
    %c0_73 = arith.constant 0 : index
    %686 = vector.load %arg9[%c20_72, %c0_73] : memref<32x64xf32, #tpu.memory_space<vmem>>, vector<2x32xf32>
    tpu.vector_store %arg9[%c20_72, %c0_73], %673 {strides = array<i32>} : memref<32x64xf32, #tpu.memory_space<vmem>>, vector<2x32xf32>,
    %c10_74 = arith.constant 10 : index
    %c32_75 = arith.constant 32 : index
    %687 = vector.load %arg9[%c10_74, %c32_75] : memref<32x64xf32, #tpu.memory_space<vmem>>, vector<2x32xf32>
    tpu.vector_store %arg9[%c10_74, %c32_75], %681 {strides = array<i32>} : memref<32x64xf32, #tpu.memory_space<vmem>>, vector<2x32xf32>,
    %688 = vector.extract_strided_slice %13 {offsets = [22, 0], sizes = [2, 128], strides = [1, 1]} : vector<32x256xf32> to vector<2x128xf32>
    %689 = vector.extract_strided_slice %13 {offsets = [8, 128], sizes = [2, 128], strides = [1, 1]} : vector<32x256xf32> to vector<2x128xf32>
    %690 = vector.extract_strided_slice %14 {offsets = [22, 0], sizes = [2, 1], strides = [1, 1]} : vector<32x1xf32> to vector<2x1xf32>
    %691 = vector.extract_strided_slice %14 {offsets = [8, 0], sizes = [2, 1], strides = [1, 1]} : vector<32x1xf32> to vector<2x1xf32>
    %692 = tpu.concatenate %673, %681 in 1 : vector<2x32xf32>, vector<2x32xf32> -> vector<2x64xf32>
    %693 = arith.truncf %692 : vector<2x64xf32> to vector<2x64xbf16>
    %cst_76 = arith.constant dense<0.000000e+00> : vector<2x256xf32>
    %694 = tpu.matmul %693, %15, %cst_76 {dimension_numbers = #tpu.dot_dimension_numbers<[1], [0], [0], [1], [0, 0, 1, 1], [], []>} : vector<2x64xbf16>, vector<64x256xbf16>, vector<2x256xf32> -> vector<2x256xf32>
    %695 = vector.extract_strided_slice %694 {offsets = [0, 0], sizes = [2, 128], strides = [1, 1]} : vector<2x256xf32> to vector<2x128xf32>
    %696 = arith.addf %695, %688 : vector<2x128xf32>
    %697 = vector.extract_strided_slice %696 {offsets = [0, 0], sizes = [2, 96], strides = [1, 1]} : vector<2x128xf32> to vector<2x96xf32>
    %698 = arith.negf %697 : vector<2x96xf32>
    %699 = math.exp %698 : vector<2x96xf32>
    %cst_77 = arith.constant 1.000000e+00 : f32
    %700 = vector.broadcast %cst_77 : f32 to vector<2x96xf32>
    %701 = arith.addf %700, %699 : vector<2x96xf32>
    %702 = arith.divf %700, %701 : vector<2x96xf32>
    %703 = vector.extract_strided_slice %696 {offsets = [0, 96], sizes = [2, 32], strides = [1, 1]} : vector<2x128xf32> to vector<2x32xf32>
    %704 = math.tanh %703 : vector<2x32xf32>
    %705 = vector.extract_strided_slice %702 {offsets = [0, 0], sizes = [2, 32], strides = [1, 1]} : vector<2x96xf32> to vector<2x32xf32>
    %706 = vector.extract_strided_slice %702 {offsets = [0, 32], sizes = [2, 32], strides = [1, 1]} : vector<2x96xf32> to vector<2x32xf32>
    %707 = vector.extract_strided_slice %702 {offsets = [0, 64], sizes = [2, 32], strides = [1, 1]} : vector<2x96xf32> to vector<2x32xf32>
    %708 = arith.mulf %706, %677 : vector<2x32xf32>
    %709 = arith.mulf %705, %704 : vector<2x32xf32>
    %710 = arith.addf %708, %709 : vector<2x32xf32>
    %711 = math.tanh %710 : vector<2x32xf32>
    %712 = arith.mulf %707, %711 : vector<2x32xf32>
    %713 = vector.extract_strided_slice %694 {offsets = [0, 128], sizes = [2, 128], strides = [1, 1]} : vector<2x256xf32> to vector<2x128xf32>
    %714 = arith.addf %713, %689 : vector<2x128xf32>
    %715 = vector.extract_strided_slice %714 {offsets = [0, 0], sizes = [2, 96], strides = [1, 1]} : vector<2x128xf32> to vector<2x96xf32>
    %716 = arith.negf %715 : vector<2x96xf32>
    %717 = math.exp %716 : vector<2x96xf32>
    %cst_78 = arith.constant 1.000000e+00 : f32
    %718 = vector.broadcast %cst_78 : f32 to vector<2x96xf32>
    %719 = arith.addf %718, %717 : vector<2x96xf32>
    %720 = arith.divf %718, %719 : vector<2x96xf32>
    %721 = vector.extract_strided_slice %714 {offsets = [0, 96], sizes = [2, 32], strides = [1, 1]} : vector<2x128xf32> to vector<2x32xf32>
    %722 = math.tanh %721 : vector<2x32xf32>
    %723 = vector.extract_strided_slice %720 {offsets = [0, 0], sizes = [2, 32], strides = [1, 1]} : vector<2x96xf32> to vector<2x32xf32>
    %724 = vector.extract_strided_slice %720 {offsets = [0, 32], sizes = [2, 32], strides = [1, 1]} : vector<2x96xf32> to vector<2x32xf32>
    %725 = vector.extract_strided_slice %720 {offsets = [0, 64], sizes = [2, 32], strides = [1, 1]} : vector<2x96xf32> to vector<2x32xf32>
    %726 = arith.mulf %724, %685 : vector<2x32xf32>
    %727 = arith.mulf %723, %722 : vector<2x32xf32>
    %728 = arith.addf %726, %727 : vector<2x32xf32>
    %729 = math.tanh %728 : vector<2x32xf32>
    %730 = arith.mulf %725, %729 : vector<2x32xf32>
    %731 = arith.subf %712, %673 : vector<2x32xf32>
    %732 = vector.broadcast %690 : vector<2x1xf32> to vector<2x32xf32>
    %733 = arith.mulf %732, %731 : vector<2x32xf32>
    %734 = arith.addf %673, %733 : vector<2x32xf32>
    %735 = arith.subf %710, %677 : vector<2x32xf32>
    %736 = vector.broadcast %690 : vector<2x1xf32> to vector<2x32xf32>
    %737 = arith.mulf %736, %735 : vector<2x32xf32>
    %738 = arith.addf %677, %737 : vector<2x32xf32>
    %739 = arith.subf %730, %681 : vector<2x32xf32>
    %740 = vector.broadcast %691 : vector<2x1xf32> to vector<2x32xf32>
    %741 = arith.mulf %740, %739 : vector<2x32xf32>
    %742 = arith.addf %681, %741 : vector<2x32xf32>
    %743 = arith.subf %728, %685 : vector<2x32xf32>
    %744 = vector.broadcast %691 : vector<2x1xf32> to vector<2x32xf32>
    %745 = arith.mulf %744, %743 : vector<2x32xf32>
    %746 = arith.addf %685, %745 : vector<2x32xf32>
    %c22_79 = arith.constant 22 : index
    %c0_80 = arith.constant 0 : index
    %747 = vector.load %arg9[%c22_79, %c0_80] : memref<32x64xf32, #tpu.memory_space<vmem>>, vector<2x32xf32>
    tpu.vector_store %arg9[%c22_79, %c0_80], %734 {strides = array<i32>} : memref<32x64xf32, #tpu.memory_space<vmem>>, vector<2x32xf32>,
    %c8_81 = arith.constant 8 : index
    %c32_82 = arith.constant 32 : index
    %748 = vector.load %arg9[%c8_81, %c32_82] : memref<32x64xf32, #tpu.memory_space<vmem>>, vector<2x32xf32>
    tpu.vector_store %arg9[%c8_81, %c32_82], %742 {strides = array<i32>} : memref<32x64xf32, #tpu.memory_space<vmem>>, vector<2x32xf32>,
    %749 = vector.extract_strided_slice %13 {offsets = [24, 0], sizes = [2, 128], strides = [1, 1]} : vector<32x256xf32> to vector<2x128xf32>
    %750 = vector.extract_strided_slice %13 {offsets = [6, 128], sizes = [2, 128], strides = [1, 1]} : vector<32x256xf32> to vector<2x128xf32>
    %751 = vector.extract_strided_slice %14 {offsets = [24, 0], sizes = [2, 1], strides = [1, 1]} : vector<32x1xf32> to vector<2x1xf32>
    %752 = vector.extract_strided_slice %14 {offsets = [6, 0], sizes = [2, 1], strides = [1, 1]} : vector<32x1xf32> to vector<2x1xf32>
    %753 = tpu.concatenate %734, %742 in 1 : vector<2x32xf32>, vector<2x32xf32> -> vector<2x64xf32>
    %754 = arith.truncf %753 : vector<2x64xf32> to vector<2x64xbf16>
    %cst_83 = arith.constant dense<0.000000e+00> : vector<2x256xf32>
    %755 = tpu.matmul %754, %15, %cst_83 {dimension_numbers = #tpu.dot_dimension_numbers<[1], [0], [0], [1], [0, 0, 1, 1], [], []>} : vector<2x64xbf16>, vector<64x256xbf16>, vector<2x256xf32> -> vector<2x256xf32>
    %756 = vector.extract_strided_slice %755 {offsets = [0, 0], sizes = [2, 128], strides = [1, 1]} : vector<2x256xf32> to vector<2x128xf32>
    %757 = arith.addf %756, %749 : vector<2x128xf32>
    %758 = vector.extract_strided_slice %757 {offsets = [0, 0], sizes = [2, 96], strides = [1, 1]} : vector<2x128xf32> to vector<2x96xf32>
    %759 = arith.negf %758 : vector<2x96xf32>
    %760 = math.exp %759 : vector<2x96xf32>
    %cst_84 = arith.constant 1.000000e+00 : f32
    %761 = vector.broadcast %cst_84 : f32 to vector<2x96xf32>
    %762 = arith.addf %761, %760 : vector<2x96xf32>
    %763 = arith.divf %761, %762 : vector<2x96xf32>
    %764 = vector.extract_strided_slice %757 {offsets = [0, 96], sizes = [2, 32], strides = [1, 1]} : vector<2x128xf32> to vector<2x32xf32>
    %765 = math.tanh %764 : vector<2x32xf32>
    %766 = vector.extract_strided_slice %763 {offsets = [0, 0], sizes = [2, 32], strides = [1, 1]} : vector<2x96xf32> to vector<2x32xf32>
    %767 = vector.extract_strided_slice %763 {offsets = [0, 32], sizes = [2, 32], strides = [1, 1]} : vector<2x96xf32> to vector<2x32xf32>
    %768 = vector.extract_strided_slice %763 {offsets = [0, 64], sizes = [2, 32], strides = [1, 1]} : vector<2x96xf32> to vector<2x32xf32>
    %769 = arith.mulf %767, %738 : vector<2x32xf32>
    %770 = arith.mulf %766, %765 : vector<2x32xf32>
    %771 = arith.addf %769, %770 : vector<2x32xf32>
    %772 = math.tanh %771 : vector<2x32xf32>
    %773 = arith.mulf %768, %772 : vector<2x32xf32>
    %774 = vector.extract_strided_slice %755 {offsets = [0, 128], sizes = [2, 128], strides = [1, 1]} : vector<2x256xf32> to vector<2x128xf32>
    %775 = arith.addf %774, %750 : vector<2x128xf32>
    %776 = vector.extract_strided_slice %775 {offsets = [0, 0], sizes = [2, 96], strides = [1, 1]} : vector<2x128xf32> to vector<2x96xf32>
    %777 = arith.negf %776 : vector<2x96xf32>
    %778 = math.exp %777 : vector<2x96xf32>
    %cst_85 = arith.constant 1.000000e+00 : f32
    %779 = vector.broadcast %cst_85 : f32 to vector<2x96xf32>
    %780 = arith.addf %779, %778 : vector<2x96xf32>
    %781 = arith.divf %779, %780 : vector<2x96xf32>
    %782 = vector.extract_strided_slice %775 {offsets = [0, 96], sizes = [2, 32], strides = [1, 1]} : vector<2x128xf32> to vector<2x32xf32>
    %783 = math.tanh %782 : vector<2x32xf32>
    %784 = vector.extract_strided_slice %781 {offsets = [0, 0], sizes = [2, 32], strides = [1, 1]} : vector<2x96xf32> to vector<2x32xf32>
    %785 = vector.extract_strided_slice %781 {offsets = [0, 32], sizes = [2, 32], strides = [1, 1]} : vector<2x96xf32> to vector<2x32xf32>
    %786 = vector.extract_strided_slice %781 {offsets = [0, 64], sizes = [2, 32], strides = [1, 1]} : vector<2x96xf32> to vector<2x32xf32>
    %787 = arith.mulf %785, %746 : vector<2x32xf32>
    %788 = arith.mulf %784, %783 : vector<2x32xf32>
    %789 = arith.addf %787, %788 : vector<2x32xf32>
    %790 = math.tanh %789 : vector<2x32xf32>
    %791 = arith.mulf %786, %790 : vector<2x32xf32>
    %792 = arith.subf %773, %734 : vector<2x32xf32>
    %793 = vector.broadcast %751 : vector<2x1xf32> to vector<2x32xf32>
    %794 = arith.mulf %793, %792 : vector<2x32xf32>
    %795 = arith.addf %734, %794 : vector<2x32xf32>
    %796 = arith.subf %771, %738 : vector<2x32xf32>
    %797 = vector.broadcast %751 : vector<2x1xf32> to vector<2x32xf32>
    %798 = arith.mulf %797, %796 : vector<2x32xf32>
    %799 = arith.addf %738, %798 : vector<2x32xf32>
    %800 = arith.subf %791, %742 : vector<2x32xf32>
    %801 = vector.broadcast %752 : vector<2x1xf32> to vector<2x32xf32>
    %802 = arith.mulf %801, %800 : vector<2x32xf32>
    %803 = arith.addf %742, %802 : vector<2x32xf32>
    %804 = arith.subf %789, %746 : vector<2x32xf32>
    %805 = vector.broadcast %752 : vector<2x1xf32> to vector<2x32xf32>
    %806 = arith.mulf %805, %804 : vector<2x32xf32>
    %807 = arith.addf %746, %806 : vector<2x32xf32>
    %c24_86 = arith.constant 24 : index
    %c0_87 = arith.constant 0 : index
    %808 = vector.load %arg9[%c24_86, %c0_87] : memref<32x64xf32, #tpu.memory_space<vmem>>, vector<2x32xf32>
    tpu.vector_store %arg9[%c24_86, %c0_87], %795 {strides = array<i32>} : memref<32x64xf32, #tpu.memory_space<vmem>>, vector<2x32xf32>,
    %c6_88 = arith.constant 6 : index
    %c32_89 = arith.constant 32 : index
    %809 = vector.load %arg9[%c6_88, %c32_89] : memref<32x64xf32, #tpu.memory_space<vmem>>, vector<2x32xf32>
    tpu.vector_store %arg9[%c6_88, %c32_89], %803 {strides = array<i32>} : memref<32x64xf32, #tpu.memory_space<vmem>>, vector<2x32xf32>,
    %810 = vector.extract_strided_slice %13 {offsets = [26, 0], sizes = [2, 128], strides = [1, 1]} : vector<32x256xf32> to vector<2x128xf32>
    %811 = vector.extract_strided_slice %13 {offsets = [4, 128], sizes = [2, 128], strides = [1, 1]} : vector<32x256xf32> to vector<2x128xf32>
    %812 = vector.extract_strided_slice %14 {offsets = [26, 0], sizes = [2, 1], strides = [1, 1]} : vector<32x1xf32> to vector<2x1xf32>
    %813 = vector.extract_strided_slice %14 {offsets = [4, 0], sizes = [2, 1], strides = [1, 1]} : vector<32x1xf32> to vector<2x1xf32>
    %814 = tpu.concatenate %795, %803 in 1 : vector<2x32xf32>, vector<2x32xf32> -> vector<2x64xf32>
    %815 = arith.truncf %814 : vector<2x64xf32> to vector<2x64xbf16>
    %cst_90 = arith.constant dense<0.000000e+00> : vector<2x256xf32>
    %816 = tpu.matmul %815, %15, %cst_90 {dimension_numbers = #tpu.dot_dimension_numbers<[1], [0], [0], [1], [0, 0, 1, 1], [], []>} : vector<2x64xbf16>, vector<64x256xbf16>, vector<2x256xf32> -> vector<2x256xf32>
    %817 = vector.extract_strided_slice %816 {offsets = [0, 0], sizes = [2, 128], strides = [1, 1]} : vector<2x256xf32> to vector<2x128xf32>
    %818 = arith.addf %817, %810 : vector<2x128xf32>
    %819 = vector.extract_strided_slice %818 {offsets = [0, 0], sizes = [2, 96], strides = [1, 1]} : vector<2x128xf32> to vector<2x96xf32>
    %820 = arith.negf %819 : vector<2x96xf32>
    %821 = math.exp %820 : vector<2x96xf32>
    %cst_91 = arith.constant 1.000000e+00 : f32
    %822 = vector.broadcast %cst_91 : f32 to vector<2x96xf32>
    %823 = arith.addf %822, %821 : vector<2x96xf32>
    %824 = arith.divf %822, %823 : vector<2x96xf32>
    %825 = vector.extract_strided_slice %818 {offsets = [0, 96], sizes = [2, 32], strides = [1, 1]} : vector<2x128xf32> to vector<2x32xf32>
    %826 = math.tanh %825 : vector<2x32xf32>
    %827 = vector.extract_strided_slice %824 {offsets = [0, 0], sizes = [2, 32], strides = [1, 1]} : vector<2x96xf32> to vector<2x32xf32>
    %828 = vector.extract_strided_slice %824 {offsets = [0, 32], sizes = [2, 32], strides = [1, 1]} : vector<2x96xf32> to vector<2x32xf32>
    %829 = vector.extract_strided_slice %824 {offsets = [0, 64], sizes = [2, 32], strides = [1, 1]} : vector<2x96xf32> to vector<2x32xf32>
    %830 = arith.mulf %828, %799 : vector<2x32xf32>
    %831 = arith.mulf %827, %826 : vector<2x32xf32>
    %832 = arith.addf %830, %831 : vector<2x32xf32>
    %833 = math.tanh %832 : vector<2x32xf32>
    %834 = arith.mulf %829, %833 : vector<2x32xf32>
    %835 = vector.extract_strided_slice %816 {offsets = [0, 128], sizes = [2, 128], strides = [1, 1]} : vector<2x256xf32> to vector<2x128xf32>
    %836 = arith.addf %835, %811 : vector<2x128xf32>
    %837 = vector.extract_strided_slice %836 {offsets = [0, 0], sizes = [2, 96], strides = [1, 1]} : vector<2x128xf32> to vector<2x96xf32>
    %838 = arith.negf %837 : vector<2x96xf32>
    %839 = math.exp %838 : vector<2x96xf32>
    %cst_92 = arith.constant 1.000000e+00 : f32
    %840 = vector.broadcast %cst_92 : f32 to vector<2x96xf32>
    %841 = arith.addf %840, %839 : vector<2x96xf32>
    %842 = arith.divf %840, %841 : vector<2x96xf32>
    %843 = vector.extract_strided_slice %836 {offsets = [0, 96], sizes = [2, 32], strides = [1, 1]} : vector<2x128xf32> to vector<2x32xf32>
    %844 = math.tanh %843 : vector<2x32xf32>
    %845 = vector.extract_strided_slice %842 {offsets = [0, 0], sizes = [2, 32], strides = [1, 1]} : vector<2x96xf32> to vector<2x32xf32>
    %846 = vector.extract_strided_slice %842 {offsets = [0, 32], sizes = [2, 32], strides = [1, 1]} : vector<2x96xf32> to vector<2x32xf32>
    %847 = vector.extract_strided_slice %842 {offsets = [0, 64], sizes = [2, 32], strides = [1, 1]} : vector<2x96xf32> to vector<2x32xf32>
    %848 = arith.mulf %846, %807 : vector<2x32xf32>
    %849 = arith.mulf %845, %844 : vector<2x32xf32>
    %850 = arith.addf %848, %849 : vector<2x32xf32>
    %851 = math.tanh %850 : vector<2x32xf32>
    %852 = arith.mulf %847, %851 : vector<2x32xf32>
    %853 = arith.subf %834, %795 : vector<2x32xf32>
    %854 = vector.broadcast %812 : vector<2x1xf32> to vector<2x32xf32>
    %855 = arith.mulf %854, %853 : vector<2x32xf32>
    %856 = arith.addf %795, %855 : vector<2x32xf32>
    %857 = arith.subf %832, %799 : vector<2x32xf32>
    %858 = vector.broadcast %812 : vector<2x1xf32> to vector<2x32xf32>
    %859 = arith.mulf %858, %857 : vector<2x32xf32>
    %860 = arith.addf %799, %859 : vector<2x32xf32>
    %861 = arith.subf %852, %803 : vector<2x32xf32>
    %862 = vector.broadcast %813 : vector<2x1xf32> to vector<2x32xf32>
    %863 = arith.mulf %862, %861 : vector<2x32xf32>
    %864 = arith.addf %803, %863 : vector<2x32xf32>
    %865 = arith.subf %850, %807 : vector<2x32xf32>
    %866 = vector.broadcast %813 : vector<2x1xf32> to vector<2x32xf32>
    %867 = arith.mulf %866, %865 : vector<2x32xf32>
    %868 = arith.addf %807, %867 : vector<2x32xf32>
    %c26_93 = arith.constant 26 : index
    %c0_94 = arith.constant 0 : index
    %869 = vector.load %arg9[%c26_93, %c0_94] : memref<32x64xf32, #tpu.memory_space<vmem>>, vector<2x32xf32>
    tpu.vector_store %arg9[%c26_93, %c0_94], %856 {strides = array<i32>} : memref<32x64xf32, #tpu.memory_space<vmem>>, vector<2x32xf32>,
    %c4_95 = arith.constant 4 : index
    %c32_96 = arith.constant 32 : index
    %870 = vector.load %arg9[%c4_95, %c32_96] : memref<32x64xf32, #tpu.memory_space<vmem>>, vector<2x32xf32>
    tpu.vector_store %arg9[%c4_95, %c32_96], %864 {strides = array<i32>} : memref<32x64xf32, #tpu.memory_space<vmem>>, vector<2x32xf32>,
    %871 = vector.extract_strided_slice %13 {offsets = [28, 0], sizes = [2, 128], strides = [1, 1]} : vector<32x256xf32> to vector<2x128xf32>
    %872 = vector.extract_strided_slice %13 {offsets = [2, 128], sizes = [2, 128], strides = [1, 1]} : vector<32x256xf32> to vector<2x128xf32>
    %873 = vector.extract_strided_slice %14 {offsets = [28, 0], sizes = [2, 1], strides = [1, 1]} : vector<32x1xf32> to vector<2x1xf32>
    %874 = vector.extract_strided_slice %14 {offsets = [2, 0], sizes = [2, 1], strides = [1, 1]} : vector<32x1xf32> to vector<2x1xf32>
    %875 = tpu.concatenate %856, %864 in 1 : vector<2x32xf32>, vector<2x32xf32> -> vector<2x64xf32>
    %876 = arith.truncf %875 : vector<2x64xf32> to vector<2x64xbf16>
    %cst_97 = arith.constant dense<0.000000e+00> : vector<2x256xf32>
    %877 = tpu.matmul %876, %15, %cst_97 {dimension_numbers = #tpu.dot_dimension_numbers<[1], [0], [0], [1], [0, 0, 1, 1], [], []>} : vector<2x64xbf16>, vector<64x256xbf16>, vector<2x256xf32> -> vector<2x256xf32>
    %878 = vector.extract_strided_slice %877 {offsets = [0, 0], sizes = [2, 128], strides = [1, 1]} : vector<2x256xf32> to vector<2x128xf32>
    %879 = arith.addf %878, %871 : vector<2x128xf32>
    %880 = vector.extract_strided_slice %879 {offsets = [0, 0], sizes = [2, 96], strides = [1, 1]} : vector<2x128xf32> to vector<2x96xf32>
    %881 = arith.negf %880 : vector<2x96xf32>
    %882 = math.exp %881 : vector<2x96xf32>
    %cst_98 = arith.constant 1.000000e+00 : f32
    %883 = vector.broadcast %cst_98 : f32 to vector<2x96xf32>
    %884 = arith.addf %883, %882 : vector<2x96xf32>
    %885 = arith.divf %883, %884 : vector<2x96xf32>
    %886 = vector.extract_strided_slice %879 {offsets = [0, 96], sizes = [2, 32], strides = [1, 1]} : vector<2x128xf32> to vector<2x32xf32>
    %887 = math.tanh %886 : vector<2x32xf32>
    %888 = vector.extract_strided_slice %885 {offsets = [0, 0], sizes = [2, 32], strides = [1, 1]} : vector<2x96xf32> to vector<2x32xf32>
    %889 = vector.extract_strided_slice %885 {offsets = [0, 32], sizes = [2, 32], strides = [1, 1]} : vector<2x96xf32> to vector<2x32xf32>
    %890 = vector.extract_strided_slice %885 {offsets = [0, 64], sizes = [2, 32], strides = [1, 1]} : vector<2x96xf32> to vector<2x32xf32>
    %891 = arith.mulf %889, %860 : vector<2x32xf32>
    %892 = arith.mulf %888, %887 : vector<2x32xf32>
    %893 = arith.addf %891, %892 : vector<2x32xf32>
    %894 = math.tanh %893 : vector<2x32xf32>
    %895 = arith.mulf %890, %894 : vector<2x32xf32>
    %896 = vector.extract_strided_slice %877 {offsets = [0, 128], sizes = [2, 128], strides = [1, 1]} : vector<2x256xf32> to vector<2x128xf32>
    %897 = arith.addf %896, %872 : vector<2x128xf32>
    %898 = vector.extract_strided_slice %897 {offsets = [0, 0], sizes = [2, 96], strides = [1, 1]} : vector<2x128xf32> to vector<2x96xf32>
    %899 = arith.negf %898 : vector<2x96xf32>
    %900 = math.exp %899 : vector<2x96xf32>
    %cst_99 = arith.constant 1.000000e+00 : f32
    %901 = vector.broadcast %cst_99 : f32 to vector<2x96xf32>
    %902 = arith.addf %901, %900 : vector<2x96xf32>
    %903 = arith.divf %901, %902 : vector<2x96xf32>
    %904 = vector.extract_strided_slice %897 {offsets = [0, 96], sizes = [2, 32], strides = [1, 1]} : vector<2x128xf32> to vector<2x32xf32>
    %905 = math.tanh %904 : vector<2x32xf32>
    %906 = vector.extract_strided_slice %903 {offsets = [0, 0], sizes = [2, 32], strides = [1, 1]} : vector<2x96xf32> to vector<2x32xf32>
    %907 = vector.extract_strided_slice %903 {offsets = [0, 32], sizes = [2, 32], strides = [1, 1]} : vector<2x96xf32> to vector<2x32xf32>
    %908 = vector.extract_strided_slice %903 {offsets = [0, 64], sizes = [2, 32], strides = [1, 1]} : vector<2x96xf32> to vector<2x32xf32>
    %909 = arith.mulf %907, %868 : vector<2x32xf32>
    %910 = arith.mulf %906, %905 : vector<2x32xf32>
    %911 = arith.addf %909, %910 : vector<2x32xf32>
    %912 = math.tanh %911 : vector<2x32xf32>
    %913 = arith.mulf %908, %912 : vector<2x32xf32>
    %914 = arith.subf %895, %856 : vector<2x32xf32>
    %915 = vector.broadcast %873 : vector<2x1xf32> to vector<2x32xf32>
    %916 = arith.mulf %915, %914 : vector<2x32xf32>
    %917 = arith.addf %856, %916 : vector<2x32xf32>
    %918 = arith.subf %893, %860 : vector<2x32xf32>
    %919 = vector.broadcast %873 : vector<2x1xf32> to vector<2x32xf32>
    %920 = arith.mulf %919, %918 : vector<2x32xf32>
    %921 = arith.addf %860, %920 : vector<2x32xf32>
    %922 = arith.subf %913, %864 : vector<2x32xf32>
    %923 = vector.broadcast %874 : vector<2x1xf32> to vector<2x32xf32>
    %924 = arith.mulf %923, %922 : vector<2x32xf32>
    %925 = arith.addf %864, %924 : vector<2x32xf32>
    %926 = arith.subf %911, %868 : vector<2x32xf32>
    %927 = vector.broadcast %874 : vector<2x1xf32> to vector<2x32xf32>
    %928 = arith.mulf %927, %926 : vector<2x32xf32>
    %929 = arith.addf %868, %928 : vector<2x32xf32>
    %c28_100 = arith.constant 28 : index
    %c0_101 = arith.constant 0 : index
    %930 = vector.load %arg9[%c28_100, %c0_101] : memref<32x64xf32, #tpu.memory_space<vmem>>, vector<2x32xf32>
    tpu.vector_store %arg9[%c28_100, %c0_101], %917 {strides = array<i32>} : memref<32x64xf32, #tpu.memory_space<vmem>>, vector<2x32xf32>,
    %c2_102 = arith.constant 2 : index
    %c32_103 = arith.constant 32 : index
    %931 = vector.load %arg9[%c2_102, %c32_103] : memref<32x64xf32, #tpu.memory_space<vmem>>, vector<2x32xf32>
    tpu.vector_store %arg9[%c2_102, %c32_103], %925 {strides = array<i32>} : memref<32x64xf32, #tpu.memory_space<vmem>>, vector<2x32xf32>,
    %932 = vector.extract_strided_slice %13 {offsets = [30, 0], sizes = [2, 128], strides = [1, 1]} : vector<32x256xf32> to vector<2x128xf32>
    %933 = vector.extract_strided_slice %13 {offsets = [0, 128], sizes = [2, 128], strides = [1, 1]} : vector<32x256xf32> to vector<2x128xf32>
    %934 = vector.extract_strided_slice %14 {offsets = [30, 0], sizes = [2, 1], strides = [1, 1]} : vector<32x1xf32> to vector<2x1xf32>
    %935 = vector.extract_strided_slice %14 {offsets = [0, 0], sizes = [2, 1], strides = [1, 1]} : vector<32x1xf32> to vector<2x1xf32>
    %936 = tpu.concatenate %917, %925 in 1 : vector<2x32xf32>, vector<2x32xf32> -> vector<2x64xf32>
    %937 = arith.truncf %936 : vector<2x64xf32> to vector<2x64xbf16>
    %cst_104 = arith.constant dense<0.000000e+00> : vector<2x256xf32>
    %938 = tpu.matmul %937, %15, %cst_104 {dimension_numbers = #tpu.dot_dimension_numbers<[1], [0], [0], [1], [0, 0, 1, 1], [], []>} : vector<2x64xbf16>, vector<64x256xbf16>, vector<2x256xf32> -> vector<2x256xf32>
    %939 = vector.extract_strided_slice %938 {offsets = [0, 0], sizes = [2, 128], strides = [1, 1]} : vector<2x256xf32> to vector<2x128xf32>
    %940 = arith.addf %939, %932 : vector<2x128xf32>
    %941 = vector.extract_strided_slice %940 {offsets = [0, 0], sizes = [2, 96], strides = [1, 1]} : vector<2x128xf32> to vector<2x96xf32>
    %942 = arith.negf %941 : vector<2x96xf32>
    %943 = math.exp %942 : vector<2x96xf32>
    %cst_105 = arith.constant 1.000000e+00 : f32
    %944 = vector.broadcast %cst_105 : f32 to vector<2x96xf32>
    %945 = arith.addf %944, %943 : vector<2x96xf32>
    %946 = arith.divf %944, %945 : vector<2x96xf32>
    %947 = vector.extract_strided_slice %940 {offsets = [0, 96], sizes = [2, 32], strides = [1, 1]} : vector<2x128xf32> to vector<2x32xf32>
    %948 = math.tanh %947 : vector<2x32xf32>
    %949 = vector.extract_strided_slice %946 {offsets = [0, 0], sizes = [2, 32], strides = [1, 1]} : vector<2x96xf32> to vector<2x32xf32>
    %950 = vector.extract_strided_slice %946 {offsets = [0, 32], sizes = [2, 32], strides = [1, 1]} : vector<2x96xf32> to vector<2x32xf32>
    %951 = vector.extract_strided_slice %946 {offsets = [0, 64], sizes = [2, 32], strides = [1, 1]} : vector<2x96xf32> to vector<2x32xf32>
    %952 = arith.mulf %950, %921 : vector<2x32xf32>
    %953 = arith.mulf %949, %948 : vector<2x32xf32>
    %954 = arith.addf %952, %953 : vector<2x32xf32>
    %955 = math.tanh %954 : vector<2x32xf32>
    %956 = arith.mulf %951, %955 : vector<2x32xf32>
    %957 = vector.extract_strided_slice %938 {offsets = [0, 128], sizes = [2, 128], strides = [1, 1]} : vector<2x256xf32> to vector<2x128xf32>
    %958 = arith.addf %957, %933 : vector<2x128xf32>
    %959 = vector.extract_strided_slice %958 {offsets = [0, 0], sizes = [2, 96], strides = [1, 1]} : vector<2x128xf32> to vector<2x96xf32>
    %960 = arith.negf %959 : vector<2x96xf32>
    %961 = math.exp %960 : vector<2x96xf32>
    %cst_106 = arith.constant 1.000000e+00 : f32
    %962 = vector.broadcast %cst_106 : f32 to vector<2x96xf32>
    %963 = arith.addf %962, %961 : vector<2x96xf32>
    %964 = arith.divf %962, %963 : vector<2x96xf32>
    %965 = vector.extract_strided_slice %958 {offsets = [0, 96], sizes = [2, 32], strides = [1, 1]} : vector<2x128xf32> to vector<2x32xf32>
    %966 = math.tanh %965 : vector<2x32xf32>
    %967 = vector.extract_strided_slice %964 {offsets = [0, 0], sizes = [2, 32], strides = [1, 1]} : vector<2x96xf32> to vector<2x32xf32>
    %968 = vector.extract_strided_slice %964 {offsets = [0, 32], sizes = [2, 32], strides = [1, 1]} : vector<2x96xf32> to vector<2x32xf32>
    %969 = vector.extract_strided_slice %964 {offsets = [0, 64], sizes = [2, 32], strides = [1, 1]} : vector<2x96xf32> to vector<2x32xf32>
    %970 = arith.mulf %968, %929 : vector<2x32xf32>
    %971 = arith.mulf %967, %966 : vector<2x32xf32>
    %972 = arith.addf %970, %971 : vector<2x32xf32>
    %973 = math.tanh %972 : vector<2x32xf32>
    %974 = arith.mulf %969, %973 : vector<2x32xf32>
    %975 = arith.subf %956, %917 : vector<2x32xf32>
    %976 = vector.broadcast %934 : vector<2x1xf32> to vector<2x32xf32>
    %977 = arith.mulf %976, %975 : vector<2x32xf32>
    %978 = arith.addf %917, %977 : vector<2x32xf32>
    %979 = arith.subf %974, %925 : vector<2x32xf32>
    %980 = vector.broadcast %935 : vector<2x1xf32> to vector<2x32xf32>
    %981 = arith.mulf %980, %979 : vector<2x32xf32>
    %982 = arith.addf %925, %981 : vector<2x32xf32>
    %c30_107 = arith.constant 30 : index
    %c0_108 = arith.constant 0 : index
    %983 = vector.load %arg9[%c30_107, %c0_108] : memref<32x64xf32, #tpu.memory_space<vmem>>, vector<2x32xf32>
    tpu.vector_store %arg9[%c30_107, %c0_108], %978 {strides = array<i32>} : memref<32x64xf32, #tpu.memory_space<vmem>>, vector<2x32xf32>,
    %c0_109 = arith.constant 0 : index
    %c32_110 = arith.constant 32 : index
    %984 = vector.load %arg9[%c0_109, %c32_110] : memref<32x64xf32, #tpu.memory_space<vmem>>, vector<2x32xf32>
    tpu.vector_store %arg9[%c0_109, %c32_110], %982 {strides = array<i32>} : memref<32x64xf32, #tpu.memory_space<vmem>>, vector<2x32xf32>,
    %c0_111 = arith.constant 0 : index
    %c0_112 = arith.constant 0 : index
    %985 = vector.load %arg9[%c0_111, %c0_112] : memref<32x64xf32, #tpu.memory_space<vmem>>, vector<32x64xf32>
    %986 = arith.truncf %985 : vector<32x64xf32> to vector<32x64xbf16>
    %c0_113 = arith.constant 0 : index
    %c0_114 = arith.constant 0 : index
    %987 = vector.load %arg7[%c0_113, %c0_114] : memref<64x128xbf16, #tpu.memory_space<vmem>>, vector<64x128xbf16>
    %cst_115 = arith.constant dense<0.000000e+00> : vector<32x128xf32>
    %988 = tpu.matmul %986, %987, %cst_115 {dimension_numbers = #tpu.dot_dimension_numbers<[1], [0], [0], [1], [0, 0, 1, 1], [], []>} : vector<32x64xbf16>, vector<64x128xbf16>, vector<32x128xf32> -> vector<32x128xf32>
    %989 = vector.broadcast %14 : vector<32x1xf32> to vector<32x128xf32>
    %990 = arith.mulf %988, %989 : vector<32x128xf32>
    %c0_116 = arith.constant 0 : index
    %c0_117 = arith.constant 0 : index
    %991 = vector.load %arg8[%c0_116, %c0_117] : memref<32x128xf32, #tpu.memory_space<vmem>>, vector<32x128xf32>
    tpu.vector_store %arg8[%c0_116, %c0_117], %990 {strides = array<i32>} : memref<32x128xf32, #tpu.memory_space<vmem>>, vector<32x128xf32>,
    return
  }
}

</mosaic_0001>

<llo_original>
// kernel: bilstm_forward.1
$region0: #{bilstm_forward.1}
  #allocation0 [shape = 'u32[]', space=smem, size = 0x4, offset = 0x4, fixed_abs, tag = 'smem constant byte address 0x4 - core index']
  #allocation1 [shape = 'u32[144,128]{1,0:T(1,128)}', space=vmem, size = 0x12000, scoped, tag = 'internal scratch']
  #allocation2 [shape = 'f32[32,64]{1,0:T(8,128)}', space=vmem, size = 0x4000, scoped, tag = 'scratch operand']
  %s0 = inlined_call_operand.vmem [shape: f32[32,64], index: 0, kind: input, shape index: {}]
  %s1 = inlined_call_operand.vmem [shape: f32[32,1], index: 1, kind: input, shape index: {}]
  %s2 = inlined_call_operand.vmem [shape: bf16[64,16], index: 2, kind: input, shape index: {}]
  %s3 = inlined_call_operand.vmem [shape: f32[1,16], index: 3, kind: input, shape index: {}]
  %s4 = inlined_call_operand.vmem [shape: bf16[16,256], index: 4, kind: input, shape index: {}]
  %s5 = inlined_call_operand.vmem [shape: bf16[64,256], index: 5, kind: input, shape index: {}]
  %s6 = inlined_call_operand.vmem [shape: f32[1,256], index: 6, kind: input, shape index: {}]
  %s7 = inlined_call_operand.vmem [shape: bf16[64,128], index: 7, kind: input, shape index: {}]
  %s8 = inlined_call_operand.vmem [shape: f32[32,128], index: 8, kind: output, shape index: {}]
  %s9 = sld [smem:[#allocation0]]
  $region42: #{bilstm_forward.1} parent=0
    _
  %s11 = ssub.s32 1, %s9
  %s12 = scalar_select 0, %s11, %s9
  // Predicated region
  $region2: #{bilstm_forward.1} parent=0 // pred_check
    _
  $region3: #{bilstm_forward.1} parent=0 // pred_check_branch
    %14 = sbr.rel (0) target = $region5
  $region4: #{bilstm_forward.1} parent=0 // pred_region
    _
  $region5: #{bilstm_forward.1} parent=0 // pred_fallthru
    _
  // Predicated region
  $region6: #{bilstm_forward.1} parent=0 // pred_check
    _
  $region7: #{bilstm_forward.1} parent=0 // pred_check_branch
    %16 = sbr.rel (0) target = $region9
  $region8: #{bilstm_forward.1} parent=0 // pred_region
    _
  $region9: #{bilstm_forward.1} parent=0 // pred_fallthru
    _
  // Predicated region
  $region10: #{bilstm_forward.1} parent=0 // pred_check
    _
  $region11: #{bilstm_forward.1} parent=0 // pred_check_branch
    %18 = sbr.rel (0) target = $region13
  $region12: #{bilstm_forward.1} parent=0 // pred_region
    _
  $region13: #{bilstm_forward.1} parent=0 // pred_fallthru
    _
  // Predicated region
  $region14: #{bilstm_forward.1} parent=0 // pred_check
    _
  $region15: #{bilstm_forward.1} parent=0 // pred_check_branch
    %20 = sbr.rel (0) target = $region17
  $region16: #{bilstm_forward.1} parent=0 // pred_region
    _
  $region17: #{bilstm_forward.1} parent=0 // pred_fallthru
    _
  // Predicated region
  $region18: #{bilstm_forward.1} parent=0 // pred_check
    _
  $region19: #{bilstm_forward.1} parent=0 // pred_check_branch
    %22 = sbr.rel (0) target = $region21
  $region20: #{bilstm_forward.1} parent=0 // pred_region
    _
  $region21: #{bilstm_forward.1} parent=0 // pred_fallthru
    _
  // Predicated region
  $region22: #{bilstm_forward.1} parent=0 // pred_check
    _
  $region23: #{bilstm_forward.1} parent=0 // pred_check_branch
    %24 = sbr.rel (0) target = $region25
  $region24: #{bilstm_forward.1} parent=0 // pred_region
    _
  $region25: #{bilstm_forward.1} parent=0 // pred_fallthru
    _
  // Predicated region
  $region26: #{bilstm_forward.1} parent=0 // pred_check
    _
  $region27: #{bilstm_forward.1} parent=0 // pred_check_branch
    %26 = sbr.rel (0) target = $region29
  $region28: #{bilstm_forward.1} parent=0 // pred_region
    _
  $region29: #{bilstm_forward.1} parent=0 // pred_fallthru
    _
  // Predicated region
  $region30: #{bilstm_forward.1} parent=0 // pred_check
    _
  $region31: #{bilstm_forward.1} parent=0 // pred_check_branch
    %28 = sbr.rel (0) target = $region33
  $region32: #{bilstm_forward.1} parent=0 // pred_region
    _
  $region33: #{bilstm_forward.1} parent=0 // pred_fallthru
    _
  %v30 = vld [vmem:[%s0] sm:$0xff]
  %v31 = vld [vmem:[%s0 + $0x8] sm:$0xff]
  %v32 = vld [vmem:[%s0 + $0x10] sm:$0xff]
  %v33 = vld [vmem:[%s0 + $0x18] sm:$0xff]
  %v34 = vpack.c.bf16 %v31, %v30
  %v35 = vpack.c.bf16 %v33, %v32
  %v36 = vld [vmem:[%s2] sm:$0xf]
  %v37 = vld [vmem:[%s2 + $0x4] sm:$0xf]
  %v38 = vld [vmem:[%s2 + $0x8] sm:$0xf]
  %v39 = vld [vmem:[%s2 + $0xc] sm:$0xf]
  %v40 = vld [vmem:[%s2 + $0x10] sm:$0xf]
  %v41 = vld [vmem:[%s2 + $0x14] sm:$0xf]
  %v42 = vld [vmem:[%s2 + $0x18] sm:$0xf]
  %v43 = vld [vmem:[%s2 + $0x1c] sm:$0xf]
  %v44 = vld [vmem:[%s3] sm:$0x1]
  %v46 = vlaneseq
  %v47 = vshrl.u32 %v46, 7
  %v48 = vsub.s32 0, %v47
  %v49 = vrot.slane %v44, %v48
  %v59 = vunpack.c.l.b16 %v36
  %v60 = vunpack.c.l.b16 %v37
  %v61 = vunpack.c.l.b16 %v38
  %v62 = vunpack.c.l.b16 %v39
  %v63 = vunpack.c.l.b16 %v40
  %v64 = vunpack.c.l.b16 %v41
  %v65 = vunpack.c.l.b16 %v42
  %v66 = vunpack.c.l.b16 %v43
  %v67 = vpack.c.b16 %v60, %v59
  %v68 = vpack.c.b16 %v62, %v61
  %v69 = vpack.c.b16 %v64, %v63
  %v70 = vpack.c.b16 %v66, %v65
  %vm75 = vcmask 523264
  %v77 = vsel %vm75, %v34, 0
  %v80 = vsel %vm75, %v35, 0
  %82 = vmatprep.subr.bf16.mxu0 0
  %83 = vmatpush1.bf16.msra.mxu0 %v67
  %84 = vmatprep.subr.bf16.mxu0 0
  %85 = vmatpush1.bf16.msra.mxu0 %v68
  %86 = vmatprep.subr.bf16.mxu0 0
  %87 = vmatpush1.bf16.msra.mxu0 %v69
  %88 = vmatprep.subr.bf16.mxu0 0
  %89 = vmatpush1.bf16.msra.mxu0 %v70
  %90 = vmatprep.subr.bf16.mxu0 0
  %91 = vmatpush1.bf16.msra.mxu0 0
  %92 = vmatprep.subr.bf16.mxu0 0
  %93 = vmatpush1.bf16.msra.mxu0 0
  %94 = vmatprep.subr.bf16.mxu0 0
  %95 = vmatpush1.bf16.msra.mxu0 0
  %96 = vmatprep.subr.bf16.mxu0 0
  %97 = vmatpush1.bf16.msra.mxu0 0
  %98 = vmatprep.subr.bf16.mxu0 0
  %99 = vmatpush1.bf16.msra.mxu0 0
  %100 = vmatprep.subr.bf16.mxu0 0
  %101 = vmatpush1.bf16.msra.mxu0 0
  %102 = vmatprep.subr.bf16.mxu0 0
  %103 = vmatpush1.bf16.msra.mxu0 0
  %104 = vmatprep.subr.bf16.mxu0 0
  %105 = vmatpush1.bf16.msra.mxu0 0
  %106 = vmatprep.subr.bf16.mxu0 0
  %107 = vmatpush1.bf16.msra.mxu0 0
  %108 = vmatprep.subr.bf16.mxu0 0
  %109 = vmatpush1.bf16.msra.mxu0 0
  %110 = vmatprep.subr.bf16.mxu0 0
  %111 = vmatpush1.bf16.msra.mxu0 0
  %112 = vmatprep.subr.bf16.mxu0 0
  %113 = vmatpush1.bf16.msra.mxu0 0
  %114 = vmatprep.mubr.bf16.mxu0 0
  %115 = vmatmul.mubr.bf16.gmra.mrb[0].mxu0 %v77
  %v116 = vpop.f32.mrb[0].mxu0
  %v117 = vadd.f32 %v49, %v116
  %v118 = vpop.f32.mrb[0].mxu0
  %v119 = vpop.f32.mrb[0].mxu0
  %v120 = vadd.f32 %v49, %v119
  %v121 = vpop.f32.mrb[0].mxu0
  %122 = vmatprep.mubr.bf16.mxu0 0
  %123 = vmatmul.mubr.bf16.gmra.mrb[0].mxu0 %v80
  %v124 = vpop.f32.mrb[0].mxu0
  %v125 = vadd.f32 %v49, %v124
  %v126 = vpop.f32.mrb[0].mxu0
  %v127 = vpop.f32.mrb[0].mxu0
  %v128 = vadd.f32 %v49, %v127
  %v129 = vpop.f32.mrb[0].mxu0
  %130 = vdwg.mxu0
  %v131 = vtanh.pop %v117
  %v132 = vtanh.pop %v120
  %v133 = vtanh.pop %v125
  %v134 = vtanh.pop %v128
  %v135 = vpack.c.bf16 %v132, %v131
  %v136 = vpack.c.bf16 %v134, %v133
  %v137 = vld [vmem:[%s4] sm:$0xff]
  %v138 = vld [vmem:[%s4 + $0x8] sm:$0xff]
  %v139 = vld [vmem:[%s6] sm:$0x3]
  %v141 = vlaneseq
  %v142 = vshrl.u32 %v141, 7
  %v143 = vsub.s32 0, %v142
  %v144 = vrot.slane %v139, %v143
  %v145 = vlaneseq
  %v146 = vshrl.u32 %v145, 7
  %v147 = vsub.s32 1, %v146
  %v148 = vrot.slane %v139, %v147
  %v153 = vunpack.c.l.b16 %v137
  %v154 = vunpack.c.h.b16 %v137
  %v155 = vunpack.c.l.b16 %v138
  %v156 = vunpack.c.h.b16 %v138
  %v157 = vpack.c.b16 %v155, %v153
  %v158 = vpack.c.b16 %v156, %v154
  %vm161 = vcmask 130048
  %v163 = vsel %vm161, %v135, 0
  %v166 = vsel %vm161, %v136, 0
  %168 = vmatprep.subr.bf16.mxu0 %v158
  %169 = vmatpush1.bf16.msra.mxu0 %v157
  %170 = vmatprep.subr.bf16.mxu0 0
  %171 = vmatpush1.bf16.msra.mxu0 0
  %172 = vmatprep.subr.bf16.mxu0 0
  %173 = vmatpush1.bf16.msra.mxu0 0
  %174 = vmatprep.subr.bf16.mxu0 0
  %175 = vmatpush1.bf16.msra.mxu0 0
  %176 = vmatprep.subr.bf16.mxu0 0
  %177 = vmatpush1.bf16.msra.mxu0 0
  %178 = vmatprep.subr.bf16.mxu0 0
  %179 = vmatpush1.bf16.msra.mxu0 0
  %180 = vmatprep.subr.bf16.mxu0 0
  %181 = vmatpush1.bf16.msra.mxu0 0
  %182 = vmatprep.subr.bf16.mxu0 0
  %183 = vmatpush1.bf16.msra.mxu0 0
  %184 = vmatprep.subr.bf16.mxu0 0
  %185 = vmatpush1.bf16.msra.mxu0 0
  %186 = vmatprep.subr.bf16.mxu0 0
  %187 = vmatpush1.bf16.msra.mxu0 0
  %188 = vmatprep.subr.bf16.mxu0 0
  %189 = vmatpush1.bf16.msra.mxu0 0
  %190 = vmatprep.subr.bf16.mxu0 0
  %191 = vmatpush1.bf16.msra.mxu0 0
  %192 = vmatprep.subr.bf16.mxu0 0
  %193 = vmatpush1.bf16.msra.mxu0 0
  %194 = vmatprep.subr.bf16.mxu0 0
  %195 = vmatpush1.bf16.msra.mxu0 0
  %196 = vmatprep.subr.bf16.mxu0 0
  %197 = vmatpush1.bf16.msra.mxu0 0
  %198 = vmatprep.subr.bf16.mxu0 0
  %199 = vmatpush1.bf16.msra.mxu0 0
  %200 = vmatprep.mubr.bf16.mxu0 0
  %201 = vmatmul.mubr.bf16.gmra.mrb[0].mxu0 %v163
  %v202 = vpop.f32.mrb[0].mxu0
  %v203 = vadd.f32 %v144, %v202
  %v204 = vpop.f32.mrb[0].mxu0
  %v205 = vadd.f32 %v148, %v204
  %v206 = vpop.f32.mrb[0].mxu0
  %v207 = vadd.f32 %v144, %v206
  %v208 = vpop.f32.mrb[0].mxu0
  %v209 = vadd.f32 %v148, %v208
  %210 = vmatprep.mubr.bf16.mxu0 0
  %211 = vmatmul.mubr.bf16.gmra.mrb[0].mxu0 %v166
  %v212 = vpop.f32.mrb[0].mxu0
  %v213 = vadd.f32 %v144, %v212
  %v214 = vpop.f32.mrb[0].mxu0
  %v215 = vadd.f32 %v148, %v214
  %v216 = vpop.f32.mrb[0].mxu0
  %v217 = vadd.f32 %v144, %v216
  %v218 = vpop.f32.mrb[0].mxu0
  %v219 = vadd.f32 %v148, %v218
  %220 = vdwg.mxu0
  %v221 = vld [vmem:[%s1] sm:$0xff]
  %v222 = vld [vmem:[%s1 + $0x8] sm:$0xff]
  %v223 = vld [vmem:[%s1 + $0x10] sm:$0xff]
  %v224 = vld [vmem:[%s1 + $0x18] sm:$0xff]
  %v225 = vld [vmem:[%s5] sm:$0xff]
  %v226 = vld [vmem:[%s5 + $0x8] sm:$0xff]
  %v227 = vld [vmem:[%s5 + $0x10] sm:$0xff]
  %v228 = vld [vmem:[%s5 + $0x18] sm:$0xff]
  %v229 = vld [vmem:[%s5 + $0x20] sm:$0xff]
  %v230 = vld [vmem:[%s5 + $0x28] sm:$0xff]
  %v231 = vld [vmem:[%s5 + $0x30] sm:$0xff]
  %v232 = vld [vmem:[%s5 + $0x38] sm:$0xff]
  %v233 = vpack.c.bf16 0.0, 0.0
  %v242 = vunpack.c.l.b16 %v225
  %v243 = vunpack.c.h.b16 %v225
  %v244 = vunpack.c.l.b16 %v226
  %v245 = vunpack.c.h.b16 %v226
  %v246 = vunpack.c.l.b16 %v227
  %v247 = vunpack.c.h.b16 %v227
  %v248 = vunpack.c.l.b16 %v228
  %v249 = vunpack.c.h.b16 %v228
  %v250 = vunpack.c.l.b16 %v229
  %v251 = vunpack.c.h.b16 %v229
  %v252 = vunpack.c.l.b16 %v230
  %v253 = vunpack.c.h.b16 %v230
  %v254 = vunpack.c.l.b16 %v231
  %v255 = vunpack.c.h.b16 %v231
  %v256 = vunpack.c.l.b16 %v232
  %v257 = vunpack.c.h.b16 %v232
  %v258 = vpack.c.b16 %v244, %v242
  %v259 = vpack.c.b16 %v245, %v243
  %v260 = vpack.c.b16 %v248, %v246
  %v261 = vpack.c.b16 %v249, %v247
  %v262 = vpack.c.b16 %v252, %v250
  %v263 = vpack.c.b16 %v253, %v251
  %v264 = vpack.c.b16 %v256, %v254
  %v265 = vpack.c.b16 %v257, %v255
  %v275 = vsel %vm75, %v233, 0
  %277 = vmatprep.subr.bf16.mxu0 %v259
  %278 = vmatpush1.bf16.msra.mxu0 %v258
  %279 = vmatprep.subr.bf16.mxu0 %v261
  %280 = vmatpush1.bf16.msra.mxu0 %v260
  %281 = vmatprep.subr.bf16.mxu0 %v263
  %282 = vmatpush1.bf16.msra.mxu0 %v262
  %283 = vmatprep.subr.bf16.mxu0 %v265
  %284 = vmatpush1.bf16.msra.mxu0 %v264
  %285 = vmatprep.subr.bf16.mxu0 0
  %286 = vmatpush1.bf16.msra.mxu0 0
  %287 = vmatprep.subr.bf16.mxu0 0
  %288 = vmatpush1.bf16.msra.mxu0 0
  %289 = vmatprep.subr.bf16.mxu0 0
  %290 = vmatpush1.bf16.msra.mxu0 0
  %291 = vmatprep.subr.bf16.mxu0 0
  %292 = vmatpush1.bf16.msra.mxu0 0
  %293 = vmatprep.subr.bf16.mxu0 0
  %294 = vmatpush1.bf16.msra.mxu0 0
  %295 = vmatprep.subr.bf16.mxu0 0
  %296 = vmatpush1.bf16.msra.mxu0 0
  %297 = vmatprep.subr.bf16.mxu0 0
  %298 = vmatpush1.bf16.msra.mxu0 0
  %299 = vmatprep.subr.bf16.mxu0 0
  %300 = vmatpush1.bf16.msra.mxu0 0
  %301 = vmatprep.subr.bf16.mxu0 0
  %302 = vmatpush1.bf16.msra.mxu0 0
  %303 = vmatprep.subr.bf16.mxu0 0
  %304 = vmatpush1.bf16.msra.mxu0 0
  %305 = vmatprep.subr.bf16.mxu0 0
  %306 = vmatpush1.bf16.msra.mxu0 0
  %307 = vmatprep.subr.bf16.mxu0 0
  %308 = vmatpush1.bf16.msra.mxu0 0
  %309 = vmatprep.mubr.bf16.mxu0 0
  %310 = vmatmul.mubr.bf16.gmra.mrb[0].mxu0 %v275
  %v311 = vpop.f32.mrb[0].mxu0
  %v312 = vadd.f32 0.0, %v311
  %v313 = vpop.f32.mrb[0].mxu0
  %v314 = vadd.f32 0.0, %v313
  %v315 = vpop.f32.mrb[0].mxu0
  %v316 = vpop.f32.mrb[0].mxu0
  %317 = vdwg.mxu0
  %v318 = vadd.f32 %v312, %v203
  %v319 = vxor.u32 %v318, 2147483648
  %v320 = vmul.f32 %v319, 1.442695
  %v321 = vpow.pop %v320
  %v322 = vadd.f32 %v321, 1.0
  %v323 = vrcp.pop %v322
  %v324 = vmul.f32 1.0, %v323
  %v325 = vtanh.pop %v318
  %v326 = vmul.f32 %v324, 0.0
  %328 = vrot.lane.b32.xlu0 %v325, 32
  %v329 = vpop.permute.xlu0 %328
  %v331 = vmul.f32 %v324, %v329
  %333 = vrot.lane.b32.xlu0 %v331, 32
  %v334 = vpop.permute.xlu0 %333
  %v336 = vadd.f32 %v326, %v334
  %v337 = vtanh.pop %v336
  %339 = vrot.lane.b32.xlu0 %v337, 32
  %v340 = vpop.permute.xlu0 %339
  %v342 = vmul.f32 %v324, %v340
  %v344 = vrot.slane %v219, 6
  %v346 = vadd.f32 %v314, %v344
  %v347 = vxor.u32 %v346, 2147483648
  %v348 = vmul.f32 %v347, 1.442695
  %v349 = vpow.pop %v348
  %v350 = vadd.f32 %v349, 1.0
  %v351 = vrcp.pop %v350
  %v352 = vmul.f32 1.0, %v351
  %v353 = vtanh.pop %v346
  %v354 = vmul.f32 %v352, 0.0
  %356 = vrot.lane.b32.xlu0 %v353, 32
  %v357 = vpop.permute.xlu0 %356
  %v359 = vmul.f32 %v352, %v357
  %361 = vrot.lane.b32.xlu0 %v359, 32
  %v362 = vpop.permute.xlu0 %361
  %v364 = vadd.f32 %v354, %v362
  %v365 = vtanh.pop %v364
  %367 = vrot.lane.b32.xlu0 %v365, 32
  %v368 = vpop.permute.xlu0 %367
  %v370 = vmul.f32 %v352, %v368
  %372 = vset.pattern.permute.xlu0 0
  %373 = vperm.xlu0 %372, %v221
  %v374 = vpop.permute.xlu0 %373
  %v376 = vmul.f32 %v374, %v342
  %v377 = vadd.f32 %v376, 0.0
  %v378 = vmul.f32 %v374, %v336
  %v379 = vadd.f32 %v378, 0.0
  %381 = vset.pattern.permute.xlu0 0
  %382 = vperm.xlu0 %381, %v224
  %v383 = vpop.permute.xlu0 %382
  %v386 = vrot.slane %v370, 2
  %387 = vrot.lane.b32.xlu0 %v386, 64
  %v388 = vpop.permute.xlu0 %387
  %v390 = vmul.f32 %v383, %v388
  %v391 = vadd.f32 %v390, 0.0
  %v393 = vrot.slane %v364, 2
  %394 = vrot.lane.b32.xlu0 %v393, 96
  %v395 = vpop.permute.xlu0 %394
  %v397 = vmul.f32 %v383, %v395
  %v398 = vadd.f32 %v397, 0.0
  %400 = vrot.lane.b32.xlu0 %v377, 64
  %v401 = vpop.permute.xlu0 %400
  %vm403 = vcmask 254976
  %404 = vst.msk [vmem:[#allocation2] sm:$0x3] %vm403, %v401
  %406 = vrot.lane.b32.xlu0 %v391, 32
  %v407 = vpop.permute.xlu0 %406
  %vm409 = vcmask 523526
  %410 = vst.msk [vmem:[#allocation2 + $0x18] sm:$0xc0] %vm409, %v407
  %v411 = vrot.slane %v391, 6
  %412 = vrot.lane.b32.xlu0 %v411, 32
  %v413 = vpop.permute.xlu0 %412
  %vm415 = vcmask 261120
  %v416 = vsel %vm415, %v401, %v413
  %v417 = vpack.c.bf16 %v416, %v416
  %v419 = vsel %vm75, %v417, 0
  %421 = vmatprep.subr.bf16.mxu0 %v259
  %422 = vmatpush1.bf16.msra.mxu0 %v258
  %423 = vmatprep.subr.bf16.mxu0 %v261
  %424 = vmatpush1.bf16.msra.mxu0 %v260
  %425 = vmatprep.subr.bf16.mxu0 %v263
  %426 = vmatpush1.bf16.msra.mxu0 %v262
  %427 = vmatprep.subr.bf16.mxu0 %v265
  %428 = vmatpush1.bf16.msra.mxu0 %v264
  %429 = vmatprep.subr.bf16.mxu0 0
  %430 = vmatpush1.bf16.msra.mxu0 0
  %431 = vmatprep.subr.bf16.mxu0 0
  %432 = vmatpush1.bf16.msra.mxu0 0
  %433 = vmatprep.subr.bf16.mxu0 0
  %434 = vmatpush1.bf16.msra.mxu0 0
  %435 = vmatprep.subr.bf16.mxu0 0
  %436 = vmatpush1.bf16.msra.mxu0 0
  %437 = vmatprep.subr.bf16.mxu0 0
  %438 = vmatpush1.bf16.msra.mxu0 0
  %439 = vmatprep.subr.bf16.mxu0 0
  %440 = vmatpush1.bf16.msra.mxu0 0
  %441 = vmatprep.subr.bf16.mxu0 0
  %442 = vmatpush1.bf16.msra.mxu0 0
  %443 = vmatprep.subr.bf16.mxu0 0
  %444 = vmatpush1.bf16.msra.mxu0 0
  %445 = vmatprep.subr.bf16.mxu0 0
  %446 = vmatpush1.bf16.msra.mxu0 0
  %447 = vmatprep.subr.bf16.mxu0 0
  %448 = vmatpush1.bf16.msra.mxu0 0
  %449 = vmatprep.subr.bf16.mxu0 0
  %450 = vmatpush1.bf16.msra.mxu0 0
  %451 = vmatprep.subr.bf16.mxu0 0
  %452 = vmatpush1.bf16.msra.mxu0 0
  %453 = vmatprep.mubr.bf16.mxu0 0
  %454 = vmatmul.mubr.bf16.gmra.mrb[0].mxu0 %v419
  %v455 = vpop.f32.mrb[0].mxu0
  %v456 = vadd.f32 0.0, %v455
  %v457 = vpop.f32.mrb[0].mxu0
  %v458 = vadd.f32 0.0, %v457
  %v459 = vpop.f32.mrb[0].mxu0
  %v460 = vpop.f32.mrb[0].mxu0
  %461 = vdwg.mxu0
  %v463 = vrot.slane %v203, 2
  %v465 = vadd.f32 %v456, %v463
  %v466 = vxor.u32 %v465, 2147483648
  %v467 = vmul.f32 %v466, 1.442695
  %v468 = vpow.pop %v467
  %v469 = vadd.f32 %v468, 1.0
  %v470 = vrcp.pop %v469
  %v471 = vmul.f32 1.0, %v470
  %v472 = vtanh.pop %v465
  %v473 = vmul.f32 %v471, %v379
  %475 = vrot.lane.b32.xlu0 %v472, 32
  %v476 = vpop.permute.xlu0 %475
  %v478 = vmul.f32 %v471, %v476
  %480 = vrot.lane.b32.xlu0 %v478, 32
  %v481 = vpop.permute.xlu0 %480
  %v483 = vadd.f32 %v473, %v481
  %v484 = vtanh.pop %v483
  %486 = vrot.lane.b32.xlu0 %v484, 32
  %v487 = vpop.permute.xlu0 %486
  %v489 = vmul.f32 %v471, %v487
  %v490 = vrot.slane %v219, 4
  %v492 = vadd.f32 %v458, %v490
  %v493 = vxor.u32 %v492, 2147483648
  %v494 = vmul.f32 %v493, 1.442695
  %v495 = vpow.pop %v494
  %v496 = vadd.f32 %v495, 1.0
  %v497 = vrcp.pop %v496
  %v498 = vmul.f32 1.0, %v497
  %v499 = vtanh.pop %v492
  %v501 = vrot.slane %v398, 6
  %502 = vrot.lane.b32.xlu0 %v501, 32
  %v503 = vpop.permute.xlu0 %502
  %v505 = vmul.f32 %v498, %v503
  %507 = vrot.lane.b32.xlu0 %v499, 32
  %v508 = vpop.permute.xlu0 %507
  %v510 = vmul.f32 %v498, %v508
  %512 = vrot.lane.b32.xlu0 %v510, 32
  %v513 = vpop.permute.xlu0 %512
  %v515 = vadd.f32 %v505, %v513
  %v516 = vtanh.pop %v515
  %518 = vrot.lane.b32.xlu0 %v516, 32
  %v519 = vpop.permute.xlu0 %518
  %v521 = vmul.f32 %v498, %v519
  %v522 = vsub.f32 %v489, %v377
  %v524 = vrot.slane %v522, 6
  %525 = vrot.lane.b32.xlu0 %v524, 64
  %v526 = vpop.permute.xlu0 %525
  %v528 = vmul.f32 %v374, %v526
  %v530 = vrot.slane %v528, 2
  %531 = vrot.lane.b32.xlu0 %v530, 64
  %v532 = vpop.permute.xlu0 %531
  %v534 = vadd.f32 %v377, %v532
  %v535 = vsub.f32 %v483, %v379
  %v537 = vrot.slane %v535, 6
  %538 = vrot.lane.b32.xlu0 %v537, 96
  %v539 = vpop.permute.xlu0 %538
  %v541 = vmul.f32 %v374, %v539
  %v543 = vrot.slane %v541, 2
  %544 = vrot.lane.b32.xlu0 %v543, 32
  %v545 = vpop.permute.xlu0 %544
  %v547 = vadd.f32 %v379, %v545
  %548 = vrot.lane.b32.xlu0 %v411, 64
  %v549 = vpop.permute.xlu0 %548
  %v551 = vsub.f32 %v521, %v549
  %v553 = vrot.slane %v551, 4
  %554 = vrot.lane.b32.xlu0 %v553, 64
  %v555 = vpop.permute.xlu0 %554
  %v557 = vmul.f32 %v383, %v555
  %v559 = vrot.slane %v557, 6
  %v561 = vadd.f32 %v391, %v559
  %v562 = vsub.f32 %v515, %v503
  %v564 = vrot.slane %v562, 4
  %565 = vrot.lane.b32.xlu0 %v564, 96
  %v566 = vpop.permute.xlu0 %565
  %v568 = vmul.f32 %v383, %v566
  %v570 = vrot.slane %v568, 6
  %v572 = vadd.f32 %v398, %v570
  %574 = vrot.lane.b32.xlu0 %v534, 64
  %v575 = vpop.permute.xlu0 %574
  %577 = vst.msk [vmem:[#allocation2 + $0x2] sm:$0x3] %vm403, %v575
  %579 = vrot.lane.b32.xlu0 %v561, 32
  %v580 = vpop.permute.xlu0 %579
  %582 = vst.msk [vmem:[#allocation2 + $0x16] sm:$0xc0] %vm409, %v580
  %v583 = vrot.slane %v561, 6
  %584 = vrot.lane.b32.xlu0 %v583, 32
  %v585 = vpop.permute.xlu0 %584
  %v587 = vsel %vm415, %v575, %v585
  %v588 = vpack.c.bf16 %v587, %v587
  %v590 = vsel %vm75, %v588, 0
  %592 = vmatprep.subr.bf16.mxu0 %v259
  %593 = vmatpush1.bf16.msra.mxu0 %v258
  %594 = vmatprep.subr.bf16.mxu0 %v261
  %595 = vmatpush1.bf16.msra.mxu0 %v260
  %596 = vmatprep.subr.bf16.mxu0 %v263
  %597 = vmatpush1.bf16.msra.mxu0 %v262
  %598 = vmatprep.subr.bf16.mxu0 %v265
  %599 = vmatpush1.bf16.msra.mxu0 %v264
  %600 = vmatprep.subr.bf16.mxu0 0
  %601 = vmatpush1.bf16.msra.mxu0 0
  %602 = vmatprep.subr.bf16.mxu0 0
  %603 = vmatpush1.bf16.msra.mxu0 0
  %604 = vmatprep.subr.bf16.mxu0 0
  %605 = vmatpush1.bf16.msra.mxu0 0
  %606 = vmatprep.subr.bf16.mxu0 0
  %607 = vmatpush1.bf16.msra.mxu0 0
  %608 = vmatprep.subr.bf16.mxu0 0
  %609 = vmatpush1.bf16.msra.mxu0 0
  %610 = vmatprep.subr.bf16.mxu0 0
  %611 = vmatpush1.bf16.msra.mxu0 0
  %612 = vmatprep.subr.bf16.mxu0 0
  %613 = vmatpush1.bf16.msra.mxu0 0
  %614 = vmatprep.subr.bf16.mxu0 0
  %615 = vmatpush1.bf16.msra.mxu0 0
  %616 = vmatprep.subr.bf16.mxu0 0
  %617 = vmatpush1.bf16.msra.mxu0 0
  %618 = vmatprep.subr.bf16.mxu0 0
  %619 = vmatpush1.bf16.msra.mxu0 0
  %620 = vmatprep.subr.bf16.mxu0 0
  %621 = vmatpush1.bf16.msra.mxu0 0
  %622 = vmatprep.subr.bf16.mxu0 0
  %623 = vmatpush1.bf16.msra.mxu0 0
  %624 = vmatprep.mubr.bf16.mxu0 0
  %625 = vmatmul.mubr.bf16.gmra.mrb[0].mxu0 %v590
  %v626 = vpop.f32.mrb[0].mxu0
  %v627 = vadd.f32 0.0, %v626
  %v628 = vpop.f32.mrb[0].mxu0
  %v629 = vadd.f32 0.0, %v628
  %v630 = vpop.f32.mrb[0].mxu0
  %v631 = vpop.f32.mrb[0].mxu0
  %632 = vdwg.mxu0
  %v633 = vrot.slane %v203, 4
  %v635 = vadd.f32 %v627, %v633
  %v636 = vxor.u32 %v635, 2147483648
  %v637 = vmul.f32 %v636, 1.442695
  %v638 = vpow.pop %v637
  %v639 = vadd.f32 %v638, 1.0
  %v640 = vrcp.pop %v639
  %v641 = vmul.f32 1.0, %v640
  %v642 = vtanh.pop %v635
  %v643 = vmul.f32 %v641, %v547
  %645 = vrot.lane.b32.xlu0 %v642, 32
  %v646 = vpop.permute.xlu0 %645
  %v648 = vmul.f32 %v641, %v646
  %650 = vrot.lane.b32.xlu0 %v648, 32
  %v651 = vpop.permute.xlu0 %650
  %v653 = vadd.f32 %v643, %v651
  %v654 = vtanh.pop %v653
  %656 = vrot.lane.b32.xlu0 %v654, 32
  %v657 = vpop.permute.xlu0 %656
  %v659 = vmul.f32 %v641, %v657
  %v660 = vrot.slane %v219, 2
  %v662 = vadd.f32 %v629, %v660
  %v663 = vxor.u32 %v662, 2147483648
  %v664 = vmul.f32 %v663, 1.442695
  %v665 = vpow.pop %v664
  %v666 = vadd.f32 %v665, 1.0
  %v667 = vrcp.pop %v666
  %v668 = vmul.f32 1.0, %v667
  %v669 = vtanh.pop %v662
  %v671 = vrot.slane %v572, 6
  %672 = vrot.lane.b32.xlu0 %v671, 32
  %v673 = vpop.permute.xlu0 %672
  %v675 = vmul.f32 %v668, %v673
  %677 = vrot.lane.b32.xlu0 %v669, 32
  %v678 = vpop.permute.xlu0 %677
  %v680 = vmul.f32 %v668, %v678
  %682 = vrot.lane.b32.xlu0 %v680, 32
  %v683 = vpop.permute.xlu0 %682
  %v685 = vadd.f32 %v675, %v683
  %v686 = vtanh.pop %v685
  %688 = vrot.lane.b32.xlu0 %v686, 32
  %v689 = vpop.permute.xlu0 %688
  %v691 = vmul.f32 %v668, %v689
  %v692 = vsub.f32 %v659, %v534
  %v694 = vrot.slane %v692, 4
  %695 = vrot.lane.b32.xlu0 %v694, 64
  %v696 = vpop.permute.xlu0 %695
  %v698 = vmul.f32 %v374, %v696
  %v700 = vrot.slane %v698, 4
  %701 = vrot.lane.b32.xlu0 %v700, 64
  %v702 = vpop.permute.xlu0 %701
  %v704 = vadd.f32 %v534, %v702
  %v705 = vsub.f32 %v653, %v547
  %v707 = vrot.slane %v705, 4
  %708 = vrot.lane.b32.xlu0 %v707, 96
  %v709 = vpop.permute.xlu0 %708
  %v711 = vmul.f32 %v374, %v709
  %v713 = vrot.slane %v711, 4
  %714 = vrot.lane.b32.xlu0 %v713, 32
  %v715 = vpop.permute.xlu0 %714
  %v717 = vadd.f32 %v547, %v715
  %718 = vrot.lane.b32.xlu0 %v583, 64
  %v719 = vpop.permute.xlu0 %718
  %v721 = vsub.f32 %v691, %v719
  %v723 = vrot.slane %v721, 6
  %724 = vrot.lane.b32.xlu0 %v723, 64
  %v725 = vpop.permute.xlu0 %724
  %v727 = vmul.f32 %v383, %v725
  %v729 = vrot.slane %v727, 4
  %v731 = vadd.f32 %v561, %v729
  %v732 = vsub.f32 %v685, %v673
  %v734 = vrot.slane %v732, 6
  %735 = vrot.lane.b32.xlu0 %v734, 96
  %v736 = vpop.permute.xlu0 %735
  %v738 = vmul.f32 %v383, %v736
  %v740 = vrot.slane %v738, 4
  %v742 = vadd.f32 %v572, %v740
  %744 = vrot.lane.b32.xlu0 %v704, 64
  %v745 = vpop.permute.xlu0 %744
  %747 = vst.msk [vmem:[#allocation2 + $0x4] sm:$0x3] %vm403, %v745
  %749 = vrot.lane.b32.xlu0 %v731, 32
  %v750 = vpop.permute.xlu0 %749
  %752 = vst.msk [vmem:[#allocation2 + $0x14] sm:$0xc0] %vm409, %v750
  %v753 = vrot.slane %v731, 6
  %754 = vrot.lane.b32.xlu0 %v753, 32
  %v755 = vpop.permute.xlu0 %754
  %v757 = vsel %vm415, %v745, %v755
  %v758 = vpack.c.bf16 %v757, %v757
  %v760 = vsel %vm75, %v758, 0
  %762 = vmatprep.subr.bf16.mxu0 %v259
  %763 = vmatpush1.bf16.msra.mxu0 %v258
  %764 = vmatprep.subr.bf16.mxu0 %v261
  %765 = vmatpush1.bf16.msra.mxu0 %v260
  %766 = vmatprep.subr.bf16.mxu0 %v263
  %767 = vmatpush1.bf16.msra.mxu0 %v262
  %768 = vmatprep.subr.bf16.mxu0 %v265
  %769 = vmatpush1.bf16.msra.mxu0 %v264
  %770 = vmatprep.subr.bf16.mxu0 0
  %771 = vmatpush1.bf16.msra.mxu0 0
  %772 = vmatprep.subr.bf16.mxu0 0
  %773 = vmatpush1.bf16.msra.mxu0 0
  %774 = vmatprep.subr.bf16.mxu0 0
  %775 = vmatpush1.bf16.msra.mxu0 0
  %776 = vmatprep.subr.bf16.mxu0 0
  %777 = vmatpush1.bf16.msra.mxu0 0
  %778 = vmatprep.subr.bf16.mxu0 0
  %779 = vmatpush1.bf16.msra.mxu0 0
  %780 = vmatprep.subr.bf16.mxu0 0
  %781 = vmatpush1.bf16.msra.mxu0 0
  %782 = vmatprep.subr.bf16.mxu0 0
  %783 = vmatpush1.bf16.msra.mxu0 0
  %784 = vmatprep.subr.bf16.mxu0 0
  %785 = vmatpush1.bf16.msra.mxu0 0
  %786 = vmatprep.subr.bf16.mxu0 0
  %787 = vmatpush1.bf16.msra.mxu0 0
  %788 = vmatprep.subr.bf16.mxu0 0
  %789 = vmatpush1.bf16.msra.mxu0 0
  %790 = vmatprep.subr.bf16.mxu0 0
  %791 = vmatpush1.bf16.msra.mxu0 0
  %792 = vmatprep.subr.bf16.mxu0 0
  %793 = vmatpush1.bf16.msra.mxu0 0
  %794 = vmatprep.mubr.bf16.mxu0 0
  %795 = vmatmul.mubr.bf16.gmra.mrb[0].mxu0 %v760
  %v796 = vpop.f32.mrb[0].mxu0
  %v797 = vadd.f32 0.0, %v796
  %v798 = vpop.f32.mrb[0].mxu0
  %v799 = vadd.f32 0.0, %v798
  %v800 = vpop.f32.mrb[0].mxu0
  %v801 = vpop.f32.mrb[0].mxu0
  %802 = vdwg.mxu0
  %v803 = vrot.slane %v203, 6
  %v805 = vadd.f32 %v797, %v803
  %v806 = vxor.u32 %v805, 2147483648
  %v807 = vmul.f32 %v806, 1.442695
  %v808 = vpow.pop %v807
  %v809 = vadd.f32 %v808, 1.0
  %v810 = vrcp.pop %v809
  %v811 = vmul.f32 1.0, %v810
  %v812 = vtanh.pop %v805
  %v813 = vmul.f32 %v811, %v717
  %815 = vrot.lane.b32.xlu0 %v812, 32
  %v816 = vpop.permute.xlu0 %815
  %v818 = vmul.f32 %v811, %v816
  %820 = vrot.lane.b32.xlu0 %v818, 32
  %v821 = vpop.permute.xlu0 %820
  %v823 = vadd.f32 %v813, %v821
  %v824 = vtanh.pop %v823
  %826 = vrot.lane.b32.xlu0 %v824, 32
  %v827 = vpop.permute.xlu0 %826
  %v829 = vmul.f32 %v811, %v827
  %v830 = vadd.f32 %v799, %v219
  %v831 = vxor.u32 %v830, 2147483648
  %v832 = vmul.f32 %v831, 1.442695
  %v833 = vpow.pop %v832
  %v834 = vadd.f32 %v833, 1.0
  %v835 = vrcp.pop %v834
  %v836 = vmul.f32 1.0, %v835
  %v837 = vtanh.pop %v830
  %v839 = vrot.slane %v742, 6
  %840 = vrot.lane.b32.xlu0 %v839, 32
  %v841 = vpop.permute.xlu0 %840
  %v843 = vmul.f32 %v836, %v841
  %845 = vrot.lane.b32.xlu0 %v837, 32
  %v846 = vpop.permute.xlu0 %845
  %v848 = vmul.f32 %v836, %v846
  %850 = vrot.lane.b32.xlu0 %v848, 32
  %v851 = vpop.permute.xlu0 %850
  %v853 = vadd.f32 %v843, %v851
  %v854 = vtanh.pop %v853
  %856 = vrot.lane.b32.xlu0 %v854, 32
  %v857 = vpop.permute.xlu0 %856
  %v859 = vmul.f32 %v836, %v857
  %v860 = vsub.f32 %v829, %v704
  %v862 = vrot.slane %v860, 2
  %863 = vrot.lane.b32.xlu0 %v862, 64
  %v864 = vpop.permute.xlu0 %863
  %v866 = vmul.f32 %v374, %v864
  %v868 = vrot.slane %v866, 6
  %869 = vrot.lane.b32.xlu0 %v868, 64
  %v870 = vpop.permute.xlu0 %869
  %v872 = vadd.f32 %v704, %v870
  %v873 = vsub.f32 %v823, %v717
  %v875 = vrot.slane %v873, 2
  %876 = vrot.lane.b32.xlu0 %v875, 96
  %v877 = vpop.permute.xlu0 %876
  %v879 = vmul.f32 %v374, %v877
  %v881 = vrot.slane %v879, 6
  %882 = vrot.lane.b32.xlu0 %v881, 32
  %v883 = vpop.permute.xlu0 %882
  %v885 = vadd.f32 %v717, %v883
  %886 = vrot.lane.b32.xlu0 %v753, 64
  %v887 = vpop.permute.xlu0 %886
  %v889 = vsub.f32 %v859, %v887
  %v890 = vmul.f32 %v383, %v889
  %v892 = vrot.slane %v890, 2
  %893 = vrot.lane.b32.xlu0 %v892, 64
  %v894 = vpop.permute.xlu0 %893
  %v896 = vadd.f32 %v731, %v894
  %v897 = vsub.f32 %v853, %v841
  %v898 = vmul.f32 %v383, %v897
  %v900 = vrot.slane %v898, 2
  %901 = vrot.lane.b32.xlu0 %v900, 96
  %v902 = vpop.permute.xlu0 %901
  %v904 = vadd.f32 %v742, %v902
  %906 = vrot.lane.b32.xlu0 %v872, 64
  %v907 = vpop.permute.xlu0 %906
  %909 = vst.msk [vmem:[#allocation2 + $0x6] sm:$0x3] %vm403, %v907
  %911 = vrot.lane.b32.xlu0 %v896, 32
  %v912 = vpop.permute.xlu0 %911
  %914 = vst.msk [vmem:[#allocation2 + $0x12] sm:$0xc0] %vm409, %v912
  %v915 = vrot.slane %v896, 6
  %916 = vrot.lane.b32.xlu0 %v915, 32
  %v917 = vpop.permute.xlu0 %916
  %v919 = vsel %vm415, %v907, %v917
  %v920 = vpack.c.bf16 %v919, %v919
  %v922 = vsel %vm75, %v920, 0
  %924 = vmatprep.subr.bf16.mxu0 %v259
  %925 = vmatpush1.bf16.msra.mxu0 %v258
  %926 = vmatprep.subr.bf16.mxu0 %v261
  %927 = vmatpush1.bf16.msra.mxu0 %v260
  %928 = vmatprep.subr.bf16.mxu0 %v263
  %929 = vmatpush1.bf16.msra.mxu0 %v262
  %930 = vmatprep.subr.bf16.mxu0 %v265
  %931 = vmatpush1.bf16.msra.mxu0 %v264
  %932 = vmatprep.subr.bf16.mxu0 0
  %933 = vmatpush1.bf16.msra.mxu0 0
  %934 = vmatprep.subr.bf16.mxu0 0
  %935 = vmatpush1.bf16.msra.mxu0 0
  %936 = vmatprep.subr.bf16.mxu0 0
  %937 = vmatpush1.bf16.msra.mxu0 0
  %938 = vmatprep.subr.bf16.mxu0 0
  %939 = vmatpush1.bf16.msra.mxu0 0
  %940 = vmatprep.subr.bf16.mxu0 0
  %941 = vmatpush1.bf16.msra.mxu0 0
  %942 = vmatprep.subr.bf16.mxu0 0
  %943 = vmatpush1.bf16.msra.mxu0 0
  %944 = vmatprep.subr.bf16.mxu0 0
  %945 = vmatpush1.bf16.msra.mxu0 0
  %946 = vmatprep.subr.bf16.mxu0 0
  %947 = vmatpush1.bf16.msra.mxu0 0
  %948 = vmatprep.subr.bf16.mxu0 0
  %949 = vmatpush1.bf16.msra.mxu0 0
  %950 = vmatprep.subr.bf16.mxu0 0
  %951 = vmatpush1.bf16.msra.mxu0 0
  %952 = vmatprep.subr.bf16.mxu0 0
  %953 = vmatpush1.bf16.msra.mxu0 0
  %954 = vmatprep.subr.bf16.mxu0 0
  %955 = vmatpush1.bf16.msra.mxu0 0
  %956 = vmatprep.mubr.bf16.mxu0 0
  %957 = vmatmul.mubr.bf16.gmra.mrb[0].mxu0 %v922
  %v958 = vpop.f32.mrb[0].mxu0
  %v959 = vadd.f32 0.0, %v958
  %v960 = vpop.f32.mrb[0].mxu0
  %v961 = vadd.f32 0.0, %v960
  %v962 = vpop.f32.mrb[0].mxu0
  %v963 = vpop.f32.mrb[0].mxu0
  %964 = vdwg.mxu0
  %v965 = vadd.f32 %v959, %v207
  %v966 = vxor.u32 %v965, 2147483648
  %v967 = vmul.f32 %v966, 1.442695
  %v968 = vpow.pop %v967
  %v969 = vadd.f32 %v968, 1.0
  %v970 = vrcp.pop %v969
  %v971 = vmul.f32 1.0, %v970
  %v972 = vtanh.pop %v965
  %v973 = vmul.f32 %v971, %v885
  %975 = vrot.lane.b32.xlu0 %v972, 32
  %v976 = vpop.permute.xlu0 %975
  %v978 = vmul.f32 %v971, %v976
  %980 = vrot.lane.b32.xlu0 %v978, 32
  %v981 = vpop.permute.xlu0 %980
  %v983 = vadd.f32 %v973, %v981
  %v984 = vtanh.pop %v983
  %986 = vrot.lane.b32.xlu0 %v984, 32
  %v987 = vpop.permute.xlu0 %986
  %v989 = vmul.f32 %v971, %v987
  %v991 = vrot.slane %v215, 6
  %v993 = vadd.f32 %v961, %v991
  %v994 = vxor.u32 %v993, 2147483648
  %v995 = vmul.f32 %v994, 1.442695
  %v996 = vpow.pop %v995
  %v997 = vadd.f32 %v996, 1.0
  %v998 = vrcp.pop %v997
  %v999 = vmul.f32 1.0, %v998
  %v1000 = vtanh.pop %v993
  %v1002 = vrot.slane %v904, 6
  %1003 = vrot.lane.b32.xlu0 %v1002, 32
  %v1004 = vpop.permute.xlu0 %1003
  %v1006 = vmul.f32 %v999, %v1004
  %1008 = vrot.lane.b32.xlu0 %v1000, 32
  %v1009 = vpop.permute.xlu0 %1008
  %v1011 = vmul.f32 %v999, %v1009
  %1013 = vrot.lane.b32.xlu0 %v1011, 32
  %v1014 = vpop.permute.xlu0 %1013
  %v1016 = vadd.f32 %v1006, %v1014
  %v1017 = vtanh.pop %v1016
  %1019 = vrot.lane.b32.xlu0 %v1017, 32
  %v1020 = vpop.permute.xlu0 %1019
  %v1022 = vmul.f32 %v999, %v1020
  %v1023 = vsub.f32 %v989, %v872
  %1025 = vset.pattern.permute.xlu0 0
  %1026 = vperm.xlu0 %1025, %v222
  %v1027 = vpop.permute.xlu0 %1026
  %v1029 = vmul.f32 %v1027, %v1023
  %v1030 = vadd.f32 %v872, %v1029
  %v1031 = vsub.f32 %v983, %v885
  %v1032 = vmul.f32 %v1027, %v1031
  %v1033 = vadd.f32 %v885, %v1032
  %1034 = vrot.lane.b32.xlu0 %v915, 64
  %v1035 = vpop.permute.xlu0 %1034
  %v1037 = vsub.f32 %v1022, %v1035
  %1039 = vset.pattern.permute.xlu0 0
  %1040 = vperm.xlu0 %1039, %v223
  %v1041 = vpop.permute.xlu0 %1040
  %v1044 = vrot.slane %v1037, 2
  %1045 = vrot.lane.b32.xlu0 %v1044, 64
  %v1046 = vpop.permute.xlu0 %1045
  %v1048 = vmul.f32 %v1041, %v1046
  %v1049 = vadd.f32 %v896, %v1048
  %v1050 = vsub.f32 %v1016, %v1004
  %v1052 = vrot.slane %v1050, 2
  %1053 = vrot.lane.b32.xlu0 %v1052, 96
  %v1054 = vpop.permute.xlu0 %1053
  %v1056 = vmul.f32 %v1041, %v1054
  %v1057 = vadd.f32 %v904, %v1056
  %1059 = vrot.lane.b32.xlu0 %v1030, 64
  %v1060 = vpop.permute.xlu0 %1059
  %1062 = vst.msk [vmem:[#allocation2 + $0x8] sm:$0x3] %vm403, %v1060
  %1064 = vrot.lane.b32.xlu0 %v1049, 32
  %v1065 = vpop.permute.xlu0 %1064
  %1067 = vst.msk [vmem:[#allocation2 + $0x10] sm:$0xc0] %vm409, %v1065
  %v1068 = vrot.slane %v1049, 6
  %1069 = vrot.lane.b32.xlu0 %v1068, 32
  %v1070 = vpop.permute.xlu0 %1069
  %v1072 = vsel %vm415, %v1060, %v1070
  %v1073 = vpack.c.bf16 %v1072, %v1072
  %v1075 = vsel %vm75, %v1073, 0
  %1077 = vmatprep.subr.bf16.mxu0 %v259
  %1078 = vmatpush1.bf16.msra.mxu0 %v258
  %1079 = vmatprep.subr.bf16.mxu0 %v261
  %1080 = vmatpush1.bf16.msra.mxu0 %v260
  %1081 = vmatprep.subr.bf16.mxu0 %v263
  %1082 = vmatpush1.bf16.msra.mxu0 %v262
  %1083 = vmatprep.subr.bf16.mxu0 %v265
  %1084 = vmatpush1.bf16.msra.mxu0 %v264
  %1085 = vmatprep.subr.bf16.mxu0 0
  %1086 = vmatpush1.bf16.msra.mxu0 0
  %1087 = vmatprep.subr.bf16.mxu0 0
  %1088 = vmatpush1.bf16.msra.mxu0 0
  %1089 = vmatprep.subr.bf16.mxu0 0
  %1090 = vmatpush1.bf16.msra.mxu0 0
  %1091 = vmatprep.subr.bf16.mxu0 0
  %1092 = vmatpush1.bf16.msra.mxu0 0
  %1093 = vmatprep.subr.bf16.mxu0 0
  %1094 = vmatpush1.bf16.msra.mxu0 0
  %1095 = vmatprep.subr.bf16.mxu0 0
  %1096 = vmatpush1.bf16.msra.mxu0 0
  %1097 = vmatprep.subr.bf16.mxu0 0
  %1098 = vmatpush1.bf16.msra.mxu0 0
  %1099 = vmatprep.subr.bf16.mxu0 0
  %1100 = vmatpush1.bf16.msra.mxu0 0
  %1101 = vmatprep.subr.bf16.mxu0 0
  %1102 = vmatpush1.bf16.msra.mxu0 0
  %1103 = vmatprep.subr.bf16.mxu0 0
  %1104 = vmatpush1.bf16.msra.mxu0 0
  %1105 = vmatprep.subr.bf16.mxu0 0
  %1106 = vmatpush1.bf16.msra.mxu0 0
  %1107 = vmatprep.subr.bf16.mxu0 0
  %1108 = vmatpush1.bf16.msra.mxu0 0
  %1109 = vmatprep.mubr.bf16.mxu0 0
  %1110 = vmatmul.mubr.bf16.gmra.mrb[0].mxu0 %v1075
  %v1111 = vpop.f32.mrb[0].mxu0
  %v1112 = vadd.f32 0.0, %v1111
  %v1113 = vpop.f32.mrb[0].mxu0
  %v1114 = vadd.f32 0.0, %v1113
  %v1115 = vpop.f32.mrb[0].mxu0
  %v1116 = vpop.f32.mrb[0].mxu0
  %1117 = vdwg.mxu0
  %v1119 = vrot.slane %v207, 2
  %v1121 = vadd.f32 %v1112, %v1119
  %v1122 = vxor.u32 %v1121, 2147483648
  %v1123 = vmul.f32 %v1122, 1.442695
  %v1124 = vpow.pop %v1123
  %v1125 = vadd.f32 %v1124, 1.0
  %v1126 = vrcp.pop %v1125
  %v1127 = vmul.f32 1.0, %v1126
  %v1128 = vtanh.pop %v1121
  %v1129 = vmul.f32 %v1127, %v1033
  %1131 = vrot.lane.b32.xlu0 %v1128, 32
  %v1132 = vpop.permute.xlu0 %1131
  %v1134 = vmul.f32 %v1127, %v1132
  %1136 = vrot.lane.b32.xlu0 %v1134, 32
  %v1137 = vpop.permute.xlu0 %1136
  %v1139 = vadd.f32 %v1129, %v1137
  %v1140 = vtanh.pop %v1139
  %1142 = vrot.lane.b32.xlu0 %v1140, 32
  %v1143 = vpop.permute.xlu0 %1142
  %v1145 = vmul.f32 %v1127, %v1143
  %v1146 = vrot.slane %v215, 4
  %v1148 = vadd.f32 %v1114, %v1146
  %v1149 = vxor.u32 %v1148, 2147483648
  %v1150 = vmul.f32 %v1149, 1.442695
  %v1151 = vpow.pop %v1150
  %v1152 = vadd.f32 %v1151, 1.0
  %v1153 = vrcp.pop %v1152
  %v1154 = vmul.f32 1.0, %v1153
  %v1155 = vtanh.pop %v1148
  %v1157 = vrot.slane %v1057, 6
  %1158 = vrot.lane.b32.xlu0 %v1157, 32
  %v1159 = vpop.permute.xlu0 %1158
  %v1161 = vmul.f32 %v1154, %v1159
  %1163 = vrot.lane.b32.xlu0 %v1155, 32
  %v1164 = vpop.permute.xlu0 %1163
  %v1166 = vmul.f32 %v1154, %v1164
  %1168 = vrot.lane.b32.xlu0 %v1166, 32
  %v1169 = vpop.permute.xlu0 %1168
  %v1171 = vadd.f32 %v1161, %v1169
  %v1172 = vtanh.pop %v1171
  %1174 = vrot.lane.b32.xlu0 %v1172, 32
  %v1175 = vpop.permute.xlu0 %1174
  %v1177 = vmul.f32 %v1154, %v1175
  %v1178 = vsub.f32 %v1145, %v1030
  %v1180 = vrot.slane %v1178, 6
  %1181 = vrot.lane.b32.xlu0 %v1180, 64
  %v1182 = vpop.permute.xlu0 %1181
  %v1184 = vmul.f32 %v1027, %v1182
  %v1186 = vrot.slane %v1184, 2
  %1187 = vrot.lane.b32.xlu0 %v1186, 64
  %v1188 = vpop.permute.xlu0 %1187
  %v1190 = vadd.f32 %v1030, %v1188
  %v1191 = vsub.f32 %v1139, %v1033
  %v1193 = vrot.slane %v1191, 6
  %1194 = vrot.lane.b32.xlu0 %v1193, 96
  %v1195 = vpop.permute.xlu0 %1194
  %v1197 = vmul.f32 %v1027, %v1195
  %v1199 = vrot.slane %v1197, 2
  %1200 = vrot.lane.b32.xlu0 %v1199, 32
  %v1201 = vpop.permute.xlu0 %1200
  %v1203 = vadd.f32 %v1033, %v1201
  %1204 = vrot.lane.b32.xlu0 %v1068, 64
  %v1205 = vpop.permute.xlu0 %1204
  %v1207 = vsub.f32 %v1177, %v1205
  %v1209 = vrot.slane %v1207, 4
  %1210 = vrot.lane.b32.xlu0 %v1209, 64
  %v1211 = vpop.permute.xlu0 %1210
  %v1213 = vmul.f32 %v1041, %v1211
  %v1215 = vrot.slane %v1213, 6
  %v1217 = vadd.f32 %v1049, %v1215
  %v1218 = vsub.f32 %v1171, %v1159
  %v1220 = vrot.slane %v1218, 4
  %1221 = vrot.lane.b32.xlu0 %v1220, 96
  %v1222 = vpop.permute.xlu0 %1221
  %v1224 = vmul.f32 %v1041, %v1222
  %v1226 = vrot.slane %v1224, 6
  %v1228 = vadd.f32 %v1057, %v1226
  %1230 = vrot.lane.b32.xlu0 %v1190, 64
  %v1231 = vpop.permute.xlu0 %1230
  %1233 = vst.msk [vmem:[#allocation2 + $0xa] sm:$0x3] %vm403, %v1231
  %1235 = vrot.lane.b32.xlu0 %v1217, 32
  %v1236 = vpop.permute.xlu0 %1235
  %1238 = vst.msk [vmem:[#allocation2 + $0xe] sm:$0xc0] %vm409, %v1236
  %v1239 = vrot.slane %v1217, 6
  %1240 = vrot.lane.b32.xlu0 %v1239, 32
  %v1241 = vpop.permute.xlu0 %1240
  %v1243 = vsel %vm415, %v1231, %v1241
  %v1244 = vpack.c.bf16 %v1243, %v1243
  %v1246 = vsel %vm75, %v1244, 0
  %1248 = vmatprep.subr.bf16.mxu0 %v259
  %1249 = vmatpush1.bf16.msra.mxu0 %v258
  %1250 = vmatprep.subr.bf16.mxu0 %v261
  %1251 = vmatpush1.bf16.msra.mxu0 %v260
  %1252 = vmatprep.subr.bf16.mxu0 %v263
  %1253 = vmatpush1.bf16.msra.mxu0 %v262
  %1254 = vmatprep.subr.bf16.mxu0 %v265
  %1255 = vmatpush1.bf16.msra.mxu0 %v264
  %1256 = vmatprep.subr.bf16.mxu0 0
  %1257 = vmatpush1.bf16.msra.mxu0 0
  %1258 = vmatprep.subr.bf16.mxu0 0
  %1259 = vmatpush1.bf16.msra.mxu0 0
  %1260 = vmatprep.subr.bf16.mxu0 0
  %1261 = vmatpush1.bf16.msra.mxu0 0
  %1262 = vmatprep.subr.bf16.mxu0 0
  %1263 = vmatpush1.bf16.msra.mxu0 0
  %1264 = vmatprep.subr.bf16.mxu0 0
  %1265 = vmatpush1.bf16.msra.mxu0 0
  %1266 = vmatprep.subr.bf16.mxu0 0
  %1267 = vmatpush1.bf16.msra.mxu0 0
  %1268 = vmatprep.subr.bf16.mxu0 0
  %1269 = vmatpush1.bf16.msra.mxu0 0
  %1270 = vmatprep.subr.bf16.mxu0 0
  %1271 = vmatpush1.bf16.msra.mxu0 0
  %1272 = vmatprep.subr.bf16.mxu0 0
  %1273 = vmatpush1.bf16.msra.mxu0 0
  %1274 = vmatprep.subr.bf16.mxu0 0
  %1275 = vmatpush1.bf16.msra.mxu0 0
  %1276 = vmatprep.subr.bf16.mxu0 0
  %1277 = vmatpush1.bf16.msra.mxu0 0
  %1278 = vmatprep.subr.bf16.mxu0 0
  %1279 = vmatpush1.bf16.msra.mxu0 0
  %1280 = vmatprep.mubr.bf16.mxu0 0
  %1281 = vmatmul.mubr.bf16.gmra.mrb[0].mxu0 %v1246
  %v1282 = vpop.f32.mrb[0].mxu0
  %v1283 = vadd.f32 0.0, %v1282
  %v1284 = vpop.f32.mrb[0].mxu0
  %v1285 = vadd.f32 0.0, %v1284
  %v1286 = vpop.f32.mrb[0].mxu0
  %v1287 = vpop.f32.mrb[0].mxu0
  %1288 = vdwg.mxu0
  %v1289 = vrot.slane %v207, 4
  %v1291 = vadd.f32 %v1283, %v1289
  %v1292 = vxor.u32 %v1291, 2147483648
  %v1293 = vmul.f32 %v1292, 1.442695
  %v1294 = vpow.pop %v1293
  %v1295 = vadd.f32 %v1294, 1.0
  %v1296 = vrcp.pop %v1295
  %v1297 = vmul.f32 1.0, %v1296
  %v1298 = vtanh.pop %v1291
  %v1299 = vmul.f32 %v1297, %v1203
  %1301 = vrot.lane.b32.xlu0 %v1298, 32
  %v1302 = vpop.permute.xlu0 %1301
  %v1304 = vmul.f32 %v1297, %v1302
  %1306 = vrot.lane.b32.xlu0 %v1304, 32
  %v1307 = vpop.permute.xlu0 %1306
  %v1309 = vadd.f32 %v1299, %v1307
  %v1310 = vtanh.pop %v1309
  %1312 = vrot.lane.b32.xlu0 %v1310, 32
  %v1313 = vpop.permute.xlu0 %1312
  %v1315 = vmul.f32 %v1297, %v1313
  %v1316 = vrot.slane %v215, 2
  %v1318 = vadd.f32 %v1285, %v1316
  %v1319 = vxor.u32 %v1318, 2147483648
  %v1320 = vmul.f32 %v1319, 1.442695
  %v1321 = vpow.pop %v1320
  %v1322 = vadd.f32 %v1321, 1.0
  %v1323 = vrcp.pop %v1322
  %v1324 = vmul.f32 1.0, %v1323
  %v1325 = vtanh.pop %v1318
  %v1327 = vrot.slane %v1228, 6
  %1328 = vrot.lane.b32.xlu0 %v1327, 32
  %v1329 = vpop.permute.xlu0 %1328
  %v1331 = vmul.f32 %v1324, %v1329
  %1333 = vrot.lane.b32.xlu0 %v1325, 32
  %v1334 = vpop.permute.xlu0 %1333
  %v1336 = vmul.f32 %v1324, %v1334
  %1338 = vrot.lane.b32.xlu0 %v1336, 32
  %v1339 = vpop.permute.xlu0 %1338
  %v1341 = vadd.f32 %v1331, %v1339
  %v1342 = vtanh.pop %v1341
  %1344 = vrot.lane.b32.xlu0 %v1342, 32
  %v1345 = vpop.permute.xlu0 %1344
  %v1347 = vmul.f32 %v1324, %v1345
  %v1348 = vsub.f32 %v1315, %v1190
  %v1350 = vrot.slane %v1348, 4
  %1351 = vrot.lane.b32.xlu0 %v1350, 64
  %v1352 = vpop.permute.xlu0 %1351
  %v1354 = vmul.f32 %v1027, %v1352
  %v1356 = vrot.slane %v1354, 4
  %1357 = vrot.lane.b32.xlu0 %v1356, 64
  %v1358 = vpop.permute.xlu0 %1357
  %v1360 = vadd.f32 %v1190, %v1358
  %v1361 = vsub.f32 %v1309, %v1203
  %v1363 = vrot.slane %v1361, 4
  %1364 = vrot.lane.b32.xlu0 %v1363, 96
  %v1365 = vpop.permute.xlu0 %1364
  %v1367 = vmul.f32 %v1027, %v1365
  %v1369 = vrot.slane %v1367, 4
  %1370 = vrot.lane.b32.xlu0 %v1369, 32
  %v1371 = vpop.permute.xlu0 %1370
  %v1373 = vadd.f32 %v1203, %v1371
  %1374 = vrot.lane.b32.xlu0 %v1239, 64
  %v1375 = vpop.permute.xlu0 %1374
  %v1377 = vsub.f32 %v1347, %v1375
  %v1379 = vrot.slane %v1377, 6
  %1380 = vrot.lane.b32.xlu0 %v1379, 64
  %v1381 = vpop.permute.xlu0 %1380
  %v1383 = vmul.f32 %v1041, %v1381
  %v1385 = vrot.slane %v1383, 4
  %v1387 = vadd.f32 %v1217, %v1385
  %v1388 = vsub.f32 %v1341, %v1329
  %v1390 = vrot.slane %v1388, 6
  %1391 = vrot.lane.b32.xlu0 %v1390, 96
  %v1392 = vpop.permute.xlu0 %1391
  %v1394 = vmul.f32 %v1041, %v1392
  %v1396 = vrot.slane %v1394, 4
  %v1398 = vadd.f32 %v1228, %v1396
  %1400 = vrot.lane.b32.xlu0 %v1360, 64
  %v1401 = vpop.permute.xlu0 %1400
  %1403 = vst.msk [vmem:[#allocation2 + $0xc] sm:$0x3] %vm403, %v1401
  %1405 = vrot.lane.b32.xlu0 %v1387, 32
  %v1406 = vpop.permute.xlu0 %1405
  %1408 = vst.msk [vmem:[#allocation2 + $0xc] sm:$0xc0] %vm409, %v1406
  %v1409 = vrot.slane %v1387, 6
  %1410 = vrot.lane.b32.xlu0 %v1409, 32
  %v1411 = vpop.permute.xlu0 %1410
  %v1413 = vsel %vm415, %v1401, %v1411
  %v1414 = vpack.c.bf16 %v1413, %v1413
  %v1416 = vsel %vm75, %v1414, 0
  %1418 = vmatprep.subr.bf16.mxu0 %v259
  %1419 = vmatpush1.bf16.msra.mxu0 %v258
  %1420 = vmatprep.subr.bf16.mxu0 %v261
  %1421 = vmatpush1.bf16.msra.mxu0 %v260
  %1422 = vmatprep.subr.bf16.mxu0 %v263
  %1423 = vmatpush1.bf16.msra.mxu0 %v262
  %1424 = vmatprep.subr.bf16.mxu0 %v265
  %1425 = vmatpush1.bf16.msra.mxu0 %v264
  %1426 = vmatprep.subr.bf16.mxu0 0
  %1427 = vmatpush1.bf16.msra.mxu0 0
  %1428 = vmatprep.subr.bf16.mxu0 0
  %1429 = vmatpush1.bf16.msra.mxu0 0
  %1430 = vmatprep.subr.bf16.mxu0 0
  %1431 = vmatpush1.bf16.msra.mxu0 0
  %1432 = vmatprep.subr.bf16.mxu0 0
  %1433 = vmatpush1.bf16.msra.mxu0 0
  %1434 = vmatprep.subr.bf16.mxu0 0
  %1435 = vmatpush1.bf16.msra.mxu0 0
  %1436 = vmatprep.subr.bf16.mxu0 0
  %1437 = vmatpush1.bf16.msra.mxu0 0
  %1438 = vmatprep.subr.bf16.mxu0 0
  %1439 = vmatpush1.bf16.msra.mxu0 0
  %1440 = vmatprep.subr.bf16.mxu0 0
  %1441 = vmatpush1.bf16.msra.mxu0 0
  %1442 = vmatprep.subr.bf16.mxu0 0
  %1443 = vmatpush1.bf16.msra.mxu0 0
  %1444 = vmatprep.subr.bf16.mxu0 0
  %1445 = vmatpush1.bf16.msra.mxu0 0
  %1446 = vmatprep.subr.bf16.mxu0 0
  %1447 = vmatpush1.bf16.msra.mxu0 0
  %1448 = vmatprep.subr.bf16.mxu0 0
  %1449 = vmatpush1.bf16.msra.mxu0 0
  %1450 = vmatprep.mubr.bf16.mxu0 0
  %1451 = vmatmul.mubr.bf16.gmra.mrb[0].mxu0 %v1416
  %v1452 = vpop.f32.mrb[0].mxu0
  %v1453 = vadd.f32 0.0, %v1452
  %v1454 = vpop.f32.mrb[0].mxu0
  %v1455 = vadd.f32 0.0, %v1454
  %v1456 = vpop.f32.mrb[0].mxu0
  %v1457 = vpop.f32.mrb[0].mxu0
  %1458 = vdwg.mxu0
  %v1459 = vrot.slane %v207, 6
  %v1461 = vadd.f32 %v1453, %v1459
  %v1462 = vxor.u32 %v1461, 2147483648
  %v1463 = vmul.f32 %v1462, 1.442695
  %v1464 = vpow.pop %v1463
  %v1465 = vadd.f32 %v1464, 1.0
  %v1466 = vrcp.pop %v1465
  %v1467 = vmul.f32 1.0, %v1466
  %v1468 = vtanh.pop %v1461
  %v1469 = vmul.f32 %v1467, %v1373
  %1471 = vrot.lane.b32.xlu0 %v1468, 32
  %v1472 = vpop.permute.xlu0 %1471
  %v1474 = vmul.f32 %v1467, %v1472
  %1476 = vrot.lane.b32.xlu0 %v1474, 32
  %v1477 = vpop.permute.xlu0 %1476
  %v1479 = vadd.f32 %v1469, %v1477
  %v1480 = vtanh.pop %v1479
  %1482 = vrot.lane.b32.xlu0 %v1480, 32
  %v1483 = vpop.permute.xlu0 %1482
  %v1485 = vmul.f32 %v1467, %v1483
  %v1486 = vadd.f32 %v1455, %v215
  %v1487 = vxor.u32 %v1486, 2147483648
  %v1488 = vmul.f32 %v1487, 1.442695
  %v1489 = vpow.pop %v1488
  %v1490 = vadd.f32 %v1489, 1.0
  %v1491 = vrcp.pop %v1490
  %v1492 = vmul.f32 1.0, %v1491
  %v1493 = vtanh.pop %v1486
  %v1495 = vrot.slane %v1398, 6
  %1496 = vrot.lane.b32.xlu0 %v1495, 32
  %v1497 = vpop.permute.xlu0 %1496
  %v1499 = vmul.f32 %v1492, %v1497
  %1501 = vrot.lane.b32.xlu0 %v1493, 32
  %v1502 = vpop.permute.xlu0 %1501
  %v1504 = vmul.f32 %v1492, %v1502
  %1506 = vrot.lane.b32.xlu0 %v1504, 32
  %v1507 = vpop.permute.xlu0 %1506
  %v1509 = vadd.f32 %v1499, %v1507
  %v1510 = vtanh.pop %v1509
  %1512 = vrot.lane.b32.xlu0 %v1510, 32
  %v1513 = vpop.permute.xlu0 %1512
  %v1515 = vmul.f32 %v1492, %v1513
  %v1516 = vsub.f32 %v1485, %v1360
  %v1518 = vrot.slane %v1516, 2
  %1519 = vrot.lane.b32.xlu0 %v1518, 64
  %v1520 = vpop.permute.xlu0 %1519
  %v1522 = vmul.f32 %v1027, %v1520
  %v1524 = vrot.slane %v1522, 6
  %1525 = vrot.lane.b32.xlu0 %v1524, 64
  %v1526 = vpop.permute.xlu0 %1525
  %v1528 = vadd.f32 %v1360, %v1526
  %v1529 = vsub.f32 %v1479, %v1373
  %v1531 = vrot.slane %v1529, 2
  %1532 = vrot.lane.b32.xlu0 %v1531, 96
  %v1533 = vpop.permute.xlu0 %1532
  %v1535 = vmul.f32 %v1027, %v1533
  %v1537 = vrot.slane %v1535, 6
  %1538 = vrot.lane.b32.xlu0 %v1537, 32
  %v1539 = vpop.permute.xlu0 %1538
  %v1541 = vadd.f32 %v1373, %v1539
  %1542 = vrot.lane.b32.xlu0 %v1409, 64
  %v1543 = vpop.permute.xlu0 %1542
  %v1545 = vsub.f32 %v1515, %v1543
  %v1546 = vmul.f32 %v1041, %v1545
  %v1548 = vrot.slane %v1546, 2
  %1549 = vrot.lane.b32.xlu0 %v1548, 64
  %v1550 = vpop.permute.xlu0 %1549
  %v1552 = vadd.f32 %v1387, %v1550
  %v1553 = vsub.f32 %v1509, %v1497
  %v1554 = vmul.f32 %v1041, %v1553
  %v1556 = vrot.slane %v1554, 2
  %1557 = vrot.lane.b32.xlu0 %v1556, 96
  %v1558 = vpop.permute.xlu0 %1557
  %v1560 = vadd.f32 %v1398, %v1558
  %1562 = vrot.lane.b32.xlu0 %v1528, 64
  %v1563 = vpop.permute.xlu0 %1562
  %1565 = vst.msk [vmem:[#allocation2 + $0xe] sm:$0x3] %vm403, %v1563
  %1567 = vrot.lane.b32.xlu0 %v1552, 32
  %v1568 = vpop.permute.xlu0 %1567
  %1570 = vst.msk [vmem:[#allocation2 + $0xa] sm:$0xc0] %vm409, %v1568
  %v1571 = vrot.slane %v1552, 6
  %1572 = vrot.lane.b32.xlu0 %v1571, 32
  %v1573 = vpop.permute.xlu0 %1572
  %v1575 = vsel %vm415, %v1563, %v1573
  %v1576 = vpack.c.bf16 %v1575, %v1575
  %v1578 = vsel %vm75, %v1576, 0
  %1580 = vmatprep.subr.bf16.mxu0 %v259
  %1581 = vmatpush1.bf16.msra.mxu0 %v258
  %1582 = vmatprep.subr.bf16.mxu0 %v261
  %1583 = vmatpush1.bf16.msra.mxu0 %v260
  %1584 = vmatprep.subr.bf16.mxu0 %v263
  %1585 = vmatpush1.bf16.msra.mxu0 %v262
  %1586 = vmatprep.subr.bf16.mxu0 %v265
  %1587 = vmatpush1.bf16.msra.mxu0 %v264
  %1588 = vmatprep.subr.bf16.mxu0 0
  %1589 = vmatpush1.bf16.msra.mxu0 0
  %1590 = vmatprep.subr.bf16.mxu0 0
  %1591 = vmatpush1.bf16.msra.mxu0 0
  %1592 = vmatprep.subr.bf16.mxu0 0
  %1593 = vmatpush1.bf16.msra.mxu0 0
  %1594 = vmatprep.subr.bf16.mxu0 0
  %1595 = vmatpush1.bf16.msra.mxu0 0
  %1596 = vmatprep.subr.bf16.mxu0 0
  %1597 = vmatpush1.bf16.msra.mxu0 0
  %1598 = vmatprep.subr.bf16.mxu0 0
  %1599 = vmatpush1.bf16.msra.mxu0 0
  %1600 = vmatprep.subr.bf16.mxu0 0
  %1601 = vmatpush1.bf16.msra.mxu0 0
  %1602 = vmatprep.subr.bf16.mxu0 0
  %1603 = vmatpush1.bf16.msra.mxu0 0
  %1604 = vmatprep.subr.bf16.mxu0 0
  %1605 = vmatpush1.bf16.msra.mxu0 0
  %1606 = vmatprep.subr.bf16.mxu0 0
  %1607 = vmatpush1.bf16.msra.mxu0 0
  %1608 = vmatprep.subr.bf16.mxu0 0
  %1609 = vmatpush1.bf16.msra.mxu0 0
  %1610 = vmatprep.subr.bf16.mxu0 0
  %1611 = vmatpush1.bf16.msra.mxu0 0
  %1612 = vmatprep.mubr.bf16.mxu0 0
  %1613 = vmatmul.mubr.bf16.gmra.mrb[0].mxu0 %v1578
  %v1614 = vpop.f32.mrb[0].mxu0
  %v1615 = vadd.f32 0.0, %v1614
  %v1616 = vpop.f32.mrb[0].mxu0
  %v1617 = vadd.f32 0.0, %v1616
  %v1618 = vpop.f32.mrb[0].mxu0
  %v1619 = vpop.f32.mrb[0].mxu0
  %1620 = vdwg.mxu0
  %v1621 = vadd.f32 %v1615, %v213
  %v1622 = vxor.u32 %v1621, 2147483648
  %v1623 = vmul.f32 %v1622, 1.442695
  %v1624 = vpow.pop %v1623
  %v1625 = vadd.f32 %v1624, 1.0
  %v1626 = vrcp.pop %v1625
  %v1627 = vmul.f32 1.0, %v1626
  %v1628 = vtanh.pop %v1621
  %v1629 = vmul.f32 %v1627, %v1541
  %1631 = vrot.lane.b32.xlu0 %v1628, 32
  %v1632 = vpop.permute.xlu0 %1631
  %v1634 = vmul.f32 %v1627, %v1632
  %1636 = vrot.lane.b32.xlu0 %v1634, 32
  %v1637 = vpop.permute.xlu0 %1636
  %v1639 = vadd.f32 %v1629, %v1637
  %v1640 = vtanh.pop %v1639
  %1642 = vrot.lane.b32.xlu0 %v1640, 32
  %v1643 = vpop.permute.xlu0 %1642
  %v1645 = vmul.f32 %v1627, %v1643
  %v1647 = vrot.slane %v209, 6
  %v1649 = vadd.f32 %v1617, %v1647
  %v1650 = vxor.u32 %v1649, 2147483648
  %v1651 = vmul.f32 %v1650, 1.442695
  %v1652 = vpow.pop %v1651
  %v1653 = vadd.f32 %v1652, 1.0
  %v1654 = vrcp.pop %v1653
  %v1655 = vmul.f32 1.0, %v1654
  %v1656 = vtanh.pop %v1649
  %v1658 = vrot.slane %v1560, 6
  %1659 = vrot.lane.b32.xlu0 %v1658, 32
  %v1660 = vpop.permute.xlu0 %1659
  %v1662 = vmul.f32 %v1655, %v1660
  %1664 = vrot.lane.b32.xlu0 %v1656, 32
  %v1665 = vpop.permute.xlu0 %1664
  %v1667 = vmul.f32 %v1655, %v1665
  %1669 = vrot.lane.b32.xlu0 %v1667, 32
  %v1670 = vpop.permute.xlu0 %1669
  %v1672 = vadd.f32 %v1662, %v1670
  %v1673 = vtanh.pop %v1672
  %1675 = vrot.lane.b32.xlu0 %v1673, 32
  %v1676 = vpop.permute.xlu0 %1675
  %v1678 = vmul.f32 %v1655, %v1676
  %v1679 = vsub.f32 %v1645, %v1528
  %v1680 = vmul.f32 %v1041, %v1679
  %v1681 = vadd.f32 %v1528, %v1680
  %v1682 = vsub.f32 %v1639, %v1541
  %v1683 = vmul.f32 %v1041, %v1682
  %v1684 = vadd.f32 %v1541, %v1683
  %1685 = vrot.lane.b32.xlu0 %v1571, 64
  %v1686 = vpop.permute.xlu0 %1685
  %v1688 = vsub.f32 %v1678, %v1686
  %v1690 = vrot.slane %v1688, 2
  %1691 = vrot.lane.b32.xlu0 %v1690, 64
  %v1692 = vpop.permute.xlu0 %1691
  %v1694 = vmul.f32 %v1027, %v1692
  %v1695 = vadd.f32 %v1552, %v1694
  %v1696 = vsub.f32 %v1672, %v1660
  %v1698 = vrot.slane %v1696, 2
  %1699 = vrot.lane.b32.xlu0 %v1698, 96
  %v1700 = vpop.permute.xlu0 %1699
  %v1702 = vmul.f32 %v1027, %v1700
  %v1703 = vadd.f32 %v1560, %v1702
  %1705 = vrot.lane.b32.xlu0 %v1681, 64
  %v1706 = vpop.permute.xlu0 %1705
  %1708 = vst.msk [vmem:[#allocation2 + $0x10] sm:$0x3] %vm403, %v1706
  %1710 = vrot.lane.b32.xlu0 %v1695, 32
  %v1711 = vpop.permute.xlu0 %1710
  %1713 = vst.msk [vmem:[#allocation2 + $0x8] sm:$0xc0] %vm409, %v1711
  %v1714 = vrot.slane %v1695, 6
  %1715 = vrot.lane.b32.xlu0 %v1714, 32
  %v1716 = vpop.permute.xlu0 %1715
  %v1718 = vsel %vm415, %v1706, %v1716
  %v1719 = vpack.c.bf16 %v1718, %v1718
  %v1721 = vsel %vm75, %v1719, 0
  %1723 = vmatprep.subr.bf16.mxu0 %v259
  %1724 = vmatpush1.bf16.msra.mxu0 %v258
  %1725 = vmatprep.subr.bf16.mxu0 %v261
  %1726 = vmatpush1.bf16.msra.mxu0 %v260
  %1727 = vmatprep.subr.bf16.mxu0 %v263
  %1728 = vmatpush1.bf16.msra.mxu0 %v262
  %1729 = vmatprep.subr.bf16.mxu0 %v265
  %1730 = vmatpush1.bf16.msra.mxu0 %v264
  %1731 = vmatprep.subr.bf16.mxu0 0
  %1732 = vmatpush1.bf16.msra.mxu0 0
  %1733 = vmatprep.subr.bf16.mxu0 0
  %1734 = vmatpush1.bf16.msra.mxu0 0
  %1735 = vmatprep.subr.bf16.mxu0 0
  %1736 = vmatpush1.bf16.msra.mxu0 0
  %1737 = vmatprep.subr.bf16.mxu0 0
  %1738 = vmatpush1.bf16.msra.mxu0 0
  %1739 = vmatprep.subr.bf16.mxu0 0
  %1740 = vmatpush1.bf16.msra.mxu0 0
  %1741 = vmatprep.subr.bf16.mxu0 0
  %1742 = vmatpush1.bf16.msra.mxu0 0
  %1743 = vmatprep.subr.bf16.mxu0 0
  %1744 = vmatpush1.bf16.msra.mxu0 0
  %1745 = vmatprep.subr.bf16.mxu0 0
  %1746 = vmatpush1.bf16.msra.mxu0 0
  %1747 = vmatprep.subr.bf16.mxu0 0
  %1748 = vmatpush1.bf16.msra.mxu0 0
  %1749 = vmatprep.subr.bf16.mxu0 0
  %1750 = vmatpush1.bf16.msra.mxu0 0
  %1751 = vmatprep.subr.bf16.mxu0 0
  %1752 = vmatpush1.bf16.msra.mxu0 0
  %1753 = vmatprep.subr.bf16.mxu0 0
  %1754 = vmatpush1.bf16.msra.mxu0 0
  %1755 = vmatprep.mubr.bf16.mxu0 0
  %1756 = vmatmul.mubr.bf16.gmra.mrb[0].mxu0 %v1721
  %v1757 = vpop.f32.mrb[0].mxu0
  %v1758 = vadd.f32 0.0, %v1757
  %v1759 = vpop.f32.mrb[0].mxu0
  %v1760 = vadd.f32 0.0, %v1759
  %v1761 = vpop.f32.mrb[0].mxu0
  %v1762 = vpop.f32.mrb[0].mxu0
  %1763 = vdwg.mxu0
  %v1765 = vrot.slane %v213, 2
  %v1767 = vadd.f32 %v1758, %v1765
  %v1768 = vxor.u32 %v1767, 2147483648
  %v1769 = vmul.f32 %v1768, 1.442695
  %v1770 = vpow.pop %v1769
  %v1771 = vadd.f32 %v1770, 1.0
  %v1772 = vrcp.pop %v1771
  %v1773 = vmul.f32 1.0, %v1772
  %v1774 = vtanh.pop %v1767
  %v1775 = vmul.f32 %v1773, %v1684
  %1777 = vrot.lane.b32.xlu0 %v1774, 32
  %v1778 = vpop.permute.xlu0 %1777
  %v1780 = vmul.f32 %v1773, %v1778
  %1782 = vrot.lane.b32.xlu0 %v1780, 32
  %v1783 = vpop.permute.xlu0 %1782
  %v1785 = vadd.f32 %v1775, %v1783
  %v1786 = vtanh.pop %v1785
  %1788 = vrot.lane.b32.xlu0 %v1786, 32
  %v1789 = vpop.permute.xlu0 %1788
  %v1791 = vmul.f32 %v1773, %v1789
  %v1792 = vrot.slane %v209, 4
  %v1794 = vadd.f32 %v1760, %v1792
  %v1795 = vxor.u32 %v1794, 2147483648
  %v1796 = vmul.f32 %v1795, 1.442695
  %v1797 = vpow.pop %v1796
  %v1798 = vadd.f32 %v1797, 1.0
  %v1799 = vrcp.pop %v1798
  %v1800 = vmul.f32 1.0, %v1799
  %v1801 = vtanh.pop %v1794
  %v1803 = vrot.slane %v1703, 6
  %1804 = vrot.lane.b32.xlu0 %v1803, 32
  %v1805 = vpop.permute.xlu0 %1804
  %v1807 = vmul.f32 %v1800, %v1805
  %1809 = vrot.lane.b32.xlu0 %v1801, 32
  %v1810 = vpop.permute.xlu0 %1809
  %v1812 = vmul.f32 %v1800, %v1810
  %1814 = vrot.lane.b32.xlu0 %v1812, 32
  %v1815 = vpop.permute.xlu0 %1814
  %v1817 = vadd.f32 %v1807, %v1815
  %v1818 = vtanh.pop %v1817
  %1820 = vrot.lane.b32.xlu0 %v1818, 32
  %v1821 = vpop.permute.xlu0 %1820
  %v1823 = vmul.f32 %v1800, %v1821
  %v1824 = vsub.f32 %v1791, %v1681
  %v1826 = vrot.slane %v1824, 6
  %1827 = vrot.lane.b32.xlu0 %v1826, 64
  %v1828 = vpop.permute.xlu0 %1827
  %v1830 = vmul.f32 %v1041, %v1828
  %v1832 = vrot.slane %v1830, 2
  %1833 = vrot.lane.b32.xlu0 %v1832, 64
  %v1834 = vpop.permute.xlu0 %1833
  %v1836 = vadd.f32 %v1681, %v1834
  %v1837 = vsub.f32 %v1785, %v1684
  %v1839 = vrot.slane %v1837, 6
  %1840 = vrot.lane.b32.xlu0 %v1839, 96
  %v1841 = vpop.permute.xlu0 %1840
  %v1843 = vmul.f32 %v1041, %v1841
  %v1845 = vrot.slane %v1843, 2
  %1846 = vrot.lane.b32.xlu0 %v1845, 32
  %v1847 = vpop.permute.xlu0 %1846
  %v1849 = vadd.f32 %v1684, %v1847
  %1850 = vrot.lane.b32.xlu0 %v1714, 64
  %v1851 = vpop.permute.xlu0 %1850
  %v1853 = vsub.f32 %v1823, %v1851
  %v1855 = vrot.slane %v1853, 4
  %1856 = vrot.lane.b32.xlu0 %v1855, 64
  %v1857 = vpop.permute.xlu0 %1856
  %v1859 = vmul.f32 %v1027, %v1857
  %v1861 = vrot.slane %v1859, 6
  %v1863 = vadd.f32 %v1695, %v1861
  %v1864 = vsub.f32 %v1817, %v1805
  %v1866 = vrot.slane %v1864, 4
  %1867 = vrot.lane.b32.xlu0 %v1866, 96
  %v1868 = vpop.permute.xlu0 %1867
  %v1870 = vmul.f32 %v1027, %v1868
  %v1872 = vrot.slane %v1870, 6
  %v1874 = vadd.f32 %v1703, %v1872
  %1876 = vrot.lane.b32.xlu0 %v1836, 64
  %v1877 = vpop.permute.xlu0 %1876
  %1879 = vst.msk [vmem:[#allocation2 + $0x12] sm:$0x3] %vm403, %v1877
  %1881 = vrot.lane.b32.xlu0 %v1863, 32
  %v1882 = vpop.permute.xlu0 %1881
  %1884 = vst.msk [vmem:[#allocation2 + $0x6] sm:$0xc0] %vm409, %v1882
  %v1885 = vrot.slane %v1863, 6
  %1886 = vrot.lane.b32.xlu0 %v1885, 32
  %v1887 = vpop.permute.xlu0 %1886
  %v1889 = vsel %vm415, %v1877, %v1887
  %v1890 = vpack.c.bf16 %v1889, %v1889
  %v1892 = vsel %vm75, %v1890, 0
  %1894 = vmatprep.subr.bf16.mxu0 %v259
  %1895 = vmatpush1.bf16.msra.mxu0 %v258
  %1896 = vmatprep.subr.bf16.mxu0 %v261
  %1897 = vmatpush1.bf16.msra.mxu0 %v260
  %1898 = vmatprep.subr.bf16.mxu0 %v263
  %1899 = vmatpush1.bf16.msra.mxu0 %v262
  %1900 = vmatprep.subr.bf16.mxu0 %v265
  %1901 = vmatpush1.bf16.msra.mxu0 %v264
  %1902 = vmatprep.subr.bf16.mxu0 0
  %1903 = vmatpush1.bf16.msra.mxu0 0
  %1904 = vmatprep.subr.bf16.mxu0 0
  %1905 = vmatpush1.bf16.msra.mxu0 0
  %1906 = vmatprep.subr.bf16.mxu0 0
  %1907 = vmatpush1.bf16.msra.mxu0 0
  %1908 = vmatprep.subr.bf16.mxu0 0
  %1909 = vmatpush1.bf16.msra.mxu0 0
  %1910 = vmatprep.subr.bf16.mxu0 0
  %1911 = vmatpush1.bf16.msra.mxu0 0
  %1912 = vmatprep.subr.bf16.mxu0 0
  %1913 = vmatpush1.bf16.msra.mxu0 0
  %1914 = vmatprep.subr.bf16.mxu0 0
  %1915 = vmatpush1.bf16.msra.mxu0 0
  %1916 = vmatprep.subr.bf16.mxu0 0
  %1917 = vmatpush1.bf16.msra.mxu0 0
  %1918 = vmatprep.subr.bf16.mxu0 0
  %1919 = vmatpush1.bf16.msra.mxu0 0
  %1920 = vmatprep.subr.bf16.mxu0 0
  %1921 = vmatpush1.bf16.msra.mxu0 0
  %1922 = vmatprep.subr.bf16.mxu0 0
  %1923 = vmatpush1.bf16.msra.mxu0 0
  %1924 = vmatprep.subr.bf16.mxu0 0
  %1925 = vmatpush1.bf16.msra.mxu0 0
  %1926 = vmatprep.mubr.bf16.mxu0 0
  %1927 = vmatmul.mubr.bf16.gmra.mrb[0].mxu0 %v1892
  %v1928 = vpop.f32.mrb[0].mxu0
  %v1929 = vadd.f32 0.0, %v1928
  %v1930 = vpop.f32.mrb[0].mxu0
  %v1931 = vadd.f32 0.0, %v1930
  %v1932 = vpop.f32.mrb[0].mxu0
  %v1933 = vpop.f32.mrb[0].mxu0
  %1934 = vdwg.mxu0
  %v1935 = vrot.slane %v213, 4
  %v1937 = vadd.f32 %v1929, %v1935
  %v1938 = vxor.u32 %v1937, 2147483648
  %v1939 = vmul.f32 %v1938, 1.442695
  %v1940 = vpow.pop %v1939
  %v1941 = vadd.f32 %v1940, 1.0
  %v1942 = vrcp.pop %v1941
  %v1943 = vmul.f32 1.0, %v1942
  %v1944 = vtanh.pop %v1937
  %v1945 = vmul.f32 %v1943, %v1849
  %1947 = vrot.lane.b32.xlu0 %v1944, 32
  %v1948 = vpop.permute.xlu0 %1947
  %v1950 = vmul.f32 %v1943, %v1948
  %1952 = vrot.lane.b32.xlu0 %v1950, 32
  %v1953 = vpop.permute.xlu0 %1952
  %v1955 = vadd.f32 %v1945, %v1953
  %v1956 = vtanh.pop %v1955
  %1958 = vrot.lane.b32.xlu0 %v1956, 32
  %v1959 = vpop.permute.xlu0 %1958
  %v1961 = vmul.f32 %v1943, %v1959
  %v1962 = vrot.slane %v209, 2
  %v1964 = vadd.f32 %v1931, %v1962
  %v1965 = vxor.u32 %v1964, 2147483648
  %v1966 = vmul.f32 %v1965, 1.442695
  %v1967 = vpow.pop %v1966
  %v1968 = vadd.f32 %v1967, 1.0
  %v1969 = vrcp.pop %v1968
  %v1970 = vmul.f32 1.0, %v1969
  %v1971 = vtanh.pop %v1964
  %v1973 = vrot.slane %v1874, 6
  %1974 = vrot.lane.b32.xlu0 %v1973, 32
  %v1975 = vpop.permute.xlu0 %1974
  %v1977 = vmul.f32 %v1970, %v1975
  %1979 = vrot.lane.b32.xlu0 %v1971, 32
  %v1980 = vpop.permute.xlu0 %1979
  %v1982 = vmul.f32 %v1970, %v1980
  %1984 = vrot.lane.b32.xlu0 %v1982, 32
  %v1985 = vpop.permute.xlu0 %1984
  %v1987 = vadd.f32 %v1977, %v1985
  %v1988 = vtanh.pop %v1987
  %1990 = vrot.lane.b32.xlu0 %v1988, 32
  %v1991 = vpop.permute.xlu0 %1990
  %v1993 = vmul.f32 %v1970, %v1991
  %v1994 = vsub.f32 %v1961, %v1836
  %v1996 = vrot.slane %v1994, 4
  %1997 = vrot.lane.b32.xlu0 %v1996, 64
  %v1998 = vpop.permute.xlu0 %1997
  %v2000 = vmul.f32 %v1041, %v1998
  %v2002 = vrot.slane %v2000, 4
  %2003 = vrot.lane.b32.xlu0 %v2002, 64
  %v2004 = vpop.permute.xlu0 %2003
  %v2006 = vadd.f32 %v1836, %v2004
  %v2007 = vsub.f32 %v1955, %v1849
  %v2009 = vrot.slane %v2007, 4
  %2010 = vrot.lane.b32.xlu0 %v2009, 96
  %v2011 = vpop.permute.xlu0 %2010
  %v2013 = vmul.f32 %v1041, %v2011
  %v2015 = vrot.slane %v2013, 4
  %2016 = vrot.lane.b32.xlu0 %v2015, 32
  %v2017 = vpop.permute.xlu0 %2016
  %v2019 = vadd.f32 %v1849, %v2017
  %2020 = vrot.lane.b32.xlu0 %v1885, 64
  %v2021 = vpop.permute.xlu0 %2020
  %v2023 = vsub.f32 %v1993, %v2021
  %v2025 = vrot.slane %v2023, 6
  %2026 = vrot.lane.b32.xlu0 %v2025, 64
  %v2027 = vpop.permute.xlu0 %2026
  %v2029 = vmul.f32 %v1027, %v2027
  %v2031 = vrot.slane %v2029, 4
  %v2033 = vadd.f32 %v1863, %v2031
  %v2034 = vsub.f32 %v1987, %v1975
  %v2036 = vrot.slane %v2034, 6
  %2037 = vrot.lane.b32.xlu0 %v2036, 96
  %v2038 = vpop.permute.xlu0 %2037
  %v2040 = vmul.f32 %v1027, %v2038
  %v2042 = vrot.slane %v2040, 4
  %v2044 = vadd.f32 %v1874, %v2042
  %2046 = vrot.lane.b32.xlu0 %v2006, 64
  %v2047 = vpop.permute.xlu0 %2046
  %2049 = vst.msk [vmem:[#allocation2 + $0x14] sm:$0x3] %vm403, %v2047
  %2051 = vrot.lane.b32.xlu0 %v2033, 32
  %v2052 = vpop.permute.xlu0 %2051
  %2054 = vst.msk [vmem:[#allocation2 + $0x4] sm:$0xc0] %vm409, %v2052
  %v2055 = vrot.slane %v2033, 6
  %2056 = vrot.lane.b32.xlu0 %v2055, 32
  %v2057 = vpop.permute.xlu0 %2056
  %v2059 = vsel %vm415, %v2047, %v2057
  %v2060 = vpack.c.bf16 %v2059, %v2059
  %v2062 = vsel %vm75, %v2060, 0
  %2064 = vmatprep.subr.bf16.mxu0 %v259
  %2065 = vmatpush1.bf16.msra.mxu0 %v258
  %2066 = vmatprep.subr.bf16.mxu0 %v261
  %2067 = vmatpush1.bf16.msra.mxu0 %v260
  %2068 = vmatprep.subr.bf16.mxu0 %v263
  %2069 = vmatpush1.bf16.msra.mxu0 %v262
  %2070 = vmatprep.subr.bf16.mxu0 %v265
  %2071 = vmatpush1.bf16.msra.mxu0 %v264
  %2072 = vmatprep.subr.bf16.mxu0 0
  %2073 = vmatpush1.bf16.msra.mxu0 0
  %2074 = vmatprep.subr.bf16.mxu0 0
  %2075 = vmatpush1.bf16.msra.mxu0 0
  %2076 = vmatprep.subr.bf16.mxu0 0
  %2077 = vmatpush1.bf16.msra.mxu0 0
  %2078 = vmatprep.subr.bf16.mxu0 0
  %2079 = vmatpush1.bf16.msra.mxu0 0
  %2080 = vmatprep.subr.bf16.mxu0 0
  %2081 = vmatpush1.bf16.msra.mxu0 0
  %2082 = vmatprep.subr.bf16.mxu0 0
  %2083 = vmatpush1.bf16.msra.mxu0 0
  %2084 = vmatprep.subr.bf16.mxu0 0
  %2085 = vmatpush1.bf16.msra.mxu0 0
  %2086 = vmatprep.subr.bf16.mxu0 0
  %2087 = vmatpush1.bf16.msra.mxu0 0
  %2088 = vmatprep.subr.bf16.mxu0 0
  %2089 = vmatpush1.bf16.msra.mxu0 0
  %2090 = vmatprep.subr.bf16.mxu0 0
  %2091 = vmatpush1.bf16.msra.mxu0 0
  %2092 = vmatprep.subr.bf16.mxu0 0
  %2093 = vmatpush1.bf16.msra.mxu0 0
  %2094 = vmatprep.subr.bf16.mxu0 0
  %2095 = vmatpush1.bf16.msra.mxu0 0
  %2096 = vmatprep.mubr.bf16.mxu0 0
  %2097 = vmatmul.mubr.bf16.gmra.mrb[0].mxu0 %v2062
  %v2098 = vpop.f32.mrb[0].mxu0
  %v2099 = vadd.f32 0.0, %v2098
  %v2100 = vpop.f32.mrb[0].mxu0
  %v2101 = vadd.f32 0.0, %v2100
  %v2102 = vpop.f32.mrb[0].mxu0
  %v2103 = vpop.f32.mrb[0].mxu0
  %2104 = vdwg.mxu0
  %v2105 = vrot.slane %v213, 6
  %v2107 = vadd.f32 %v2099, %v2105
  %v2108 = vxor.u32 %v2107, 2147483648
  %v2109 = vmul.f32 %v2108, 1.442695
  %v2110 = vpow.pop %v2109
  %v2111 = vadd.f32 %v2110, 1.0
  %v2112 = vrcp.pop %v2111
  %v2113 = vmul.f32 1.0, %v2112
  %v2114 = vtanh.pop %v2107
  %v2115 = vmul.f32 %v2113, %v2019
  %2117 = vrot.lane.b32.xlu0 %v2114, 32
  %v2118 = vpop.permute.xlu0 %2117
  %v2120 = vmul.f32 %v2113, %v2118
  %2122 = vrot.lane.b32.xlu0 %v2120, 32
  %v2123 = vpop.permute.xlu0 %2122
  %v2125 = vadd.f32 %v2115, %v2123
  %v2126 = vtanh.pop %v2125
  %2128 = vrot.lane.b32.xlu0 %v2126, 32
  %v2129 = vpop.permute.xlu0 %2128
  %v2131 = vmul.f32 %v2113, %v2129
  %v2132 = vadd.f32 %v2101, %v209
  %v2133 = vxor.u32 %v2132, 2147483648
  %v2134 = vmul.f32 %v2133, 1.442695
  %v2135 = vpow.pop %v2134
  %v2136 = vadd.f32 %v2135, 1.0
  %v2137 = vrcp.pop %v2136
  %v2138 = vmul.f32 1.0, %v2137
  %v2139 = vtanh.pop %v2132
  %v2141 = vrot.slane %v2044, 6
  %2142 = vrot.lane.b32.xlu0 %v2141, 32
  %v2143 = vpop.permute.xlu0 %2142
  %v2145 = vmul.f32 %v2138, %v2143
  %2147 = vrot.lane.b32.xlu0 %v2139, 32
  %v2148 = vpop.permute.xlu0 %2147
  %v2150 = vmul.f32 %v2138, %v2148
  %2152 = vrot.lane.b32.xlu0 %v2150, 32
  %v2153 = vpop.permute.xlu0 %2152
  %v2155 = vadd.f32 %v2145, %v2153
  %v2156 = vtanh.pop %v2155
  %2158 = vrot.lane.b32.xlu0 %v2156, 32
  %v2159 = vpop.permute.xlu0 %2158
  %v2161 = vmul.f32 %v2138, %v2159
  %v2162 = vsub.f32 %v2131, %v2006
  %v2164 = vrot.slane %v2162, 2
  %2165 = vrot.lane.b32.xlu0 %v2164, 64
  %v2166 = vpop.permute.xlu0 %2165
  %v2168 = vmul.f32 %v1041, %v2166
  %v2170 = vrot.slane %v2168, 6
  %2171 = vrot.lane.b32.xlu0 %v2170, 64
  %v2172 = vpop.permute.xlu0 %2171
  %v2174 = vadd.f32 %v2006, %v2172
  %v2175 = vsub.f32 %v2125, %v2019
  %v2177 = vrot.slane %v2175, 2
  %2178 = vrot.lane.b32.xlu0 %v2177, 96
  %v2179 = vpop.permute.xlu0 %2178
  %v2181 = vmul.f32 %v1041, %v2179
  %v2183 = vrot.slane %v2181, 6
  %2184 = vrot.lane.b32.xlu0 %v2183, 32
  %v2185 = vpop.permute.xlu0 %2184
  %v2187 = vadd.f32 %v2019, %v2185
  %2188 = vrot.lane.b32.xlu0 %v2055, 64
  %v2189 = vpop.permute.xlu0 %2188
  %v2191 = vsub.f32 %v2161, %v2189
  %v2192 = vmul.f32 %v1027, %v2191
  %v2194 = vrot.slane %v2192, 2
  %2195 = vrot.lane.b32.xlu0 %v2194, 64
  %v2196 = vpop.permute.xlu0 %2195
  %v2198 = vadd.f32 %v2033, %v2196
  %v2199 = vsub.f32 %v2155, %v2143
  %v2200 = vmul.f32 %v1027, %v2199
  %v2202 = vrot.slane %v2200, 2
  %2203 = vrot.lane.b32.xlu0 %v2202, 96
  %v2204 = vpop.permute.xlu0 %2203
  %v2206 = vadd.f32 %v2044, %v2204
  %2208 = vrot.lane.b32.xlu0 %v2174, 64
  %v2209 = vpop.permute.xlu0 %2208
  %2211 = vst.msk [vmem:[#allocation2 + $0x16] sm:$0x3] %vm403, %v2209
  %2213 = vrot.lane.b32.xlu0 %v2198, 32
  %v2214 = vpop.permute.xlu0 %2213
  %2216 = vst.msk [vmem:[#allocation2 + $0x2] sm:$0xc0] %vm409, %v2214
  %v2217 = vrot.slane %v2198, 6
  %2218 = vrot.lane.b32.xlu0 %v2217, 32
  %v2219 = vpop.permute.xlu0 %2218
  %v2221 = vsel %vm415, %v2209, %v2219
  %v2222 = vpack.c.bf16 %v2221, %v2221
  %v2224 = vsel %vm75, %v2222, 0
  %2226 = vmatprep.subr.bf16.mxu0 %v259
  %2227 = vmatpush1.bf16.msra.mxu0 %v258
  %2228 = vmatprep.subr.bf16.mxu0 %v261
  %2229 = vmatpush1.bf16.msra.mxu0 %v260
  %2230 = vmatprep.subr.bf16.mxu0 %v263
  %2231 = vmatpush1.bf16.msra.mxu0 %v262
  %2232 = vmatprep.subr.bf16.mxu0 %v265
  %2233 = vmatpush1.bf16.msra.mxu0 %v264
  %2234 = vmatprep.subr.bf16.mxu0 0
  %2235 = vmatpush1.bf16.msra.mxu0 0
  %2236 = vmatprep.subr.bf16.mxu0 0
  %2237 = vmatpush1.bf16.msra.mxu0 0
  %2238 = vmatprep.subr.bf16.mxu0 0
  %2239 = vmatpush1.bf16.msra.mxu0 0
  %2240 = vmatprep.subr.bf16.mxu0 0
  %2241 = vmatpush1.bf16.msra.mxu0 0
  %2242 = vmatprep.subr.bf16.mxu0 0
  %2243 = vmatpush1.bf16.msra.mxu0 0
  %2244 = vmatprep.subr.bf16.mxu0 0
  %2245 = vmatpush1.bf16.msra.mxu0 0
  %2246 = vmatprep.subr.bf16.mxu0 0
  %2247 = vmatpush1.bf16.msra.mxu0 0
  %2248 = vmatprep.subr.bf16.mxu0 0
  %2249 = vmatpush1.bf16.msra.mxu0 0
  %2250 = vmatprep.subr.bf16.mxu0 0
  %2251 = vmatpush1.bf16.msra.mxu0 0
  %2252 = vmatprep.subr.bf16.mxu0 0
  %2253 = vmatpush1.bf16.msra.mxu0 0
  %2254 = vmatprep.subr.bf16.mxu0 0
  %2255 = vmatpush1.bf16.msra.mxu0 0
  %2256 = vmatprep.subr.bf16.mxu0 0
  %2257 = vmatpush1.bf16.msra.mxu0 0
  %2258 = vmatprep.mubr.bf16.mxu0 0
  %2259 = vmatmul.mubr.bf16.gmra.mrb[0].mxu0 %v2224
  %v2260 = vpop.f32.mrb[0].mxu0
  %v2261 = vadd.f32 0.0, %v2260
  %v2262 = vpop.f32.mrb[0].mxu0
  %v2263 = vadd.f32 0.0, %v2262
  %v2264 = vpop.f32.mrb[0].mxu0
  %v2265 = vpop.f32.mrb[0].mxu0
  %2266 = vdwg.mxu0
  %v2267 = vadd.f32 %v2261, %v217
  %v2268 = vxor.u32 %v2267, 2147483648
  %v2269 = vmul.f32 %v2268, 1.442695
  %v2270 = vpow.pop %v2269
  %v2271 = vadd.f32 %v2270, 1.0
  %v2272 = vrcp.pop %v2271
  %v2273 = vmul.f32 1.0, %v2272
  %v2274 = vtanh.pop %v2267
  %v2275 = vmul.f32 %v2273, %v2187
  %2277 = vrot.lane.b32.xlu0 %v2274, 32
  %v2278 = vpop.permute.xlu0 %2277
  %v2280 = vmul.f32 %v2273, %v2278
  %2282 = vrot.lane.b32.xlu0 %v2280, 32
  %v2283 = vpop.permute.xlu0 %2282
  %v2285 = vadd.f32 %v2275, %v2283
  %v2286 = vtanh.pop %v2285
  %2288 = vrot.lane.b32.xlu0 %v2286, 32
  %v2289 = vpop.permute.xlu0 %2288
  %v2291 = vmul.f32 %v2273, %v2289
  %v2293 = vrot.slane %v205, 6
  %v2295 = vadd.f32 %v2263, %v2293
  %v2296 = vxor.u32 %v2295, 2147483648
  %v2297 = vmul.f32 %v2296, 1.442695
  %v2298 = vpow.pop %v2297
  %v2299 = vadd.f32 %v2298, 1.0
  %v2300 = vrcp.pop %v2299
  %v2301 = vmul.f32 1.0, %v2300
  %v2302 = vtanh.pop %v2295
  %v2304 = vrot.slane %v2206, 6
  %2305 = vrot.lane.b32.xlu0 %v2304, 32
  %v2306 = vpop.permute.xlu0 %2305
  %v2308 = vmul.f32 %v2301, %v2306
  %2310 = vrot.lane.b32.xlu0 %v2302, 32
  %v2311 = vpop.permute.xlu0 %2310
  %v2313 = vmul.f32 %v2301, %v2311
  %2315 = vrot.lane.b32.xlu0 %v2313, 32
  %v2316 = vpop.permute.xlu0 %2315
  %v2318 = vadd.f32 %v2308, %v2316
  %v2319 = vtanh.pop %v2318
  %2321 = vrot.lane.b32.xlu0 %v2319, 32
  %v2322 = vpop.permute.xlu0 %2321
  %v2324 = vmul.f32 %v2301, %v2322
  %v2325 = vsub.f32 %v2291, %v2174
  %v2326 = vmul.f32 %v383, %v2325
  %v2327 = vadd.f32 %v2174, %v2326
  %v2328 = vsub.f32 %v2285, %v2187
  %v2329 = vmul.f32 %v383, %v2328
  %v2330 = vadd.f32 %v2187, %v2329
  %2331 = vrot.lane.b32.xlu0 %v2217, 64
  %v2332 = vpop.permute.xlu0 %2331
  %v2334 = vsub.f32 %v2324, %v2332
  %v2336 = vrot.slane %v2334, 2
  %2337 = vrot.lane.b32.xlu0 %v2336, 64
  %v2338 = vpop.permute.xlu0 %2337
  %v2340 = vmul.f32 %v374, %v2338
  %v2341 = vadd.f32 %v2198, %v2340
  %v2342 = vsub.f32 %v2318, %v2306
  %v2344 = vrot.slane %v2342, 2
  %2345 = vrot.lane.b32.xlu0 %v2344, 96
  %v2346 = vpop.permute.xlu0 %2345
  %v2348 = vmul.f32 %v374, %v2346
  %v2349 = vadd.f32 %v2206, %v2348
  %2351 = vrot.lane.b32.xlu0 %v2327, 64
  %v2352 = vpop.permute.xlu0 %2351
  %2354 = vst.msk [vmem:[#allocation2 + $0x18] sm:$0x3] %vm403, %v2352
  %2356 = vrot.lane.b32.xlu0 %v2341, 32
  %v2357 = vpop.permute.xlu0 %2356
  %2359 = vst.msk [vmem:[#allocation2] sm:$0xc0] %vm409, %v2357
  %v2360 = vrot.slane %v2341, 6
  %2361 = vrot.lane.b32.xlu0 %v2360, 32
  %v2362 = vpop.permute.xlu0 %2361
  %v2364 = vsel %vm415, %v2352, %v2362
  %v2365 = vpack.c.bf16 %v2364, %v2364
  %v2367 = vsel %vm75, %v2365, 0
  %2369 = vmatprep.subr.bf16.mxu0 %v259
  %2370 = vmatpush1.bf16.msra.mxu0 %v258
  %2371 = vmatprep.subr.bf16.mxu0 %v261
  %2372 = vmatpush1.bf16.msra.mxu0 %v260
  %2373 = vmatprep.subr.bf16.mxu0 %v263
  %2374 = vmatpush1.bf16.msra.mxu0 %v262
  %2375 = vmatprep.subr.bf16.mxu0 %v265
  %2376 = vmatpush1.bf16.msra.mxu0 %v264
  %2377 = vmatprep.subr.bf16.mxu0 0
  %2378 = vmatpush1.bf16.msra.mxu0 0
  %2379 = vmatprep.subr.bf16.mxu0 0
  %2380 = vmatpush1.bf16.msra.mxu0 0
  %2381 = vmatprep.subr.bf16.mxu0 0
  %2382 = vmatpush1.bf16.msra.mxu0 0
  %2383 = vmatprep.subr.bf16.mxu0 0
  %2384 = vmatpush1.bf16.msra.mxu0 0
  %2385 = vmatprep.subr.bf16.mxu0 0
  %2386 = vmatpush1.bf16.msra.mxu0 0
  %2387 = vmatprep.subr.bf16.mxu0 0
  %2388 = vmatpush1.bf16.msra.mxu0 0
  %2389 = vmatprep.subr.bf16.mxu0 0
  %2390 = vmatpush1.bf16.msra.mxu0 0
  %2391 = vmatprep.subr.bf16.mxu0 0
  %2392 = vmatpush1.bf16.msra.mxu0 0
  %2393 = vmatprep.subr.bf16.mxu0 0
  %2394 = vmatpush1.bf16.msra.mxu0 0
  %2395 = vmatprep.subr.bf16.mxu0 0
  %2396 = vmatpush1.bf16.msra.mxu0 0
  %2397 = vmatprep.subr.bf16.mxu0 0
  %2398 = vmatpush1.bf16.msra.mxu0 0
  %2399 = vmatprep.subr.bf16.mxu0 0
  %2400 = vmatpush1.bf16.msra.mxu0 0
  %2401 = vmatprep.mubr.bf16.mxu0 0
  %2402 = vmatmul.mubr.bf16.gmra.mrb[0].mxu0 %v2367
  %v2403 = vpop.f32.mrb[0].mxu0
  %v2404 = vadd.f32 0.0, %v2403
  %v2405 = vpop.f32.mrb[0].mxu0
  %v2406 = vadd.f32 0.0, %v2405
  %v2407 = vpop.f32.mrb[0].mxu0
  %v2408 = vpop.f32.mrb[0].mxu0
  %2409 = vdwg.mxu0
  %v2411 = vrot.slane %v217, 2
  %v2413 = vadd.f32 %v2404, %v2411
  %v2414 = vxor.u32 %v2413, 2147483648
  %v2415 = vmul.f32 %v2414, 1.442695
  %v2416 = vpow.pop %v2415
  %v2417 = vadd.f32 %v2416, 1.0
  %v2418 = vrcp.pop %v2417
  %v2419 = vmul.f32 1.0, %v2418
  %v2420 = vtanh.pop %v2413
  %v2421 = vmul.f32 %v2419, %v2330
  %2423 = vrot.lane.b32.xlu0 %v2420, 32
  %v2424 = vpop.permute.xlu0 %2423
  %v2426 = vmul.f32 %v2419, %v2424
  %2428 = vrot.lane.b32.xlu0 %v2426, 32
  %v2429 = vpop.permute.xlu0 %2428
  %v2431 = vadd.f32 %v2421, %v2429
  %v2432 = vtanh.pop %v2431
  %2434 = vrot.lane.b32.xlu0 %v2432, 32
  %v2435 = vpop.permute.xlu0 %2434
  %v2437 = vmul.f32 %v2419, %v2435
  %v2438 = vrot.slane %v205, 4
  %v2440 = vadd.f32 %v2406, %v2438
  %v2441 = vxor.u32 %v2440, 2147483648
  %v2442 = vmul.f32 %v2441, 1.442695
  %v2443 = vpow.pop %v2442
  %v2444 = vadd.f32 %v2443, 1.0
  %v2445 = vrcp.pop %v2444
  %v2446 = vmul.f32 1.0, %v2445
  %v2447 = vtanh.pop %v2440
  %v2449 = vrot.slane %v2349, 6
  %2450 = vrot.lane.b32.xlu0 %v2449, 32
  %v2451 = vpop.permute.xlu0 %2450
  %v2453 = vmul.f32 %v2446, %v2451
  %2455 = vrot.lane.b32.xlu0 %v2447, 32
  %v2456 = vpop.permute.xlu0 %2455
  %v2458 = vmul.f32 %v2446, %v2456
  %2460 = vrot.lane.b32.xlu0 %v2458, 32
  %v2461 = vpop.permute.xlu0 %2460
  %v2463 = vadd.f32 %v2453, %v2461
  %v2464 = vtanh.pop %v2463
  %2466 = vrot.lane.b32.xlu0 %v2464, 32
  %v2467 = vpop.permute.xlu0 %2466
  %v2469 = vmul.f32 %v2446, %v2467
  %v2470 = vsub.f32 %v2437, %v2327
  %v2472 = vrot.slane %v2470, 6
  %2473 = vrot.lane.b32.xlu0 %v2472, 64
  %v2474 = vpop.permute.xlu0 %2473
  %v2476 = vmul.f32 %v383, %v2474
  %v2478 = vrot.slane %v2476, 2
  %2479 = vrot.lane.b32.xlu0 %v2478, 64
  %v2480 = vpop.permute.xlu0 %2479
  %v2482 = vadd.f32 %v2327, %v2480
  %v2483 = vsub.f32 %v2431, %v2330
  %v2485 = vrot.slane %v2483, 6
  %2486 = vrot.lane.b32.xlu0 %v2485, 96
  %v2487 = vpop.permute.xlu0 %2486
  %v2489 = vmul.f32 %v383, %v2487
  %v2491 = vrot.slane %v2489, 2
  %2492 = vrot.lane.b32.xlu0 %v2491, 32
  %v2493 = vpop.permute.xlu0 %2492
  %v2495 = vadd.f32 %v2330, %v2493
  %2496 = vrot.lane.b32.xlu0 %v2360, 64
  %v2497 = vpop.permute.xlu0 %2496
  %v2499 = vsub.f32 %v2469, %v2497
  %v2501 = vrot.slane %v2499, 4
  %2502 = vrot.lane.b32.xlu0 %v2501, 64
  %v2503 = vpop.permute.xlu0 %2502
  %v2505 = vmul.f32 %v374, %v2503
  %v2507 = vrot.slane %v2505, 6
  %v2509 = vadd.f32 %v2341, %v2507
  %v2510 = vsub.f32 %v2463, %v2451
  %v2512 = vrot.slane %v2510, 4
  %2513 = vrot.lane.b32.xlu0 %v2512, 96
  %v2514 = vpop.permute.xlu0 %2513
  %v2516 = vmul.f32 %v374, %v2514
  %v2518 = vrot.slane %v2516, 6
  %v2520 = vadd.f32 %v2349, %v2518
  %2522 = vrot.lane.b32.xlu0 %v2482, 64
  %v2523 = vpop.permute.xlu0 %2522
  %2525 = vst.msk [vmem:[#allocation2 + $0x1a] sm:$0x3] %vm403, %v2523
  %2527 = vrot.lane.b32.xlu0 %v2509, 32
  %v2528 = vpop.permute.xlu0 %2527
  %2530 = vst.msk [vmem:[#allocation2 - $0x2] sm:$0xc0] %vm409, %v2528
  %v2531 = vrot.slane %v2509, 6
  %2532 = vrot.lane.b32.xlu0 %v2531, 32
  %v2533 = vpop.permute.xlu0 %2532
  %v2535 = vsel %vm415, %v2523, %v2533
  %v2536 = vpack.c.bf16 %v2535, %v2535
  %v2538 = vsel %vm75, %v2536, 0
  %2540 = vmatprep.subr.bf16.mxu0 %v259
  %2541 = vmatpush1.bf16.msra.mxu0 %v258
  %2542 = vmatprep.subr.bf16.mxu0 %v261
  %2543 = vmatpush1.bf16.msra.mxu0 %v260
  %2544 = vmatprep.subr.bf16.mxu0 %v263
  %2545 = vmatpush1.bf16.msra.mxu0 %v262
  %2546 = vmatprep.subr.bf16.mxu0 %v265
  %2547 = vmatpush1.bf16.msra.mxu0 %v264
  %2548 = vmatprep.subr.bf16.mxu0 0
  %2549 = vmatpush1.bf16.msra.mxu0 0
  %2550 = vmatprep.subr.bf16.mxu0 0
  %2551 = vmatpush1.bf16.msra.mxu0 0
  %2552 = vmatprep.subr.bf16.mxu0 0
  %2553 = vmatpush1.bf16.msra.mxu0 0
  %2554 = vmatprep.subr.bf16.mxu0 0
  %2555 = vmatpush1.bf16.msra.mxu0 0
  %2556 = vmatprep.subr.bf16.mxu0 0
  %2557 = vmatpush1.bf16.msra.mxu0 0
  %2558 = vmatprep.subr.bf16.mxu0 0
  %2559 = vmatpush1.bf16.msra.mxu0 0
  %2560 = vmatprep.subr.bf16.mxu0 0
  %2561 = vmatpush1.bf16.msra.mxu0 0
  %2562 = vmatprep.subr.bf16.mxu0 0
  %2563 = vmatpush1.bf16.msra.mxu0 0
  %2564 = vmatprep.subr.bf16.mxu0 0
  %2565 = vmatpush1.bf16.msra.mxu0 0
  %2566 = vmatprep.subr.bf16.mxu0 0
  %2567 = vmatpush1.bf16.msra.mxu0 0
  %2568 = vmatprep.subr.bf16.mxu0 0
  %2569 = vmatpush1.bf16.msra.mxu0 0
  %2570 = vmatprep.subr.bf16.mxu0 0
  %2571 = vmatpush1.bf16.msra.mxu0 0
  %2572 = vmatprep.mubr.bf16.mxu0 0
  %2573 = vmatmul.mubr.bf16.gmra.mrb[0].mxu0 %v2538
  %v2574 = vpop.f32.mrb[0].mxu0
  %v2575 = vadd.f32 0.0, %v2574
  %v2576 = vpop.f32.mrb[0].mxu0
  %v2577 = vadd.f32 0.0, %v2576
  %v2578 = vpop.f32.mrb[0].mxu0
  %v2579 = vpop.f32.mrb[0].mxu0
  %2580 = vdwg.mxu0
  %v2581 = vrot.slane %v217, 4
  %v2583 = vadd.f32 %v2575, %v2581
  %v2584 = vxor.u32 %v2583, 2147483648
  %v2585 = vmul.f32 %v2584, 1.442695
  %v2586 = vpow.pop %v2585
  %v2587 = vadd.f32 %v2586, 1.0
  %v2588 = vrcp.pop %v2587
  %v2589 = vmul.f32 1.0, %v2588
  %v2590 = vtanh.pop %v2583
  %v2591 = vmul.f32 %v2589, %v2495
  %2593 = vrot.lane.b32.xlu0 %v2590, 32
  %v2594 = vpop.permute.xlu0 %2593
  %v2596 = vmul.f32 %v2589, %v2594
  %2598 = vrot.lane.b32.xlu0 %v2596, 32
  %v2599 = vpop.permute.xlu0 %2598
  %v2601 = vadd.f32 %v2591, %v2599
  %v2602 = vtanh.pop %v2601
  %2604 = vrot.lane.b32.xlu0 %v2602, 32
  %v2605 = vpop.permute.xlu0 %2604
  %v2607 = vmul.f32 %v2589, %v2605
  %v2608 = vrot.slane %v205, 2
  %v2610 = vadd.f32 %v2577, %v2608
  %v2611 = vxor.u32 %v2610, 2147483648
  %v2612 = vmul.f32 %v2611, 1.442695
  %v2613 = vpow.pop %v2612
  %v2614 = vadd.f32 %v2613, 1.0
  %v2615 = vrcp.pop %v2614
  %v2616 = vmul.f32 1.0, %v2615
  %v2617 = vtanh.pop %v2610
  %v2619 = vrot.slane %v2520, 6
  %2620 = vrot.lane.b32.xlu0 %v2619, 32
  %v2621 = vpop.permute.xlu0 %2620
  %v2623 = vmul.f32 %v2616, %v2621
  %2625 = vrot.lane.b32.xlu0 %v2617, 32
  %v2626 = vpop.permute.xlu0 %2625
  %v2628 = vmul.f32 %v2616, %v2626
  %2630 = vrot.lane.b32.xlu0 %v2628, 32
  %v2631 = vpop.permute.xlu0 %2630
  %v2633 = vadd.f32 %v2623, %v2631
  %v2634 = vtanh.pop %v2633
  %2636 = vrot.lane.b32.xlu0 %v2634, 32
  %v2637 = vpop.permute.xlu0 %2636
  %v2639 = vmul.f32 %v2616, %v2637
  %v2640 = vsub.f32 %v2607, %v2482
  %v2642 = vrot.slane %v2640, 4
  %2643 = vrot.lane.b32.xlu0 %v2642, 64
  %v2644 = vpop.permute.xlu0 %2643
  %v2646 = vmul.f32 %v383, %v2644
  %v2648 = vrot.slane %v2646, 4
  %2649 = vrot.lane.b32.xlu0 %v2648, 64
  %v2650 = vpop.permute.xlu0 %2649
  %v2652 = vadd.f32 %v2482, %v2650
  %v2653 = vsub.f32 %v2601, %v2495
  %v2655 = vrot.slane %v2653, 4
  %2656 = vrot.lane.b32.xlu0 %v2655, 96
  %v2657 = vpop.permute.xlu0 %2656
  %v2659 = vmul.f32 %v383, %v2657
  %v2661 = vrot.slane %v2659, 4
  %2662 = vrot.lane.b32.xlu0 %v2661, 32
  %v2663 = vpop.permute.xlu0 %2662
  %v2665 = vadd.f32 %v2495, %v2663
  %2666 = vrot.lane.b32.xlu0 %v2531, 64
  %v2667 = vpop.permute.xlu0 %2666
  %v2669 = vsub.f32 %v2639, %v2667
  %v2671 = vrot.slane %v2669, 6
  %2672 = vrot.lane.b32.xlu0 %v2671, 64
  %v2673 = vpop.permute.xlu0 %2672
  %v2675 = vmul.f32 %v374, %v2673
  %v2677 = vrot.slane %v2675, 4
  %v2679 = vadd.f32 %v2509, %v2677
  %v2680 = vsub.f32 %v2633, %v2621
  %v2682 = vrot.slane %v2680, 6
  %2683 = vrot.lane.b32.xlu0 %v2682, 96
  %v2684 = vpop.permute.xlu0 %2683
  %v2686 = vmul.f32 %v374, %v2684
  %v2688 = vrot.slane %v2686, 4
  %v2690 = vadd.f32 %v2520, %v2688
  %2692 = vrot.lane.b32.xlu0 %v2652, 64
  %v2693 = vpop.permute.xlu0 %2692
  %2695 = vst.msk [vmem:[#allocation2 + $0x1c] sm:$0x3] %vm403, %v2693
  %2697 = vrot.lane.b32.xlu0 %v2679, 32
  %v2698 = vpop.permute.xlu0 %2697
  %2700 = vst.msk [vmem:[#allocation2 - $0x4] sm:$0xc0] %vm409, %v2698
  %v2701 = vrot.slane %v2679, 6
  %2702 = vrot.lane.b32.xlu0 %v2701, 32
  %v2703 = vpop.permute.xlu0 %2702
  %v2705 = vsel %vm415, %v2693, %v2703
  %v2706 = vpack.c.bf16 %v2705, %v2705
  %v2708 = vsel %vm75, %v2706, 0
  %2710 = vmatprep.subr.bf16.mxu0 %v259
  %2711 = vmatpush1.bf16.msra.mxu0 %v258
  %2712 = vmatprep.subr.bf16.mxu0 %v261
  %2713 = vmatpush1.bf16.msra.mxu0 %v260
  %2714 = vmatprep.subr.bf16.mxu0 %v263
  %2715 = vmatpush1.bf16.msra.mxu0 %v262
  %2716 = vmatprep.subr.bf16.mxu0 %v265
  %2717 = vmatpush1.bf16.msra.mxu0 %v264
  %2718 = vmatprep.subr.bf16.mxu0 0
  %2719 = vmatpush1.bf16.msra.mxu0 0
  %2720 = vmatprep.subr.bf16.mxu0 0
  %2721 = vmatpush1.bf16.msra.mxu0 0
  %2722 = vmatprep.subr.bf16.mxu0 0
  %2723 = vmatpush1.bf16.msra.mxu0 0
  %2724 = vmatprep.subr.bf16.mxu0 0
  %2725 = vmatpush1.bf16.msra.mxu0 0
  %2726 = vmatprep.subr.bf16.mxu0 0
  %2727 = vmatpush1.bf16.msra.mxu0 0
  %2728 = vmatprep.subr.bf16.mxu0 0
  %2729 = vmatpush1.bf16.msra.mxu0 0
  %2730 = vmatprep.subr.bf16.mxu0 0
  %2731 = vmatpush1.bf16.msra.mxu0 0
  %2732 = vmatprep.subr.bf16.mxu0 0
  %2733 = vmatpush1.bf16.msra.mxu0 0
  %2734 = vmatprep.subr.bf16.mxu0 0
  %2735 = vmatpush1.bf16.msra.mxu0 0
  %2736 = vmatprep.subr.bf16.mxu0 0
  %2737 = vmatpush1.bf16.msra.mxu0 0
  %2738 = vmatprep.subr.bf16.mxu0 0
  %2739 = vmatpush1.bf16.msra.mxu0 0
  %2740 = vmatprep.subr.bf16.mxu0 0
  %2741 = vmatpush1.bf16.msra.mxu0 0
  %2742 = vmatprep.mubr.bf16.mxu0 0
  %2743 = vmatmul.mubr.bf16.gmra.mrb[0].mxu0 %v2708
  %v2744 = vpop.f32.mrb[0].mxu0
  %v2745 = vadd.f32 0.0, %v2744
  %v2746 = vpop.f32.mrb[0].mxu0
  %v2747 = vadd.f32 0.0, %v2746
  %v2748 = vpop.f32.mrb[0].mxu0
  %v2749 = vpop.f32.mrb[0].mxu0
  %2750 = vdwg.mxu0
  %v2751 = vrot.slane %v217, 6
  %v2753 = vadd.f32 %v2745, %v2751
  %v2754 = vxor.u32 %v2753, 2147483648
  %v2755 = vmul.f32 %v2754, 1.442695
  %v2756 = vpow.pop %v2755
  %v2757 = vadd.f32 %v2756, 1.0
  %v2758 = vrcp.pop %v2757
  %v2759 = vmul.f32 1.0, %v2758
  %v2760 = vtanh.pop %v2753
  %v2761 = vmul.f32 %v2759, %v2665
  %2763 = vrot.lane.b32.xlu0 %v2760, 32
  %v2764 = vpop.permute.xlu0 %2763
  %v2766 = vmul.f32 %v2759, %v2764
  %2768 = vrot.lane.b32.xlu0 %v2766, 32
  %v2769 = vpop.permute.xlu0 %2768
  %v2771 = vadd.f32 %v2761, %v2769
  %v2772 = vtanh.pop %v2771
  %2774 = vrot.lane.b32.xlu0 %v2772, 32
  %v2775 = vpop.permute.xlu0 %2774
  %v2777 = vmul.f32 %v2759, %v2775
  %v2778 = vadd.f32 %v2747, %v205
  %v2779 = vxor.u32 %v2778, 2147483648
  %v2780 = vmul.f32 %v2779, 1.442695
  %v2781 = vpow.pop %v2780
  %v2782 = vadd.f32 %v2781, 1.0
  %v2783 = vrcp.pop %v2782
  %v2784 = vmul.f32 1.0, %v2783
  %v2785 = vtanh.pop %v2778
  %v2787 = vrot.slane %v2690, 6
  %2788 = vrot.lane.b32.xlu0 %v2787, 32
  %v2789 = vpop.permute.xlu0 %2788
  %v2791 = vmul.f32 %v2784, %v2789
  %2793 = vrot.lane.b32.xlu0 %v2785, 32
  %v2794 = vpop.permute.xlu0 %2793
  %v2796 = vmul.f32 %v2784, %v2794
  %2798 = vrot.lane.b32.xlu0 %v2796, 32
  %v2799 = vpop.permute.xlu0 %2798
  %v2801 = vadd.f32 %v2791, %v2799
  %v2802 = vtanh.pop %v2801
  %2804 = vrot.lane.b32.xlu0 %v2802, 32
  %v2805 = vpop.permute.xlu0 %2804
  %v2807 = vmul.f32 %v2784, %v2805
  %v2808 = vsub.f32 %v2777, %v2652
  %v2810 = vrot.slane %v2808, 2
  %2811 = vrot.lane.b32.xlu0 %v2810, 64
  %v2812 = vpop.permute.xlu0 %2811
  %v2814 = vmul.f32 %v383, %v2812
  %v2816 = vrot.slane %v2814, 6
  %2817 = vrot.lane.b32.xlu0 %v2816, 64
  %v2818 = vpop.permute.xlu0 %2817
  %v2820 = vadd.f32 %v2652, %v2818
  %2821 = vrot.lane.b32.xlu0 %v2701, 64
  %v2822 = vpop.permute.xlu0 %2821
  %v2824 = vsub.f32 %v2807, %v2822
  %v2825 = vmul.f32 %v374, %v2824
  %v2827 = vrot.slane %v2825, 2
  %2828 = vrot.lane.b32.xlu0 %v2827, 64
  %v2829 = vpop.permute.xlu0 %2828
  %v2831 = vadd.f32 %v2679, %v2829
  %2833 = vrot.lane.b32.xlu0 %v2820, 64
  %v2834 = vpop.permute.xlu0 %2833
  %2836 = vst.msk [vmem:[#allocation2 + $0x1e] sm:$0x3] %vm403, %v2834
  %2838 = vrot.lane.b32.xlu0 %v2831, 32
  %v2839 = vpop.permute.xlu0 %2838
  %2841 = vst.msk [vmem:[#allocation2 - $0x6] sm:$0xc0] %vm409, %v2839
  %v2842 = vld [vmem:[#allocation2] sm:$0xff]
  %v2843 = vld [vmem:[#allocation2 + $0x8] sm:$0xff]
  %v2844 = vld [vmem:[#allocation2 + $0x10] sm:$0xff]
  %v2845 = vld [vmem:[#allocation2 + $0x18] sm:$0xff]
  %v2846 = vpack.c.bf16 %v2843, %v2842
  %v2847 = vpack.c.bf16 %v2845, %v2844
  %v2848 = vld [vmem:[%s7] sm:$0xf]
  %v2849 = vld [vmem:[%s7 + $0x4] sm:$0xf]
  %v2850 = vld [vmem:[%s7 + $0x8] sm:$0xf]
  %v2851 = vld [vmem:[%s7 + $0xc] sm:$0xf]
  %v2852 = vld [vmem:[%s7 + $0x10] sm:$0xf]
  %v2853 = vld [vmem:[%s7 + $0x14] sm:$0xf]
  %v2854 = vld [vmem:[%s7 + $0x18] sm:$0xf]
  %v2855 = vld [vmem:[%s7 + $0x1c] sm:$0xf]
  %v2864 = vunpack.c.l.b16 %v2848
  %v2865 = vunpack.c.l.b16 %v2849
  %v2866 = vunpack.c.l.b16 %v2850
  %v2867 = vunpack.c.l.b16 %v2851
  %v2868 = vunpack.c.l.b16 %v2852
  %v2869 = vunpack.c.l.b16 %v2853
  %v2870 = vunpack.c.l.b16 %v2854
  %v2871 = vunpack.c.l.b16 %v2855
  %v2872 = vpack.c.b16 %v2865, %v2864
  %v2873 = vpack.c.b16 %v2867, %v2866
  %v2874 = vpack.c.b16 %v2869, %v2868
  %v2875 = vpack.c.b16 %v2871, %v2870
  %v2881 = vsel %vm75, %v2846, 0
  %v2884 = vsel %vm75, %v2847, 0
  %2886 = vmatprep.subr.bf16.mxu0 0
  %2887 = vmatpush1.bf16.msra.mxu0 %v2872
  %2888 = vmatprep.subr.bf16.mxu0 0
  %2889 = vmatpush1.bf16.msra.mxu0 %v2873
  %2890 = vmatprep.subr.bf16.mxu0 0
  %2891 = vmatpush1.bf16.msra.mxu0 %v2874
  %2892 = vmatprep.subr.bf16.mxu0 0
  %2893 = vmatpush1.bf16.msra.mxu0 %v2875
  %2894 = vmatprep.subr.bf16.mxu0 0
  %2895 = vmatpush1.bf16.msra.mxu0 0
  %2896 = vmatprep.subr.bf16.mxu0 0
  %2897 = vmatpush1.bf16.msra.mxu0 0
  %2898 = vmatprep.subr.bf16.mxu0 0
  %2899 = vmatpush1.bf16.msra.mxu0 0
  %2900 = vmatprep.subr.bf16.mxu0 0
  %2901 = vmatpush1.bf16.msra.mxu0 0
  %2902 = vmatprep.subr.bf16.mxu0 0
  %2903 = vmatpush1.bf16.msra.mxu0 0
  %2904 = vmatprep.subr.bf16.mxu0 0
  %2905 = vmatpush1.bf16.msra.mxu0 0
  %2906 = vmatprep.subr.bf16.mxu0 0
  %2907 = vmatpush1.bf16.msra.mxu0 0
  %2908 = vmatprep.subr.bf16.mxu0 0
  %2909 = vmatpush1.bf16.msra.mxu0 0
  %2910 = vmatprep.subr.bf16.mxu0 0
  %2911 = vmatpush1.bf16.msra.mxu0 0
  %2912 = vmatprep.subr.bf16.mxu0 0
  %2913 = vmatpush1.bf16.msra.mxu0 0
  %2914 = vmatprep.subr.bf16.mxu0 0
  %2915 = vmatpush1.bf16.msra.mxu0 0
  %2916 = vmatprep.subr.bf16.mxu0 0
  %2917 = vmatpush1.bf16.msra.mxu0 0
  %2918 = vmatprep.mubr.bf16.mxu0 0
  %2919 = vmatmul.mubr.bf16.gmra.mrb[0].mxu0 %v2881
  %v2920 = vpop.f32.mrb[0].mxu0
  %v2921 = vadd.f32 0.0, %v2920
  %v2922 = vpop.f32.mrb[0].mxu0
  %v2923 = vpop.f32.mrb[0].mxu0
  %v2924 = vadd.f32 0.0, %v2923
  %v2925 = vpop.f32.mrb[0].mxu0
  %2926 = vmatprep.mubr.bf16.mxu0 0
  %2927 = vmatmul.mubr.bf16.gmra.mrb[0].mxu0 %v2884
  %v2928 = vpop.f32.mrb[0].mxu0
  %v2929 = vadd.f32 0.0, %v2928
  %v2930 = vpop.f32.mrb[0].mxu0
  %v2931 = vpop.f32.mrb[0].mxu0
  %v2932 = vadd.f32 0.0, %v2931
  %v2933 = vpop.f32.mrb[0].mxu0
  %2934 = vdwg.mxu0
  %v2935 = vmul.f32 %v2921, %v374
  %v2936 = vmul.f32 %v2924, %v1027
  %v2937 = vmul.f32 %v2929, %v1041
  %v2938 = vmul.f32 %v2932, %v383
  %2939 = vst [vmem:[%s8] sm:$0xff] %v2935
  %2940 = vst [vmem:[%s8 + $0x8] sm:$0xff] %v2936
  %2941 = vst [vmem:[%s8 + $0x10] sm:$0xff] %v2937
  %2942 = vst [vmem:[%s8 + $0x18] sm:$0xff] %v2938
  // Predicated region
  $region34: #{bilstm_forward.1} parent=0 // pred_check
    _
  $region35: #{bilstm_forward.1} parent=0 // pred_check_branch
    %2944 = sbr.rel (0) target = $region37
  $region36: #{bilstm_forward.1} parent=0 // pred_region
    _
  $region37: #{bilstm_forward.1} parent=0 // pred_fallthru
    _
  // Predicated region
  $region38: #{bilstm_forward.1} parent=0 // pred_check
    _
  $region39: #{bilstm_forward.1} parent=0 // pred_check_branch
    %2946 = sbr.rel (0) target = $region41
  $region40: #{bilstm_forward.1} parent=0 // pred_region
    _
  $region41: #{bilstm_forward.1} parent=0 // pred_fallthru
    _

</llo_original>
